<compile_context>
chip_gen: v5e
topology: v5e:2x2
jax: 0.10.0
libtpu: 0.0.40
codegen_flags: <defaults>
</compile_context>

<pallas_src>
import functools

import jax
import jax.numpy as jnp
from jax.experimental import pallas as pl
from jax.experimental.pallas import tpu as pltpu

LANE = 128
SUB = 16      # sublane alignment used for L tiles / halos (safe for f32 & bf16)


def _rup(n, m):
    return ((n + m - 1) // m) * m


def _pad_to(a, shape):
    return jnp.pad(a, [(0, t - s) for s, t in zip(a.shape, shape)])


# ---------------------------------------------------------------------------
# Fully fused TCN kernel: every TemporalBlock + the Linear head for one
# (batch row, L-tile) per grid step.  Activations stay in VMEM throughout.
# ---------------------------------------------------------------------------
def _make_tcn_kernel(ltile, rf_pad, K, has_ds_list, compute_dtype):
    W = ltile + rf_pad          # halo'd window length processed per grid step

    def kernel(*refs):
        i = 0
        xc_ref = refs[i]; i += 1            # (1, ltile, cin_p)  current tile
        xp_ref = refs[i]; i += 1            # (1, ltile, cin_p)  previous tile
        blks = []
        for has_ds in has_ds_list:
            w1, b1, w2, b2 = refs[i:i + 4]; i += 4
            wd = bd = None
            if has_ds:
                wd, bd = refs[i:i + 2]; i += 2
            blks.append((w1, b1, w2, b2, wd, bd))
        lw_ref, lb_ref = refs[i:i + 2]; i += 2
        o_ref = refs[i]; i += 1
        win_ref = refs[i]                   # VMEM scratch (W, cin_p)

        lt = pl.program_id(1)

        # Halo'd window in VMEM: [prev tile's last rf_pad rows | current tile].
        win_ref[pl.ds(0, rf_pad), :] = xp_ref[0, pl.ds(ltile - rf_pad, rf_pad), :]
        win_ref[pl.ds(rf_pad, ltile), :] = xc_ref[0]
        xwin = win_ref[...].astype(jnp.float32)

        # Within-sequence time of every window row, as a cheap (W, 1) column.
        # Rows with t < 0 are before the sequence start: every causal tap that
        # would read them is zeroed below, which reproduces the reference
        # Conv1d(padding=(K-1)*dil) + Chomp1d left-zero padding at EVERY conv.
        t_col = ((lt * ltile - rf_pad)
                 + jax.lax.broadcasted_iota(jnp.int32, (W, 1), 0))

        def causal_conv(v_f32, v_c, w_ref, b_ref, dil):
            """Dilated causal conv over the window as K tall MXU matmuls.

            Shifts use pltpu.roll (XLU slot) on the f32 activations; the (W,1)
            time mask zeroes taps that cross the sequence start.  Elementwise
            work stays f32 (fast on v5e); only MXU operands are compute_dtype.
            """
            cout = w_ref.shape[-1]
            # accumulator initialized from the broadcast bias; f32 accumulate.
            acc = jnp.broadcast_to(b_ref[...].astype(jnp.float32), (W, cout))
            # TODO(synk): when K*Cin_real <= 128 the K taps could be im2col-
            # packed into a single 128-lane contraction (one MXU pass / conv).
            for k in range(K):                       # K static, unrolled
                s = (K - 1 - k) * dil                # causal shift of tap k
                if s == 0:
                    xs = v_c
                else:
                    m = (t_col >= s).astype(jnp.float32)          # (W, 1)
                    xs = (pltpu.roll(v_f32, shift=s, axis=0) * m
                          ).astype(compute_dtype)
                acc = acc + jnp.dot(xs, w_ref[k],
                                    preferred_element_type=jnp.float32)
            return acc

        h = xwin                                     # f32, VMEM-resident
        for b, (w1, b1, w2, b2, wd, bd) in enumerate(blks):
            dil = 2 ** b
            h_c = h.astype(compute_dtype)
            # conv1 -> chomp -> ReLU -> (dropout = identity)
            a = jnp.maximum(causal_conv(h, h_c, w1, b1, dil), 0.0)
            # conv2 -> chomp -> ReLU -> (dropout = identity)
            o = jnp.maximum(
                causal_conv(a, a.astype(compute_dtype), w2, b2, dil), 0.0)
            # residual branch: fused 1x1 downsample conv, or identity
            if wd is not None:
                res = jnp.broadcast_to(bd[...].astype(jnp.float32),
                                       (W, o.shape[-1]))
                res = res + jnp.dot(h_c, wd[...],
                                    preferred_element_type=jnp.float32)
            else:
                res = h
            h = jnp.maximum(o + res, 0.0)

        # fused Linear head
        y = jnp.broadcast_to(lb_ref[...].astype(jnp.float32),
                             (W, lw_ref.shape[-1]))
        y = y + jnp.dot(h.astype(compute_dtype), lw_ref[...],
                        preferred_element_type=jnp.float32)

        # only the last ltile rows of the window belong to this output tile
        o_ref[0] = y[rf_pad:, :].astype(o_ref.dtype)

    return kernel


def tcn_forward(x, pparams, *, num_inputs, kernel_size=3, ltile_target=256):
    """x: (N, L, num_inputs) (channel_last=True).  pparams from pad_tcn_params."""
    N, L, C = x.shape
    K = kernel_size
    blocks = pparams["blocks"]
    nb = len(blocks)
    cin_p = blocks[0]["w1"].shape[1]
    nin_p = pparams["lin_w"].shape[-1]
    compute_dtype = pparams["lin_w"].dtype

    # total causal receptive field of the stacked blocks == per-tile halo
    rf = 2 * (K - 1) * (2 ** nb - 1)
    rf_pad = _rup(max(rf, SUB), SUB)
    ltile = max(_rup(min(_rup(L, SUB), max(SUB, ltile_target)), SUB), rf_pad)
    L_pad = _rup(L, ltile)
    n_lt = L_pad // ltile

    # lane-dense + tile-aligned input, padded once in the wrapper
    x_p = jnp.pad(x, ((0, 0), (0, L_pad - L), (0, cin_p - C)))

    has_ds = [b["wd"] is not None for b in blocks]
    args = [x_p, x_p]            # current-tile view + previous-tile (halo) view
    for b in blocks:
        args += [b["w1"], b["b1"], b["w2"], b["b2"]]
        if b["wd"] is not None:
            args += [b["wd"], b["bd"]]
    args += [pparams["lin_w"], pparams["lin_b"]]

    def _const_spec(a):
        nd = a.ndim
        return pl.BlockSpec(a.shape, lambda n, lt, _nd=nd: (0,) * _nd)

    in_specs = [
        pl.BlockSpec((1, ltile, cin_p), lambda n, lt: (n, lt, 0)),
        pl.BlockSpec((1, ltile, cin_p),
                     lambda n, lt: (n, jnp.maximum(lt - 1, 0), 0)),
    ] + [_const_spec(a) for a in args[2:]]           # weights stay VMEM-resident

    # explicit VMEM budget from the actual tile working set (with headroom)
    W = ltile + rf_pad
    cmax_p = max([cin_p, nin_p] + [b["w1"].shape[-1] for b in blocks])
    wbytes = sum(int(a.size) * a.dtype.itemsize for a in args[2:])
    est = 4 * (4 * ltile * cin_p + 2 * ltile * nin_p + 12 * W * cmax_p) + 2 * wbytes
    vmem_limit = int(min(max(32 << 20, 2 * est), 56 << 20))

    kernel = _make_tcn_kernel(ltile, rf_pad, K, has_ds, compute_dtype)
    out = pl.pallas_call(
        kernel,
        out_shape=jax.ShapeDtypeStruct((N, L_pad, nin_p), x.dtype),
        grid=(N, n_lt),
        in_specs=in_specs,
        out_specs=pl.BlockSpec((1, ltile, nin_p), lambda n, lt: (n, lt, 0)),
        scratch_shapes=[pltpu.VMEM((W, cin_p), x.dtype)],
        compiler_params=pltpu.CompilerParams(
            dimension_semantics=("parallel", "parallel"),
            vmem_limit_bytes=vmem_limit),
    )(*args)
    return out[:, :L, :num_inputs]


# ---------------------------------------------------------------------------
# Parameter construction (synthetic, mimics the module's init) + lane padding.
# ---------------------------------------------------------------------------
def _weight_norm_conv_weight(key, cout, cin, K):
    kv, kg = jax.random.split(key)
    v = 0.01 * jax.random.normal(kv, (cout, cin, K), jnp.float32)  # normal_(0,0.01)
    g = jax.random.uniform(kg, (cout,), jnp.float32, 0.5, 1.5)     # weight_g
    norm = jnp.sqrt(jnp.sum(v * v, axis=(1, 2), keepdims=True))
    w = g[:, None, None] * v / (norm + 1e-12)                      # (Cout,Cin,K)
    return jnp.transpose(w, (2, 1, 0))                             # (K,Cin,Cout)


def _bias(key, cout, fan_in):
    bound = 1.0 / jnp.sqrt(jnp.float32(fan_in))
    return jax.random.uniform(key, (1, cout), jnp.float32, -bound, bound)


def make_tcn_params(key, num_inputs, num_channels, kernel_size=3):
    params = {"blocks": []}
    for i, cout in enumerate(num_channels):
        cin = num_inputs if i == 0 else num_channels[i - 1]
        key, k1, k2, k3, k4, k5, k6 = jax.random.split(key, 7)
        blk = {
            "w1": _weight_norm_conv_weight(k1, cout, cin, kernel_size),
            "b1": _bias(k2, cout, cin * kernel_size),
            "w2": _weight_norm_conv_weight(k3, cout, cout, kernel_size),
            "b2": _bias(k4, cout, cout * kernel_size),
            "wd": None,
            "bd": None,
        }
        if cin != cout:
            wd = 0.01 * jax.random.normal(k5, (cout, cin), jnp.float32)
            blk["wd"] = jnp.transpose(wd)                          # (Cin, Cout)
            blk["bd"] = _bias(k6, cout, cin)
        params["blocks"].append(blk)
    key, kw, kb = jax.random.split(key, 3)
    c_last = num_channels[-1]
    bound = 1.0 / jnp.sqrt(jnp.float32(c_last))
    lw = jax.random.uniform(kw, (num_inputs, c_last), jnp.float32, -bound, bound)
    params["lin_w"] = jnp.transpose(lw)                            # (C_last, num_inputs)
    params["lin_b"] = jax.random.uniform(kb, (1, num_inputs), jnp.float32,
                                         -bound, bound)
    return params


def pad_tcn_params(params, compute_dtype=jnp.bfloat16):
    """Zero-pad channel dims to multiples of 128 and pre-cast the MXU-operand
    weights to compute_dtype once (biases stay f32 for f32 accumulation)."""
    pp = {"blocks": []}
    for p in params["blocks"]:
        K, cin, cout = p["w1"].shape
        cin_p, cout_p = _rup(cin, LANE), _rup(cout, LANE)
        blk = {
            "w1": _pad_to(p["w1"], (K, cin_p, cout_p)).astype(compute_dtype),
            "b1": _pad_to(p["b1"], (1, cout_p)),
            "w2": _pad_to(p["w2"], (K, cout_p, cout_p)).astype(compute_dtype),
            "b2": _pad_to(p["b2"], (1, cout_p)),
            "wd": None,
            "bd": None,
        }
        if p["wd"] is not None:
            blk["wd"] = _pad_to(p["wd"], (cin_p, cout_p)).astype(compute_dtype)
            blk["bd"] = _pad_to(p["bd"], (1, cout_p))
        pp["blocks"].append(blk)
    c_last, nin = params["lin_w"].shape
    pp["lin_w"] = _pad_to(params["lin_w"],
                          (_rup(c_last, LANE), _rup(nin, LANE))).astype(compute_dtype)
    pp["lin_b"] = _pad_to(params["lin_b"], (1, _rup(nin, LANE)))
    return pp


# ---------------------------------------------------------------------------
# Pure-JAX reference (unpadded params, same math) for correctness checks.
# ---------------------------------------------------------------------------
def _ref_conv(xp_, w, b, L, dil):
    K = w.shape[0]
    out = jnp.zeros((xp_.shape[0], L, w.shape[-1]), jnp.float32) + b
    for k in range(K):
        out = out + jnp.einsum("nlc,co->nlo",
                               xp_[:, k * dil:k * dil + L, :], w[k])
    return out


def tcn_reference(x, params, kernel_size=3):
    h = x
    for i, p in enumerate(params["blocks"]):
        dil = 2 ** i
        pad = (kernel_size - 1) * dil
        N, L, _ = h.shape
        xp_ = jnp.pad(h, ((0, 0), (pad, 0), (0, 0)))
        a = jnp.maximum(_ref_conv(xp_, p["w1"], p["b1"], L, dil), 0.0)
        ap = jnp.pad(a, ((0, 0), (pad, 0), (0, 0)))
        o = jnp.maximum(_ref_conv(ap, p["w2"], p["b2"], L, dil), 0.0)
        if p["wd"] is None:
            res = h
        else:
            res = jnp.einsum("nlc,co->nlo", h, p["wd"]) + p["bd"]
        h = jnp.maximum(o + res, 0.0)
    return jnp.einsum("nlc,co->nlo", h, params["lin_w"]) + params["lin_b"]


if __name__ == "__main__":
    key = jax.random.PRNGKey(0)

    def run_case(case_key, N, L, num_inputs, num_channels, ltile_target):
        kx, kp = jax.random.split(case_key)
        x = jax.random.normal(kx, (N, L, num_inputs), jnp.float32)  # channel_last
        params = make_tcn_params(kp, num_inputs, num_channels, 3)
        y_ref = tcn_reference(x, params, 3)

        fwd = jax.jit(functools.partial(tcn_forward, num_inputs=num_inputs,
                                        kernel_size=3,
                                        ltile_target=ltile_target))

        # f32 MXU-operand path: tight reference check.
        y32 = fwd(x, pad_tcn_params(params, jnp.float32))
        jax.block_until_ready(y32)
        assert y32.shape == (N, L, num_inputs), y32.shape
        err32 = float(jnp.max(jnp.abs(y32 - y_ref)))
        assert jnp.allclose(y32, y_ref, atol=2e-4, rtol=2e-4), err32

        # bf16 MXU-operand path (default fast config): loose check.
        ybf = fwd(x, pad_tcn_params(params, jnp.bfloat16))
        jax.block_until_ready(ybf)
        errbf = float(jnp.max(jnp.abs(ybf - y_ref)))
        assert jnp.isfinite(errbf) and errbf < 1e-1, errbf

    # Small case: single L-tile, exercises downsample + identity residual paths.
    run_case(jax.random.fold_in(key, 0), N=2, L=16, num_inputs=4,
             num_channels=[8, 8, 16], ltile_target=256)
    # Larger ragged case: L not tile-aligned, multiple L-tiles with halos,
    # distinct per-sequence data (checks no future / cross-tile / cross-batch
    # leakage through the causal mask and halo machinery).
    run_case(jax.random.fold_in(key, 1), N=2, L=203, num_inputs=4,
             num_channels=[8, 16, 16], ltile_target=64)

    print("KERNEL_OK")
</pallas_src>

<mosaic_0001>
module attributes {stable_mosaic.version = 11 : i64} {
  func.func @kernel(%arg0: i32, %arg1: i32, %arg2: memref<1x32x128xf32, #tpu.memory_space<vmem>>, %arg3: memref<1x32x128xf32, #tpu.memory_space<vmem>>, %arg4: memref<3x128x128xf32, #tpu.memory_space<vmem>>, %arg5: memref<1x128xf32, #tpu.memory_space<vmem>>, %arg6: memref<3x128x128xf32, #tpu.memory_space<vmem>>, %arg7: memref<1x128xf32, #tpu.memory_space<vmem>>, %arg8: memref<128x128xf32, #tpu.memory_space<vmem>>, %arg9: memref<1x128xf32, #tpu.memory_space<vmem>>, %arg10: memref<3x128x128xf32, #tpu.memory_space<vmem>>, %arg11: memref<1x128xf32, #tpu.memory_space<vmem>>, %arg12: memref<3x128x128xf32, #tpu.memory_space<vmem>>, %arg13: memref<1x128xf32, #tpu.memory_space<vmem>>, %arg14: memref<3x128x128xf32, #tpu.memory_space<vmem>>, %arg15: memref<1x128xf32, #tpu.memory_space<vmem>>, %arg16: memref<3x128x128xf32, #tpu.memory_space<vmem>>, %arg17: memref<1x128xf32, #tpu.memory_space<vmem>>, %arg18: memref<128x128xf32, #tpu.memory_space<vmem>>, %arg19: memref<1x128xf32, #tpu.memory_space<vmem>>, %arg20: memref<128x128xf32, #tpu.memory_space<vmem>>, %arg21: memref<1x128xf32, #tpu.memory_space<vmem>>, %arg22: memref<1x32x128xf32, #tpu.memory_space<vmem>>, %arg23: memref<64x128xf32, #tpu.memory_space<vmem>>) attributes {dimension_semantics = [#tpu.dimension_semantics<parallel>, #tpu.dimension_semantics<parallel>], iteration_bounds = array<i64: 2, 1>, scalar_prefetch = 0 : i64, scratch_operands = 1 : i64, tpu.core_type = #tpu.core_type<tc>, window_params = [{transform_indices = @transform_0, window_bounds = array<i64: 1, 32, 128>}, {transform_indices = @transform_1, window_bounds = array<i64: 1, 32, 128>}, {pipeline_mode = #tpu.pipeline_mode<synchronous>, transform_indices = @transform_2, window_bounds = array<i64: 3, 128, 128>}, {pipeline_mode = #tpu.pipeline_mode<synchronous>, transform_indices = @transform_3, window_bounds = array<i64: 1, 128>}, {pipeline_mode = #tpu.pipeline_mode<synchronous>, transform_indices = @transform_4, window_bounds = array<i64: 3, 128, 128>}, {pipeline_mode = #tpu.pipeline_mode<synchronous>, transform_indices = @transform_5, window_bounds = array<i64: 1, 128>}, {pipeline_mode = #tpu.pipeline_mode<synchronous>, transform_indices = @transform_6, window_bounds = array<i64: 128, 128>}, {pipeline_mode = #tpu.pipeline_mode<synchronous>, transform_indices = @transform_7, window_bounds = array<i64: 1, 128>}, {pipeline_mode = #tpu.pipeline_mode<synchronous>, transform_indices = @transform_8, window_bounds = array<i64: 3, 128, 128>}, {pipeline_mode = #tpu.pipeline_mode<synchronous>, transform_indices = @transform_9, window_bounds = array<i64: 1, 128>}, {pipeline_mode = #tpu.pipeline_mode<synchronous>, transform_indices = @transform_10, window_bounds = array<i64: 3, 128, 128>}, {pipeline_mode = #tpu.pipeline_mode<synchronous>, transform_indices = @transform_11, window_bounds = array<i64: 1, 128>}, {pipeline_mode = #tpu.pipeline_mode<synchronous>, transform_indices = @transform_12, window_bounds = array<i64: 3, 128, 128>}, {pipeline_mode = #tpu.pipeline_mode<synchronous>, transform_indices = @transform_13, window_bounds = array<i64: 1, 128>}, {pipeline_mode = #tpu.pipeline_mode<synchronous>, transform_indices = @transform_14, window_bounds = array<i64: 3, 128, 128>}, {pipeline_mode = #tpu.pipeline_mode<synchronous>, transform_indices = @transform_15, window_bounds = array<i64: 1, 128>}, {pipeline_mode = #tpu.pipeline_mode<synchronous>, transform_indices = @transform_16, window_bounds = array<i64: 128, 128>}, {pipeline_mode = #tpu.pipeline_mode<synchronous>, transform_indices = @transform_17, window_bounds = array<i64: 1, 128>}, {pipeline_mode = #tpu.pipeline_mode<synchronous>, transform_indices = @transform_18, window_bounds = array<i64: 128, 128>}, {pipeline_mode = #tpu.pipeline_mode<synchronous>, transform_indices = @transform_19, window_bounds = array<i64: 1, 128>}, {transform_indices = @transform_20, window_bounds = array<i64: 1, 32, 128>}]} {
    %c0 = arith.constant 0 : index
    %c0_0 = arith.constant 0 : index
    %c0_1 = arith.constant 0 : index
    %0 = vector.load %arg3[%c0, %c0_0, %c0_1] : memref<1x32x128xf32, #tpu.memory_space<vmem>>, vector<1x32x128xf32>
    %1 = vector.shape_cast %0 : vector<1x32x128xf32> to vector<32x128xf32>
    %c0_2 = arith.constant 0 : index
    %c0_3 = arith.constant 0 : index
    %2 = vector.load %arg23[%c0_2, %c0_3] : memref<64x128xf32, #tpu.memory_space<vmem>>, vector<32x128xf32>
    tpu.vector_store %arg23[%c0_2, %c0_3], %1 {strides = array<i32>} : memref<64x128xf32, #tpu.memory_space<vmem>>, vector<32x128xf32>,
    %c0_4 = arith.constant 0 : index
    %c0_5 = arith.constant 0 : index
    %c0_6 = arith.constant 0 : index
    %3 = vector.load %arg2[%c0_4, %c0_5, %c0_6] : memref<1x32x128xf32, #tpu.memory_space<vmem>>, vector<1x32x128xf32>
    %4 = vector.shape_cast %3 : vector<1x32x128xf32> to vector<32x128xf32>
    %c32 = arith.constant 32 : index
    %c0_7 = arith.constant 0 : index
    %5 = vector.load %arg23[%c32, %c0_7] : memref<64x128xf32, #tpu.memory_space<vmem>>, vector<32x128xf32>
    tpu.vector_store %arg23[%c32, %c0_7], %4 {strides = array<i32>} : memref<64x128xf32, #tpu.memory_space<vmem>>, vector<32x128xf32>,
    %c0_8 = arith.constant 0 : index
    %c0_9 = arith.constant 0 : index
    %6 = vector.load %arg23[%c0_8, %c0_9] : memref<64x128xf32, #tpu.memory_space<vmem>>, vector<64x128xf32>
    %c32_i32 = arith.constant 32 : i32
    %7 = arith.muli %arg1, %c32_i32 : i32
    %c32_i32_10 = arith.constant 32 : i32
    %8 = arith.subi %7, %c32_i32_10 : i32
    %9 = tpu.iota {dimensions = array<i32: 0>} : vector<64x1xi32>
    %10 = vector.broadcast %8 : i32 to vector<64x1xi32>
    %11 = arith.addi %10, %9 : vector<64x1xi32>
    %c0_11 = arith.constant 0 : index
    %c0_12 = arith.constant 0 : index
    %12 = vector.load %arg5[%c0_11, %c0_12] : memref<1x128xf32, #tpu.memory_space<vmem>>, vector<1x128xf32>
    %13 = vector.shape_cast %12 : vector<1x128xf32> to vector<1x128xf32>
    %14 = vector.broadcast %13 : vector<1x128xf32> to vector<64x128xf32>
    %c2_i32 = arith.constant 2 : i32
    %15 = vector.broadcast %c2_i32 : i32 to vector<64x1xi32>
    %16 = arith.cmpi sge, %11, %15 : vector<64x1xi32>
    %17 = arith.extui %16 : vector<64x1xi1> to vector<64x1xi32>
    %18 = arith.sitofp %17 : vector<64x1xi32> to vector<64x1xf32>
    %c2_i32_13 = arith.constant 2 : i32
    %19 = tpu.dynamic_rotate %6 by %c2_i32_13 dim 0 : vector<64x128xf32>, i32 -> vector<64x128xf32>
    %20 = vector.broadcast %18 : vector<64x1xf32> to vector<64x128xf32>
    %21 = arith.mulf %19, %20 : vector<64x128xf32>
    %c0_14 = arith.constant 0 : index
    %c0_15 = arith.constant 0 : index
    %c0_16 = arith.constant 0 : index
    %22 = vector.load %arg4[%c0_14, %c0_15, %c0_16] : memref<3x128x128xf32, #tpu.memory_space<vmem>>, vector<1x128x128xf32>
    %23 = vector.shape_cast %22 : vector<1x128x128xf32> to vector<128x128xf32>
    %cst = arith.constant dense<0.000000e+00> : vector<64x128xf32>
    %24 = tpu.matmul %21, %23, %cst {dimension_numbers = #tpu.dot_dimension_numbers<[1], [0], [0], [1], [0, 0, 1, 1], [], []>} : vector<64x128xf32>, vector<128x128xf32>, vector<64x128xf32> -> vector<64x128xf32>
    %25 = arith.addf %14, %24 : vector<64x128xf32>
    %c1_i32 = arith.constant 1 : i32
    %26 = vector.broadcast %c1_i32 : i32 to vector<64x1xi32>
    %27 = arith.cmpi sge, %11, %26 : vector<64x1xi32>
    %28 = arith.extui %27 : vector<64x1xi1> to vector<64x1xi32>
    %29 = arith.sitofp %28 : vector<64x1xi32> to vector<64x1xf32>
    %c1_i32_17 = arith.constant 1 : i32
    %30 = tpu.dynamic_rotate %6 by %c1_i32_17 dim 0 : vector<64x128xf32>, i32 -> vector<64x128xf32>
    %31 = vector.broadcast %29 : vector<64x1xf32> to vector<64x128xf32>
    %32 = arith.mulf %30, %31 : vector<64x128xf32>
    %c1 = arith.constant 1 : index
    %c0_18 = arith.constant 0 : index
    %c0_19 = arith.constant 0 : index
    %33 = vector.load %arg4[%c1, %c0_18, %c0_19] : memref<3x128x128xf32, #tpu.memory_space<vmem>>, vector<1x128x128xf32>
    %34 = vector.shape_cast %33 : vector<1x128x128xf32> to vector<128x128xf32>
    %cst_20 = arith.constant dense<0.000000e+00> : vector<64x128xf32>
    %35 = tpu.matmul %32, %34, %cst_20 {dimension_numbers = #tpu.dot_dimension_numbers<[1], [0], [0], [1], [0, 0, 1, 1], [], []>} : vector<64x128xf32>, vector<128x128xf32>, vector<64x128xf32> -> vector<64x128xf32>
    %36 = arith.addf %25, %35 : vector<64x128xf32>
    %c2 = arith.constant 2 : index
    %c0_21 = arith.constant 0 : index
    %c0_22 = arith.constant 0 : index
    %37 = vector.load %arg4[%c2, %c0_21, %c0_22] : memref<3x128x128xf32, #tpu.memory_space<vmem>>, vector<1x128x128xf32>
    %38 = vector.shape_cast %37 : vector<1x128x128xf32> to vector<128x128xf32>
    %cst_23 = arith.constant dense<0.000000e+00> : vector<64x128xf32>
    %39 = tpu.matmul %6, %38, %cst_23 {dimension_numbers = #tpu.dot_dimension_numbers<[1], [0], [0], [1], [0, 0, 1, 1], [], []>} : vector<64x128xf32>, vector<128x128xf32>, vector<64x128xf32> -> vector<64x128xf32>
    %40 = arith.addf %36, %39 : vector<64x128xf32>
    %cst_24 = arith.constant 0.000000e+00 : f32
    %41 = vector.broadcast %cst_24 : f32 to vector<64x128xf32>
    %42 = arith.maximumf %40, %41 : vector<64x128xf32>
    %c0_25 = arith.constant 0 : index
    %c0_26 = arith.constant 0 : index
    %43 = vector.load %arg7[%c0_25, %c0_26] : memref<1x128xf32, #tpu.memory_space<vmem>>, vector<1x128xf32>
    %44 = vector.shape_cast %43 : vector<1x128xf32> to vector<1x128xf32>
    %45 = vector.broadcast %44 : vector<1x128xf32> to vector<64x128xf32>
    %c2_i32_27 = arith.constant 2 : i32
    %46 = vector.broadcast %c2_i32_27 : i32 to vector<64x1xi32>
    %47 = arith.cmpi sge, %11, %46 : vector<64x1xi32>
    %48 = arith.extui %47 : vector<64x1xi1> to vector<64x1xi32>
    %49 = arith.sitofp %48 : vector<64x1xi32> to vector<64x1xf32>
    %c2_i32_28 = arith.constant 2 : i32
    %50 = tpu.dynamic_rotate %42 by %c2_i32_28 dim 0 : vector<64x128xf32>, i32 -> vector<64x128xf32>
    %51 = vector.broadcast %49 : vector<64x1xf32> to vector<64x128xf32>
    %52 = arith.mulf %50, %51 : vector<64x128xf32>
    %c0_29 = arith.constant 0 : index
    %c0_30 = arith.constant 0 : index
    %c0_31 = arith.constant 0 : index
    %53 = vector.load %arg6[%c0_29, %c0_30, %c0_31] : memref<3x128x128xf32, #tpu.memory_space<vmem>>, vector<1x128x128xf32>
    %54 = vector.shape_cast %53 : vector<1x128x128xf32> to vector<128x128xf32>
    %cst_32 = arith.constant dense<0.000000e+00> : vector<64x128xf32>
    %55 = tpu.matmul %52, %54, %cst_32 {dimension_numbers = #tpu.dot_dimension_numbers<[1], [0], [0], [1], [0, 0, 1, 1], [], []>} : vector<64x128xf32>, vector<128x128xf32>, vector<64x128xf32> -> vector<64x128xf32>
    %56 = arith.addf %45, %55 : vector<64x128xf32>
    %c1_i32_33 = arith.constant 1 : i32
    %57 = vector.broadcast %c1_i32_33 : i32 to vector<64x1xi32>
    %58 = arith.cmpi sge, %11, %57 : vector<64x1xi32>
    %59 = arith.extui %58 : vector<64x1xi1> to vector<64x1xi32>
    %60 = arith.sitofp %59 : vector<64x1xi32> to vector<64x1xf32>
    %c1_i32_34 = arith.constant 1 : i32
    %61 = tpu.dynamic_rotate %42 by %c1_i32_34 dim 0 : vector<64x128xf32>, i32 -> vector<64x128xf32>
    %62 = vector.broadcast %60 : vector<64x1xf32> to vector<64x128xf32>
    %63 = arith.mulf %61, %62 : vector<64x128xf32>
    %c1_35 = arith.constant 1 : index
    %c0_36 = arith.constant 0 : index
    %c0_37 = arith.constant 0 : index
    %64 = vector.load %arg6[%c1_35, %c0_36, %c0_37] : memref<3x128x128xf32, #tpu.memory_space<vmem>>, vector<1x128x128xf32>
    %65 = vector.shape_cast %64 : vector<1x128x128xf32> to vector<128x128xf32>
    %cst_38 = arith.constant dense<0.000000e+00> : vector<64x128xf32>
    %66 = tpu.matmul %63, %65, %cst_38 {dimension_numbers = #tpu.dot_dimension_numbers<[1], [0], [0], [1], [0, 0, 1, 1], [], []>} : vector<64x128xf32>, vector<128x128xf32>, vector<64x128xf32> -> vector<64x128xf32>
    %67 = arith.addf %56, %66 : vector<64x128xf32>
    %c2_39 = arith.constant 2 : index
    %c0_40 = arith.constant 0 : index
    %c0_41 = arith.constant 0 : index
    %68 = vector.load %arg6[%c2_39, %c0_40, %c0_41] : memref<3x128x128xf32, #tpu.memory_space<vmem>>, vector<1x128x128xf32>
    %69 = vector.shape_cast %68 : vector<1x128x128xf32> to vector<128x128xf32>
    %cst_42 = arith.constant dense<0.000000e+00> : vector<64x128xf32>
    %70 = tpu.matmul %42, %69, %cst_42 {dimension_numbers = #tpu.dot_dimension_numbers<[1], [0], [0], [1], [0, 0, 1, 1], [], []>} : vector<64x128xf32>, vector<128x128xf32>, vector<64x128xf32> -> vector<64x128xf32>
    %71 = arith.addf %67, %70 : vector<64x128xf32>
    %cst_43 = arith.constant 0.000000e+00 : f32
    %72 = vector.broadcast %cst_43 : f32 to vector<64x128xf32>
    %73 = arith.maximumf %71, %72 : vector<64x128xf32>
    %c0_44 = arith.constant 0 : index
    %c0_45 = arith.constant 0 : index
    %74 = vector.load %arg9[%c0_44, %c0_45] : memref<1x128xf32, #tpu.memory_space<vmem>>, vector<1x128xf32>
    %75 = vector.shape_cast %74 : vector<1x128xf32> to vector<1x128xf32>
    %76 = vector.broadcast %75 : vector<1x128xf32> to vector<64x128xf32>
    %c0_46 = arith.constant 0 : index
    %c0_47 = arith.constant 0 : index
    %77 = vector.load %arg8[%c0_46, %c0_47] : memref<128x128xf32, #tpu.memory_space<vmem>>, vector<128x128xf32>
    %cst_48 = arith.constant dense<0.000000e+00> : vector<64x128xf32>
    %78 = tpu.matmul %6, %77, %cst_48 {dimension_numbers = #tpu.dot_dimension_numbers<[1], [0], [0], [1], [0, 0, 1, 1], [], []>} : vector<64x128xf32>, vector<128x128xf32>, vector<64x128xf32> -> vector<64x128xf32>
    %79 = arith.addf %76, %78 : vector<64x128xf32>
    %80 = arith.addf %73, %79 : vector<64x128xf32>
    %cst_49 = arith.constant 0.000000e+00 : f32
    %81 = vector.broadcast %cst_49 : f32 to vector<64x128xf32>
    %82 = arith.maximumf %80, %81 : vector<64x128xf32>
    %c0_50 = arith.constant 0 : index
    %c0_51 = arith.constant 0 : index
    %83 = vector.load %arg11[%c0_50, %c0_51] : memref<1x128xf32, #tpu.memory_space<vmem>>, vector<1x128xf32>
    %84 = vector.shape_cast %83 : vector<1x128xf32> to vector<1x128xf32>
    %85 = vector.broadcast %84 : vector<1x128xf32> to vector<64x128xf32>
    %c4_i32 = arith.constant 4 : i32
    %86 = vector.broadcast %c4_i32 : i32 to vector<64x1xi32>
    %87 = arith.cmpi sge, %11, %86 : vector<64x1xi32>
    %88 = arith.extui %87 : vector<64x1xi1> to vector<64x1xi32>
    %89 = arith.sitofp %88 : vector<64x1xi32> to vector<64x1xf32>
    %c4_i32_52 = arith.constant 4 : i32
    %90 = tpu.dynamic_rotate %82 by %c4_i32_52 dim 0 : vector<64x128xf32>, i32 -> vector<64x128xf32>
    %91 = vector.broadcast %89 : vector<64x1xf32> to vector<64x128xf32>
    %92 = arith.mulf %90, %91 : vector<64x128xf32>
    %c0_53 = arith.constant 0 : index
    %c0_54 = arith.constant 0 : index
    %c0_55 = arith.constant 0 : index
    %93 = vector.load %arg10[%c0_53, %c0_54, %c0_55] : memref<3x128x128xf32, #tpu.memory_space<vmem>>, vector<1x128x128xf32>
    %94 = vector.shape_cast %93 : vector<1x128x128xf32> to vector<128x128xf32>
    %cst_56 = arith.constant dense<0.000000e+00> : vector<64x128xf32>
    %95 = tpu.matmul %92, %94, %cst_56 {dimension_numbers = #tpu.dot_dimension_numbers<[1], [0], [0], [1], [0, 0, 1, 1], [], []>} : vector<64x128xf32>, vector<128x128xf32>, vector<64x128xf32> -> vector<64x128xf32>
    %96 = arith.addf %85, %95 : vector<64x128xf32>
    %c2_i32_57 = arith.constant 2 : i32
    %97 = vector.broadcast %c2_i32_57 : i32 to vector<64x1xi32>
    %98 = arith.cmpi sge, %11, %97 : vector<64x1xi32>
    %99 = arith.extui %98 : vector<64x1xi1> to vector<64x1xi32>
    %100 = arith.sitofp %99 : vector<64x1xi32> to vector<64x1xf32>
    %c2_i32_58 = arith.constant 2 : i32
    %101 = tpu.dynamic_rotate %82 by %c2_i32_58 dim 0 : vector<64x128xf32>, i32 -> vector<64x128xf32>
    %102 = vector.broadcast %100 : vector<64x1xf32> to vector<64x128xf32>
    %103 = arith.mulf %101, %102 : vector<64x128xf32>
    %c1_59 = arith.constant 1 : index
    %c0_60 = arith.constant 0 : index
    %c0_61 = arith.constant 0 : index
    %104 = vector.load %arg10[%c1_59, %c0_60, %c0_61] : memref<3x128x128xf32, #tpu.memory_space<vmem>>, vector<1x128x128xf32>
    %105 = vector.shape_cast %104 : vector<1x128x128xf32> to vector<128x128xf32>
    %cst_62 = arith.constant dense<0.000000e+00> : vector<64x128xf32>
    %106 = tpu.matmul %103, %105, %cst_62 {dimension_numbers = #tpu.dot_dimension_numbers<[1], [0], [0], [1], [0, 0, 1, 1], [], []>} : vector<64x128xf32>, vector<128x128xf32>, vector<64x128xf32> -> vector<64x128xf32>
    %107 = arith.addf %96, %106 : vector<64x128xf32>
    %c2_63 = arith.constant 2 : index
    %c0_64 = arith.constant 0 : index
    %c0_65 = arith.constant 0 : index
    %108 = vector.load %arg10[%c2_63, %c0_64, %c0_65] : memref<3x128x128xf32, #tpu.memory_space<vmem>>, vector<1x128x128xf32>
    %109 = vector.shape_cast %108 : vector<1x128x128xf32> to vector<128x128xf32>
    %cst_66 = arith.constant dense<0.000000e+00> : vector<64x128xf32>
    %110 = tpu.matmul %82, %109, %cst_66 {dimension_numbers = #tpu.dot_dimension_numbers<[1], [0], [0], [1], [0, 0, 1, 1], [], []>} : vector<64x128xf32>, vector<128x128xf32>, vector<64x128xf32> -> vector<64x128xf32>
    %111 = arith.addf %107, %110 : vector<64x128xf32>
    %cst_67 = arith.constant 0.000000e+00 : f32
    %112 = vector.broadcast %cst_67 : f32 to vector<64x128xf32>
    %113 = arith.maximumf %111, %112 : vector<64x128xf32>
    %c0_68 = arith.constant 0 : index
    %c0_69 = arith.constant 0 : index
    %114 = vector.load %arg13[%c0_68, %c0_69] : memref<1x128xf32, #tpu.memory_space<vmem>>, vector<1x128xf32>
    %115 = vector.shape_cast %114 : vector<1x128xf32> to vector<1x128xf32>
    %116 = vector.broadcast %115 : vector<1x128xf32> to vector<64x128xf32>
    %c4_i32_70 = arith.constant 4 : i32
    %117 = vector.broadcast %c4_i32_70 : i32 to vector<64x1xi32>
    %118 = arith.cmpi sge, %11, %117 : vector<64x1xi32>
    %119 = arith.extui %118 : vector<64x1xi1> to vector<64x1xi32>
    %120 = arith.sitofp %119 : vector<64x1xi32> to vector<64x1xf32>
    %c4_i32_71 = arith.constant 4 : i32
    %121 = tpu.dynamic_rotate %113 by %c4_i32_71 dim 0 : vector<64x128xf32>, i32 -> vector<64x128xf32>
    %122 = vector.broadcast %120 : vector<64x1xf32> to vector<64x128xf32>
    %123 = arith.mulf %121, %122 : vector<64x128xf32>
    %c0_72 = arith.constant 0 : index
    %c0_73 = arith.constant 0 : index
    %c0_74 = arith.constant 0 : index
    %124 = vector.load %arg12[%c0_72, %c0_73, %c0_74] : memref<3x128x128xf32, #tpu.memory_space<vmem>>, vector<1x128x128xf32>
    %125 = vector.shape_cast %124 : vector<1x128x128xf32> to vector<128x128xf32>
    %cst_75 = arith.constant dense<0.000000e+00> : vector<64x128xf32>
    %126 = tpu.matmul %123, %125, %cst_75 {dimension_numbers = #tpu.dot_dimension_numbers<[1], [0], [0], [1], [0, 0, 1, 1], [], []>} : vector<64x128xf32>, vector<128x128xf32>, vector<64x128xf32> -> vector<64x128xf32>
    %127 = arith.addf %116, %126 : vector<64x128xf32>
    %c2_i32_76 = arith.constant 2 : i32
    %128 = vector.broadcast %c2_i32_76 : i32 to vector<64x1xi32>
    %129 = arith.cmpi sge, %11, %128 : vector<64x1xi32>
    %130 = arith.extui %129 : vector<64x1xi1> to vector<64x1xi32>
    %131 = arith.sitofp %130 : vector<64x1xi32> to vector<64x1xf32>
    %c2_i32_77 = arith.constant 2 : i32
    %132 = tpu.dynamic_rotate %113 by %c2_i32_77 dim 0 : vector<64x128xf32>, i32 -> vector<64x128xf32>
    %133 = vector.broadcast %131 : vector<64x1xf32> to vector<64x128xf32>
    %134 = arith.mulf %132, %133 : vector<64x128xf32>
    %c1_78 = arith.constant 1 : index
    %c0_79 = arith.constant 0 : index
    %c0_80 = arith.constant 0 : index
    %135 = vector.load %arg12[%c1_78, %c0_79, %c0_80] : memref<3x128x128xf32, #tpu.memory_space<vmem>>, vector<1x128x128xf32>
    %136 = vector.shape_cast %135 : vector<1x128x128xf32> to vector<128x128xf32>
    %cst_81 = arith.constant dense<0.000000e+00> : vector<64x128xf32>
    %137 = tpu.matmul %134, %136, %cst_81 {dimension_numbers = #tpu.dot_dimension_numbers<[1], [0], [0], [1], [0, 0, 1, 1], [], []>} : vector<64x128xf32>, vector<128x128xf32>, vector<64x128xf32> -> vector<64x128xf32>
    %138 = arith.addf %127, %137 : vector<64x128xf32>
    %c2_82 = arith.constant 2 : index
    %c0_83 = arith.constant 0 : index
    %c0_84 = arith.constant 0 : index
    %139 = vector.load %arg12[%c2_82, %c0_83, %c0_84] : memref<3x128x128xf32, #tpu.memory_space<vmem>>, vector<1x128x128xf32>
    %140 = vector.shape_cast %139 : vector<1x128x128xf32> to vector<128x128xf32>
    %cst_85 = arith.constant dense<0.000000e+00> : vector<64x128xf32>
    %141 = tpu.matmul %113, %140, %cst_85 {dimension_numbers = #tpu.dot_dimension_numbers<[1], [0], [0], [1], [0, 0, 1, 1], [], []>} : vector<64x128xf32>, vector<128x128xf32>, vector<64x128xf32> -> vector<64x128xf32>
    %142 = arith.addf %138, %141 : vector<64x128xf32>
    %cst_86 = arith.constant 0.000000e+00 : f32
    %143 = vector.broadcast %cst_86 : f32 to vector<64x128xf32>
    %144 = arith.maximumf %142, %143 : vector<64x128xf32>
    %145 = arith.addf %144, %82 : vector<64x128xf32>
    %cst_87 = arith.constant 0.000000e+00 : f32
    %146 = vector.broadcast %cst_87 : f32 to vector<64x128xf32>
    %147 = arith.maximumf %145, %146 : vector<64x128xf32>
    %c0_88 = arith.constant 0 : index
    %c0_89 = arith.constant 0 : index
    %148 = vector.load %arg15[%c0_88, %c0_89] : memref<1x128xf32, #tpu.memory_space<vmem>>, vector<1x128xf32>
    %149 = vector.shape_cast %148 : vector<1x128xf32> to vector<1x128xf32>
    %150 = vector.broadcast %149 : vector<1x128xf32> to vector<64x128xf32>
    %c8_i32 = arith.constant 8 : i32
    %151 = vector.broadcast %c8_i32 : i32 to vector<64x1xi32>
    %152 = arith.cmpi sge, %11, %151 : vector<64x1xi32>
    %153 = arith.extui %152 : vector<64x1xi1> to vector<64x1xi32>
    %154 = arith.sitofp %153 : vector<64x1xi32> to vector<64x1xf32>
    %c8_i32_90 = arith.constant 8 : i32
    %155 = tpu.dynamic_rotate %147 by %c8_i32_90 dim 0 : vector<64x128xf32>, i32 -> vector<64x128xf32>
    %156 = vector.broadcast %154 : vector<64x1xf32> to vector<64x128xf32>
    %157 = arith.mulf %155, %156 : vector<64x128xf32>
    %c0_91 = arith.constant 0 : index
    %c0_92 = arith.constant 0 : index
    %c0_93 = arith.constant 0 : index
    %158 = vector.load %arg14[%c0_91, %c0_92, %c0_93] : memref<3x128x128xf32, #tpu.memory_space<vmem>>, vector<1x128x128xf32>
    %159 = vector.shape_cast %158 : vector<1x128x128xf32> to vector<128x128xf32>
    %cst_94 = arith.constant dense<0.000000e+00> : vector<64x128xf32>
    %160 = tpu.matmul %157, %159, %cst_94 {dimension_numbers = #tpu.dot_dimension_numbers<[1], [0], [0], [1], [0, 0, 1, 1], [], []>} : vector<64x128xf32>, vector<128x128xf32>, vector<64x128xf32> -> vector<64x128xf32>
    %161 = arith.addf %150, %160 : vector<64x128xf32>
    %c4_i32_95 = arith.constant 4 : i32
    %162 = vector.broadcast %c4_i32_95 : i32 to vector<64x1xi32>
    %163 = arith.cmpi sge, %11, %162 : vector<64x1xi32>
    %164 = arith.extui %163 : vector<64x1xi1> to vector<64x1xi32>
    %165 = arith.sitofp %164 : vector<64x1xi32> to vector<64x1xf32>
    %c4_i32_96 = arith.constant 4 : i32
    %166 = tpu.dynamic_rotate %147 by %c4_i32_96 dim 0 : vector<64x128xf32>, i32 -> vector<64x128xf32>
    %167 = vector.broadcast %165 : vector<64x1xf32> to vector<64x128xf32>
    %168 = arith.mulf %166, %167 : vector<64x128xf32>
    %c1_97 = arith.constant 1 : index
    %c0_98 = arith.constant 0 : index
    %c0_99 = arith.constant 0 : index
    %169 = vector.load %arg14[%c1_97, %c0_98, %c0_99] : memref<3x128x128xf32, #tpu.memory_space<vmem>>, vector<1x128x128xf32>
    %170 = vector.shape_cast %169 : vector<1x128x128xf32> to vector<128x128xf32>
    %cst_100 = arith.constant dense<0.000000e+00> : vector<64x128xf32>
    %171 = tpu.matmul %168, %170, %cst_100 {dimension_numbers = #tpu.dot_dimension_numbers<[1], [0], [0], [1], [0, 0, 1, 1], [], []>} : vector<64x128xf32>, vector<128x128xf32>, vector<64x128xf32> -> vector<64x128xf32>
    %172 = arith.addf %161, %171 : vector<64x128xf32>
    %c2_101 = arith.constant 2 : index
    %c0_102 = arith.constant 0 : index
    %c0_103 = arith.constant 0 : index
    %173 = vector.load %arg14[%c2_101, %c0_102, %c0_103] : memref<3x128x128xf32, #tpu.memory_space<vmem>>, vector<1x128x128xf32>
    %174 = vector.shape_cast %173 : vector<1x128x128xf32> to vector<128x128xf32>
    %cst_104 = arith.constant dense<0.000000e+00> : vector<64x128xf32>
    %175 = tpu.matmul %147, %174, %cst_104 {dimension_numbers = #tpu.dot_dimension_numbers<[1], [0], [0], [1], [0, 0, 1, 1], [], []>} : vector<64x128xf32>, vector<128x128xf32>, vector<64x128xf32> -> vector<64x128xf32>
    %176 = arith.addf %172, %175 : vector<64x128xf32>
    %cst_105 = arith.constant 0.000000e+00 : f32
    %177 = vector.broadcast %cst_105 : f32 to vector<64x128xf32>
    %178 = arith.maximumf %176, %177 : vector<64x128xf32>
    %c0_106 = arith.constant 0 : index
    %c0_107 = arith.constant 0 : index
    %179 = vector.load %arg17[%c0_106, %c0_107] : memref<1x128xf32, #tpu.memory_space<vmem>>, vector<1x128xf32>
    %180 = vector.shape_cast %179 : vector<1x128xf32> to vector<1x128xf32>
    %181 = vector.broadcast %180 : vector<1x128xf32> to vector<64x128xf32>
    %c8_i32_108 = arith.constant 8 : i32
    %182 = vector.broadcast %c8_i32_108 : i32 to vector<64x1xi32>
    %183 = arith.cmpi sge, %11, %182 : vector<64x1xi32>
    %184 = arith.extui %183 : vector<64x1xi1> to vector<64x1xi32>
    %185 = arith.sitofp %184 : vector<64x1xi32> to vector<64x1xf32>
    %c8_i32_109 = arith.constant 8 : i32
    %186 = tpu.dynamic_rotate %178 by %c8_i32_109 dim 0 : vector<64x128xf32>, i32 -> vector<64x128xf32>
    %187 = vector.broadcast %185 : vector<64x1xf32> to vector<64x128xf32>
    %188 = arith.mulf %186, %187 : vector<64x128xf32>
    %c0_110 = arith.constant 0 : index
    %c0_111 = arith.constant 0 : index
    %c0_112 = arith.constant 0 : index
    %189 = vector.load %arg16[%c0_110, %c0_111, %c0_112] : memref<3x128x128xf32, #tpu.memory_space<vmem>>, vector<1x128x128xf32>
    %190 = vector.shape_cast %189 : vector<1x128x128xf32> to vector<128x128xf32>
    %cst_113 = arith.constant dense<0.000000e+00> : vector<64x128xf32>
    %191 = tpu.matmul %188, %190, %cst_113 {dimension_numbers = #tpu.dot_dimension_numbers<[1], [0], [0], [1], [0, 0, 1, 1], [], []>} : vector<64x128xf32>, vector<128x128xf32>, vector<64x128xf32> -> vector<64x128xf32>
    %192 = arith.addf %181, %191 : vector<64x128xf32>
    %c4_i32_114 = arith.constant 4 : i32
    %193 = vector.broadcast %c4_i32_114 : i32 to vector<64x1xi32>
    %194 = arith.cmpi sge, %11, %193 : vector<64x1xi32>
    %195 = arith.extui %194 : vector<64x1xi1> to vector<64x1xi32>
    %196 = arith.sitofp %195 : vector<64x1xi32> to vector<64x1xf32>
    %c4_i32_115 = arith.constant 4 : i32
    %197 = tpu.dynamic_rotate %178 by %c4_i32_115 dim 0 : vector<64x128xf32>, i32 -> vector<64x128xf32>
    %198 = vector.broadcast %196 : vector<64x1xf32> to vector<64x128xf32>
    %199 = arith.mulf %197, %198 : vector<64x128xf32>
    %c1_116 = arith.constant 1 : index
    %c0_117 = arith.constant 0 : index
    %c0_118 = arith.constant 0 : index
    %200 = vector.load %arg16[%c1_116, %c0_117, %c0_118] : memref<3x128x128xf32, #tpu.memory_space<vmem>>, vector<1x128x128xf32>
    %201 = vector.shape_cast %200 : vector<1x128x128xf32> to vector<128x128xf32>
    %cst_119 = arith.constant dense<0.000000e+00> : vector<64x128xf32>
    %202 = tpu.matmul %199, %201, %cst_119 {dimension_numbers = #tpu.dot_dimension_numbers<[1], [0], [0], [1], [0, 0, 1, 1], [], []>} : vector<64x128xf32>, vector<128x128xf32>, vector<64x128xf32> -> vector<64x128xf32>
    %203 = arith.addf %192, %202 : vector<64x128xf32>
    %c2_120 = arith.constant 2 : index
    %c0_121 = arith.constant 0 : index
    %c0_122 = arith.constant 0 : index
    %204 = vector.load %arg16[%c2_120, %c0_121, %c0_122] : memref<3x128x128xf32, #tpu.memory_space<vmem>>, vector<1x128x128xf32>
    %205 = vector.shape_cast %204 : vector<1x128x128xf32> to vector<128x128xf32>
    %cst_123 = arith.constant dense<0.000000e+00> : vector<64x128xf32>
    %206 = tpu.matmul %178, %205, %cst_123 {dimension_numbers = #tpu.dot_dimension_numbers<[1], [0], [0], [1], [0, 0, 1, 1], [], []>} : vector<64x128xf32>, vector<128x128xf32>, vector<64x128xf32> -> vector<64x128xf32>
    %207 = arith.addf %203, %206 : vector<64x128xf32>
    %cst_124 = arith.constant 0.000000e+00 : f32
    %208 = vector.broadcast %cst_124 : f32 to vector<64x128xf32>
    %209 = arith.maximumf %207, %208 : vector<64x128xf32>
    %c0_125 = arith.constant 0 : index
    %c0_126 = arith.constant 0 : index
    %210 = vector.load %arg19[%c0_125, %c0_126] : memref<1x128xf32, #tpu.memory_space<vmem>>, vector<1x128xf32>
    %211 = vector.shape_cast %210 : vector<1x128xf32> to vector<1x128xf32>
    %212 = vector.broadcast %211 : vector<1x128xf32> to vector<64x128xf32>
    %c0_127 = arith.constant 0 : index
    %c0_128 = arith.constant 0 : index
    %213 = vector.load %arg18[%c0_127, %c0_128] : memref<128x128xf32, #tpu.memory_space<vmem>>, vector<128x128xf32>
    %cst_129 = arith.constant dense<0.000000e+00> : vector<64x128xf32>
    %214 = tpu.matmul %147, %213, %cst_129 {dimension_numbers = #tpu.dot_dimension_numbers<[1], [0], [0], [1], [0, 0, 1, 1], [], []>} : vector<64x128xf32>, vector<128x128xf32>, vector<64x128xf32> -> vector<64x128xf32>
    %215 = arith.addf %212, %214 : vector<64x128xf32>
    %216 = arith.addf %209, %215 : vector<64x128xf32>
    %cst_130 = arith.constant 0.000000e+00 : f32
    %217 = vector.broadcast %cst_130 : f32 to vector<64x128xf32>
    %218 = arith.maximumf %216, %217 : vector<64x128xf32>
    %c0_131 = arith.constant 0 : index
    %c0_132 = arith.constant 0 : index
    %219 = vector.load %arg21[%c0_131, %c0_132] : memref<1x128xf32, #tpu.memory_space<vmem>>, vector<1x128xf32>
    %220 = vector.shape_cast %219 : vector<1x128xf32> to vector<1x128xf32>
    %221 = vector.broadcast %220 : vector<1x128xf32> to vector<64x128xf32>
    %c0_133 = arith.constant 0 : index
    %c0_134 = arith.constant 0 : index
    %222 = vector.load %arg20[%c0_133, %c0_134] : memref<128x128xf32, #tpu.memory_space<vmem>>, vector<128x128xf32>
    %cst_135 = arith.constant dense<0.000000e+00> : vector<64x128xf32>
    %223 = tpu.matmul %218, %222, %cst_135 {dimension_numbers = #tpu.dot_dimension_numbers<[1], [0], [0], [1], [0, 0, 1, 1], [], []>} : vector<64x128xf32>, vector<128x128xf32>, vector<64x128xf32> -> vector<64x128xf32>
    %224 = arith.addf %221, %223 : vector<64x128xf32>
    %225 = vector.extract_strided_slice %224 {offsets = [32, 0], sizes = [32, 128], strides = [1, 1]} : vector<64x128xf32> to vector<32x128xf32>
    %c0_136 = arith.constant 0 : index
    %c0_137 = arith.constant 0 : index
    %c0_138 = arith.constant 0 : index
    %226 = vector.load %arg22[%c0_136, %c0_137, %c0_138] : memref<1x32x128xf32, #tpu.memory_space<vmem>>, vector<1x32x128xf32>
    %227 = vector.shape_cast %226 : vector<1x32x128xf32> to vector<32x128xf32>
    %228 = vector.shape_cast %225 : vector<32x128xf32> to vector<1x32x128xf32>
    tpu.vector_store %arg22[%c0_136, %c0_137, %c0_138], %228 {strides = array<i32>} : memref<1x32x128xf32, #tpu.memory_space<vmem>>, vector<1x32x128xf32>,
    return
  }
  func.func @transform_0(%arg0: i32, %arg1: i32) -> (i32, i32, i32) {
    %c0_i32 = arith.constant 0 : i32
    %c0_i32_0 = arith.constant 0 : i32
    return %arg0, %arg1, %c0_i32 : i32, i32, i32
  }
  func.func @transform_1(%arg0: i32, %arg1: i32) -> (i32, i32, i32) {
    %c1_i32 = arith.constant 1 : i32
    %0 = arith.subi %arg1, %c1_i32 : i32
    %c0_i32 = arith.constant 0 : i32
    %1 = arith.maxsi %0, %c0_i32 : i32
    %c0_i32_0 = arith.constant 0 : i32
    %c0_i32_1 = arith.constant 0 : i32
    return %arg0, %1, %c0_i32_0 : i32, i32, i32
  }
  func.func @transform_2(%arg0: i32, %arg1: i32) -> (i32, i32, i32) {
    %c0_i32 = arith.constant 0 : i32
    %c0_i32_0 = arith.constant 0 : i32
    %c0_i32_1 = arith.constant 0 : i32
    %c0_i32_2 = arith.constant 0 : i32
    return %c0_i32, %c0_i32_0, %c0_i32_1 : i32, i32, i32
  }
  func.func @transform_3(%arg0: i32, %arg1: i32) -> (i32, i32) {
    %c0_i32 = arith.constant 0 : i32
    %c0_i32_0 = arith.constant 0 : i32
    %c0_i32_1 = arith.constant 0 : i32
    return %c0_i32, %c0_i32_0 : i32, i32
  }
  func.func @transform_4(%arg0: i32, %arg1: i32) -> (i32, i32, i32) {
    %c0_i32 = arith.constant 0 : i32
    %c0_i32_0 = arith.constant 0 : i32
    %c0_i32_1 = arith.constant 0 : i32
    %c0_i32_2 = arith.constant 0 : i32
    return %c0_i32, %c0_i32_0, %c0_i32_1 : i32, i32, i32
  }
  func.func @transform_5(%arg0: i32, %arg1: i32) -> (i32, i32) {
    %c0_i32 = arith.constant 0 : i32
    %c0_i32_0 = arith.constant 0 : i32
    %c0_i32_1 = arith.constant 0 : i32
    return %c0_i32, %c0_i32_0 : i32, i32
  }
  func.func @transform_6(%arg0: i32, %arg1: i32) -> (i32, i32) {
    %c0_i32 = arith.constant 0 : i32
    %c0_i32_0 = arith.constant 0 : i32
    %c0_i32_1 = arith.constant 0 : i32
    return %c0_i32, %c0_i32_0 : i32, i32
  }
  func.func @transform_7(%arg0: i32, %arg1: i32) -> (i32, i32) {
    %c0_i32 = arith.constant 0 : i32
    %c0_i32_0 = arith.constant 0 : i32
    %c0_i32_1 = arith.constant 0 : i32
    return %c0_i32, %c0_i32_0 : i32, i32
  }
  func.func @transform_8(%arg0: i32, %arg1: i32) -> (i32, i32, i32) {
    %c0_i32 = arith.constant 0 : i32
    %c0_i32_0 = arith.constant 0 : i32
    %c0_i32_1 = arith.constant 0 : i32
    %c0_i32_2 = arith.constant 0 : i32
    return %c0_i32, %c0_i32_0, %c0_i32_1 : i32, i32, i32
  }
  func.func @transform_9(%arg0: i32, %arg1: i32) -> (i32, i32) {
    %c0_i32 = arith.constant 0 : i32
    %c0_i32_0 = arith.constant 0 : i32
    %c0_i32_1 = arith.constant 0 : i32
    return %c0_i32, %c0_i32_0 : i32, i32
  }
  func.func @transform_10(%arg0: i32, %arg1: i32) -> (i32, i32, i32) {
    %c0_i32 = arith.constant 0 : i32
    %c0_i32_0 = arith.constant 0 : i32
    %c0_i32_1 = arith.constant 0 : i32
    %c0_i32_2 = arith.constant 0 : i32
    return %c0_i32, %c0_i32_0, %c0_i32_1 : i32, i32, i32
  }
  func.func @transform_11(%arg0: i32, %arg1: i32) -> (i32, i32) {
    %c0_i32 = arith.constant 0 : i32
    %c0_i32_0 = arith.constant 0 : i32
    %c0_i32_1 = arith.constant 0 : i32
    return %c0_i32, %c0_i32_0 : i32, i32
  }
  func.func @transform_12(%arg0: i32, %arg1: i32) -> (i32, i32, i32) {
    %c0_i32 = arith.constant 0 : i32
    %c0_i32_0 = arith.constant 0 : i32
    %c0_i32_1 = arith.constant 0 : i32
    %c0_i32_2 = arith.constant 0 : i32
    return %c0_i32, %c0_i32_0, %c0_i32_1 : i32, i32, i32
  }
  func.func @transform_13(%arg0: i32, %arg1: i32) -> (i32, i32) {
    %c0_i32 = arith.constant 0 : i32
    %c0_i32_0 = arith.constant 0 : i32
    %c0_i32_1 = arith.constant 0 : i32
    return %c0_i32, %c0_i32_0 : i32, i32
  }
  func.func @transform_14(%arg0: i32, %arg1: i32) -> (i32, i32, i32) {
    %c0_i32 = arith.constant 0 : i32
    %c0_i32_0 = arith.constant 0 : i32
    %c0_i32_1 = arith.constant 0 : i32
    %c0_i32_2 = arith.constant 0 : i32
    return %c0_i32, %c0_i32_0, %c0_i32_1 : i32, i32, i32
  }
  func.func @transform_15(%arg0: i32, %arg1: i32) -> (i32, i32) {
    %c0_i32 = arith.constant 0 : i32
    %c0_i32_0 = arith.constant 0 : i32
    %c0_i32_1 = arith.constant 0 : i32
    return %c0_i32, %c0_i32_0 : i32, i32
  }
  func.func @transform_16(%arg0: i32, %arg1: i32) -> (i32, i32) {
    %c0_i32 = arith.constant 0 : i32
    %c0_i32_0 = arith.constant 0 : i32
    %c0_i32_1 = arith.constant 0 : i32
    return %c0_i32, %c0_i32_0 : i32, i32
  }
  func.func @transform_17(%arg0: i32, %arg1: i32) -> (i32, i32) {
    %c0_i32 = arith.constant 0 : i32
    %c0_i32_0 = arith.constant 0 : i32
    %c0_i32_1 = arith.constant 0 : i32
    return %c0_i32, %c0_i32_0 : i32, i32
  }
  func.func @transform_18(%arg0: i32, %arg1: i32) -> (i32, i32) {
    %c0_i32 = arith.constant 0 : i32
    %c0_i32_0 = arith.constant 0 : i32
    %c0_i32_1 = arith.constant 0 : i32
    return %c0_i32, %c0_i32_0 : i32, i32
  }
  func.func @transform_19(%arg0: i32, %arg1: i32) -> (i32, i32) {
    %c0_i32 = arith.constant 0 : i32
    %c0_i32_0 = arith.constant 0 : i32
    %c0_i32_1 = arith.constant 0 : i32
    return %c0_i32, %c0_i32_0 : i32, i32
  }
  func.func @transform_20(%arg0: i32, %arg1: i32) -> (i32, i32, i32) {
    %c0_i32 = arith.constant 0 : i32
    %c0_i32_0 = arith.constant 0 : i32
    return %arg0, %arg1, %c0_i32 : i32, i32, i32
  }
}

</mosaic_0001>

<llo_original>
// kernel: tcn_forward.1
$region0: #{tcn_forward.1}
  #allocation0 [shape = 'u32[]', space=smem, size = 0x4, offset = 0x4, fixed_abs, tag = 'smem constant byte address 0x4 - core index']
  #allocation1 [shape = 'u32[72,128]{1,0:T(1,128)}', space=vmem, size = 0x9000, scoped, tag = 'internal scratch']
  #allocation2 [shape = 'f32[64,128]{1,0:T(8,128)}', space=vmem, size = 0x8000, scoped, tag = 'scratch operand']
  %s0 = inlined_call_operand.vmem [shape: f32[2,32,128], index: 0, kind: input, shape index: {}, may-alias: {0,1}]
  %s1 = inlined_call_operand.vmem [shape: f32[2,32,128], index: 1, kind: input, shape index: {}, may-alias: {0,1}]
  %s2 = inlined_call_operand.hbm [shape: f32[3,128,128], index: 2, kind: input, shape index: {}]
  %s3 = inlined_call_operand.vmem [shape: f32[1,128], index: 3, kind: input, shape index: {}]
  %s4 = inlined_call_operand.hbm [shape: f32[3,128,128], index: 4, kind: input, shape index: {}]
  %s5 = inlined_call_operand.vmem [shape: f32[1,128], index: 5, kind: input, shape index: {}]
  %s6 = inlined_call_operand.vmem [shape: f32[128,128], index: 6, kind: input, shape index: {}]
  %s7 = inlined_call_operand.vmem [shape: f32[1,128], index: 7, kind: input, shape index: {}]
  %s8 = inlined_call_operand.hbm [shape: f32[3,128,128], index: 8, kind: input, shape index: {}]
  %s9 = inlined_call_operand.vmem [shape: f32[1,128], index: 9, kind: input, shape index: {}]
  %s10 = inlined_call_operand.hbm [shape: f32[3,128,128], index: 10, kind: input, shape index: {}]
  %s11 = inlined_call_operand.vmem [shape: f32[1,128], index: 11, kind: input, shape index: {}]
  %s12 = inlined_call_operand.hbm [shape: f32[3,128,128], index: 12, kind: input, shape index: {}]
  %s13 = inlined_call_operand.vmem [shape: f32[1,128], index: 13, kind: input, shape index: {}]
  %s14 = inlined_call_operand.hbm [shape: f32[3,128,128], index: 14, kind: input, shape index: {}]
  %s15 = inlined_call_operand.vmem [shape: f32[1,128], index: 15, kind: input, shape index: {}]
  %s16 = inlined_call_operand.hbm [shape: f32[128,128], index: 16, kind: input, shape index: {}]
  %s17 = inlined_call_operand.vmem [shape: f32[1,128], index: 17, kind: input, shape index: {}]
  %s18 = inlined_call_operand.hbm [shape: f32[128,128], index: 18, kind: input, shape index: {}]
  %s19 = inlined_call_operand.vmem [shape: f32[1,128], index: 19, kind: input, shape index: {}]
  %s20 = inlined_call_operand.vmem [shape: f32[2,32,128], index: 20, kind: output, shape index: {}]
  %s21 = sld [smem:[#allocation0]]
  $region145: #{tcn_forward.1} parent=0
    _
  %s23 = ssub.s32 1, %s21
  %s24 = scalar_select 0, %s23, %s21
  $region1: #{tcn_forward.1} parent=0
    #allocation3 [shape = 'u8[196608]{0}', space=vmem, size = 0x30000, scoped, tag = 'input window, operand 2, single buffered']
    #allocation4 [shape = 's32[2]{0}', space=sflag, size = 0x8, scoped, tag = 'scoped memory for tcn_forward.1']
    #allocation5 [shape = 'u8[196608]{0}', space=vmem, size = 0x30000, scoped, tag = 'input window, operand 4, single buffered']
    #allocation6 [shape = 's32[1]{0}', space=sflag, size = 0x4, scoped, tag = 'scoped memory for tcn_forward.1']
    #allocation7 [shape = 'u8[196608]{0}', space=vmem, size = 0x30000, scoped, tag = 'input window, operand 8, single buffered']
    #allocation8 [shape = 'u8[196608]{0}', space=vmem, size = 0x30000, scoped, tag = 'input window, operand 10, single buffered']
    #allocation9 [shape = 's32[1]{0}', space=sflag, size = 0x4, scoped, tag = 'scoped memory for tcn_forward.1']
    #allocation10 [shape = 'u8[196608]{0}', space=vmem, size = 0x30000, scoped, tag = 'input window, operand 12, single buffered']
    #allocation11 [shape = 'u8[196608]{0}', space=vmem, size = 0x30000, scoped, tag = 'input window, operand 14, single buffered']
    #allocation12 [shape = 's32[1]{0}', space=sflag, size = 0x4, scoped, tag = 'scoped memory for tcn_forward.1']
    #allocation13 [shape = 'u8[65536]{0}', space=vmem, size = 0x10000, scoped, tag = 'input window, operand 16, single buffered']
    #allocation14 [shape = 'u8[65536]{0}', space=vmem, size = 0x10000, scoped, tag = 'input window, operand 18, single buffered']
    #allocation15 [shape = 's32[1]{0}', space=sflag, size = 0x4, scoped, tag = 'scoped memory for tcn_forward.1']
    %25 = vsyncpa [#allocation4], 0
    %26 = vsyncpa [#allocation6], 0
    %27 = vsyncpa [#allocation9], 0
    %28 = vsyncpa [#allocation12], 0
    %29 = vsyncpa [#allocation15], 0
    loop: start=0, step=1, limit=4
    $region2: #{tcn_forward.1} parent=1 // loop_pre_header
      _
    $region3: #{tcn_forward.1} parent=1 // loop_header
      %s31 = sphi 0, %s35
      %p32 = scmp.ge.s32.totalorder %s31, 4
      %s38 = sphi 0, %s50
      %s39 = sphi 0, %s46
      %s40 = sphi 0, %s38
      %s41 = sphi 0, %s39
      %s42 = sphi 0, %s40
      %s43 = sphi 0, %s41
      %s55 = sphi 0, %s57
      %s58 = sphi 0, %s55
      %s59 = sphi 0, %s58
      %s75 = sphi 0, %s59
      %s89 = sphi 0, %s91
      %s92 = sphi 0, %s89
      %s93 = sphi 0, %s92
      %s109 = sphi 0, %s93
      %s113 = sphi 0, %s113
      %s115 = sphi 0, %s113
      %s116 = sphi 0, %s115
      %s130 = sphi 0, %s116
      %s134 = sphi 0, %s134
      %s136 = sphi 0, %s134
      %s137 = sphi 0, %s136
      %s151 = sphi 0, %s137
      %s155 = sphi 0, %s155
      %s157 = sphi 0, %s155
      %s158 = sphi 0, %s157
      %s172 = sphi 0, %s158
      %s176 = sphi 0, %s176
      %s178 = sphi 0, %s176
      %s179 = sphi 0, %s178
      %s193 = sphi 0, %s179
      %s197 = sphi 0, %s197
      %s199 = sphi 0, %s197
      %s200 = sphi 0, %s199
      %s214 = sphi 0, %s200
      %s218 = sphi 0, %s218
      %s220 = sphi 0, %s218
      %s221 = sphi 0, %s220
      %s235 = sphi 0, %s221
      %s239 = sphi 0, %s239
      %s241 = sphi 0, %s239
      %s242 = sphi 0, %s241
      %s256 = sphi 0, %s242
      %s260 = sphi 0, %s260
      %s262 = sphi 0, %s260
      %s263 = sphi 0, %s262
      %s277 = sphi 0, %s263
      %s281 = sphi 0, %s281
      %s283 = sphi 0, %s281
      %s284 = sphi 0, %s283
      %s298 = sphi 0, %s284
      %s302 = sphi 0, %s302
      %s304 = sphi 0, %s302
      %s305 = sphi 0, %s304
      %s319 = sphi 0, %s305
      %s323 = sphi 0, %s323
      %s325 = sphi 0, %s323
      %s326 = sphi 0, %s325
      %s340 = sphi 0, %s326
      %s344 = sphi 0, %s344
      %s346 = sphi 0, %s344
      %s347 = sphi 0, %s346
      %s361 = sphi 0, %s347
      %s365 = sphi 0, %s365
      %s367 = sphi 0, %s365
      %s368 = sphi 0, %s367
      %s382 = sphi 0, %s368
      %s386 = sphi 0, %s386
      %s388 = sphi 0, %s386
      %s389 = sphi 0, %s388
      %s403 = sphi 0, %s389
      %s407 = sphi 0, %s407
      %s409 = sphi 0, %s407
      %s410 = sphi 0, %s409
      %s424 = sphi 0, %s410
      %s428 = sphi 0, %s428
      %s430 = sphi 0, %s428
      %s431 = sphi 0, %s430
      %s445 = sphi 0, %s431
      %s449 = sphi 0, %s449
      %s451 = sphi 0, %s449
      %s452 = sphi 0, %s451
      %s466 = sphi 0, %s452
      %s470 = sphi 0, %s470
      %s472 = sphi 0, %s470
      %s473 = sphi 0, %s472
      %s487 = sphi 0, %s473
      %s495 = sphi 0, %s497
      %s498 = sphi 0, %s495
      %s499 = sphi 0, %s498
      %s515 = sphi 0, %s499
    $region4: #{tcn_forward.1} parent=1 // loop_header_branch
      %34 = sbr.rel (%p32) target = $region8
    $region5: #{tcn_forward.1} parent=1 // loop_body
      %s36 = ssub.s32 %s31, 1
      %s37 = ssub.s32 %s31, 2
      %s44 = sadd.s32 1, %s39
      %p45 = scmp.ge.s32.totalorder %s44, 1
      %s46 = scalar_select %p45, 0, %s44
      %s47 = sadd.s32 1, %s38
      %s48 = scalar_select %p45, %s47, %s38
      %p49 = scmp.ge.s32.totalorder %s48, 2
      %s50 = scalar_select %p49, 0, %s48
      %s51 = ssub.s32 %s38, %s50
      %s52 = ssub.s32 %s39, %s46
      %s53 = sor.u32 %s51, %s52
      %p54 = scmp.eq.s32.totalorder %s53, 0
      %s56 = sadd.s32 %s55, 1
      %s57 = scalar_select %p54, %s55, %s56
      %p60 = pneg %p54
      %p61 = scmp.eq.s32.totalorder %s31, 1
      %p62 = por %p60, %p61
      %p63 = scmp.ne.s32.totalorder %s55, %s58
      %p64 = scmp.eq.s32.totalorder %s31, 0
      %p65 = por %p63, %p64
      %p66 = scmp.ne.s32.totalorder %s55, %s58
      %p67 = scmp.eq.s32.totalorder %s36, 1
      %p68 = por %p66, %p67
      %p69 = scmp.ne.s32.totalorder %s58, %s59
      %p70 = scmp.eq.s32.totalorder %s36, 0
      %p71 = por %p69, %p70
      %p72 = scmp.ne.s32.totalorder %s58, %s59
      %p73 = scmp.eq.s32.totalorder %s37, 1
      %p74 = por %p72, %p73
      %p76 = scmp.ne.s32.totalorder %s59, %s75
      %p77 = scmp.eq.s32.totalorder %s37, 0
      %p78 = por %p76, %p77
      %s79 = ssub.s32 %s39, 1
      %p80 = scmp.gt.s32.totalorder %s79, 0
      %s81 = scalar_select %p80, %s79, 0
      %s82 = ssub.s32 %s46, 1
      %p83 = scmp.gt.s32.totalorder %s82, 0
      %s84 = scalar_select %p83, %s82, 0
      %s85 = ssub.s32 %s38, %s50
      %s86 = ssub.s32 %s81, %s84
      %s87 = sor.u32 %s85, %s86
      %p88 = scmp.eq.s32.totalorder %s87, 0
      %s90 = sadd.s32 %s89, 1
      %s91 = scalar_select %p88, %s89, %s90
      %p94 = pneg %p88
      %p95 = scmp.eq.s32.totalorder %s31, 1
      %p96 = por %p94, %p95
      %p97 = scmp.ne.s32.totalorder %s89, %s92
      %p98 = scmp.eq.s32.totalorder %s31, 0
      %p99 = por %p97, %p98
      %p100 = scmp.ne.s32.totalorder %s89, %s92
      %p101 = scmp.eq.s32.totalorder %s36, 1
      %p102 = por %p100, %p101
      %p103 = scmp.ne.s32.totalorder %s92, %s93
      %p104 = scmp.eq.s32.totalorder %s36, 0
      %p105 = por %p103, %p104
      %p106 = scmp.ne.s32.totalorder %s92, %s93
      %p107 = scmp.eq.s32.totalorder %s37, 1
      %p108 = por %p106, %p107
      %p110 = scmp.ne.s32.totalorder %s93, %s109
      %p111 = scmp.eq.s32.totalorder %s37, 0
      %p112 = por %p110, %p111
      %s114 = sadd.s32 %s113, 1
      %p117 = scmp.eq.s32.totalorder %s31, 1
      %p118 = scmp.ne.s32.totalorder %s113, %s115
      %p119 = scmp.eq.s32.totalorder %s31, 0
      %p120 = por %p118, %p119
      %p121 = scmp.ne.s32.totalorder %s113, %s115
      %p122 = scmp.eq.s32.totalorder %s36, 1
      %p123 = por %p121, %p122
      %p124 = scmp.ne.s32.totalorder %s115, %s116
      %p125 = scmp.eq.s32.totalorder %s36, 0
      %p126 = por %p124, %p125
      %p127 = scmp.ne.s32.totalorder %s115, %s116
      %p128 = scmp.eq.s32.totalorder %s37, 1
      %p129 = por %p127, %p128
      %p131 = scmp.ne.s32.totalorder %s116, %s130
      %p132 = scmp.eq.s32.totalorder %s37, 0
      %p133 = por %p131, %p132
      %s135 = sadd.s32 %s134, 1
      %p138 = scmp.eq.s32.totalorder %s31, 1
      %p139 = scmp.ne.s32.totalorder %s134, %s136
      %p140 = scmp.eq.s32.totalorder %s31, 0
      %p141 = por %p139, %p140
      %p142 = scmp.ne.s32.totalorder %s134, %s136
      %p143 = scmp.eq.s32.totalorder %s36, 1
      %p144 = por %p142, %p143
      %p145 = scmp.ne.s32.totalorder %s136, %s137
      %p146 = scmp.eq.s32.totalorder %s36, 0
      %p147 = por %p145, %p146
      %p148 = scmp.ne.s32.totalorder %s136, %s137
      %p149 = scmp.eq.s32.totalorder %s37, 1
      %p150 = por %p148, %p149
      %p152 = scmp.ne.s32.totalorder %s137, %s151
      %p153 = scmp.eq.s32.totalorder %s37, 0
      %p154 = por %p152, %p153
      %s156 = sadd.s32 %s155, 1
      %p159 = scmp.eq.s32.totalorder %s31, 1
      %p160 = scmp.ne.s32.totalorder %s155, %s157
      %p161 = scmp.eq.s32.totalorder %s31, 0
      %p162 = por %p160, %p161
      %p163 = scmp.ne.s32.totalorder %s155, %s157
      %p164 = scmp.eq.s32.totalorder %s36, 1
      %p165 = por %p163, %p164
      %p166 = scmp.ne.s32.totalorder %s157, %s158
      %p167 = scmp.eq.s32.totalorder %s36, 0
      %p168 = por %p166, %p167
      %p169 = scmp.ne.s32.totalorder %s157, %s158
      %p170 = scmp.eq.s32.totalorder %s37, 1
      %p171 = por %p169, %p170
      %p173 = scmp.ne.s32.totalorder %s158, %s172
      %p174 = scmp.eq.s32.totalorder %s37, 0
      %p175 = por %p173, %p174
      %s177 = sadd.s32 %s176, 1
      %p180 = scmp.eq.s32.totalorder %s31, 1
      %p181 = scmp.ne.s32.totalorder %s176, %s178
      %p182 = scmp.eq.s32.totalorder %s31, 0
      %p183 = por %p181, %p182
      %p184 = scmp.ne.s32.totalorder %s176, %s178
      %p185 = scmp.eq.s32.totalorder %s36, 1
      %p186 = por %p184, %p185
      %p187 = scmp.ne.s32.totalorder %s178, %s179
      %p188 = scmp.eq.s32.totalorder %s36, 0
      %p189 = por %p187, %p188
      %p190 = scmp.ne.s32.totalorder %s178, %s179
      %p191 = scmp.eq.s32.totalorder %s37, 1
      %p192 = por %p190, %p191
      %p194 = scmp.ne.s32.totalorder %s179, %s193
      %p195 = scmp.eq.s32.totalorder %s37, 0
      %p196 = por %p194, %p195
      %s198 = sadd.s32 %s197, 1
      %p201 = scmp.eq.s32.totalorder %s31, 1
      %p202 = scmp.ne.s32.totalorder %s197, %s199
      %p203 = scmp.eq.s32.totalorder %s31, 0
      %p204 = por %p202, %p203
      %p205 = scmp.ne.s32.totalorder %s197, %s199
      %p206 = scmp.eq.s32.totalorder %s36, 1
      %p207 = por %p205, %p206
      %p208 = scmp.ne.s32.totalorder %s199, %s200
      %p209 = scmp.eq.s32.totalorder %s36, 0
      %p210 = por %p208, %p209
      %p211 = scmp.ne.s32.totalorder %s199, %s200
      %p212 = scmp.eq.s32.totalorder %s37, 1
      %p213 = por %p211, %p212
      %p215 = scmp.ne.s32.totalorder %s200, %s214
      %p216 = scmp.eq.s32.totalorder %s37, 0
      %p217 = por %p215, %p216
      %s219 = sadd.s32 %s218, 1
      %p222 = scmp.eq.s32.totalorder %s31, 1
      %p223 = scmp.ne.s32.totalorder %s218, %s220
      %p224 = scmp.eq.s32.totalorder %s31, 0
      %p225 = por %p223, %p224
      %p226 = scmp.ne.s32.totalorder %s218, %s220
      %p227 = scmp.eq.s32.totalorder %s36, 1
      %p228 = por %p226, %p227
      %p229 = scmp.ne.s32.totalorder %s220, %s221
      %p230 = scmp.eq.s32.totalorder %s36, 0
      %p231 = por %p229, %p230
      %p232 = scmp.ne.s32.totalorder %s220, %s221
      %p233 = scmp.eq.s32.totalorder %s37, 1
      %p234 = por %p232, %p233
      %p236 = scmp.ne.s32.totalorder %s221, %s235
      %p237 = scmp.eq.s32.totalorder %s37, 0
      %p238 = por %p236, %p237
      %s240 = sadd.s32 %s239, 1
      %p243 = scmp.eq.s32.totalorder %s31, 1
      %p244 = scmp.ne.s32.totalorder %s239, %s241
      %p245 = scmp.eq.s32.totalorder %s31, 0
      %p246 = por %p244, %p245
      %p247 = scmp.ne.s32.totalorder %s239, %s241
      %p248 = scmp.eq.s32.totalorder %s36, 1
      %p249 = por %p247, %p248
      %p250 = scmp.ne.s32.totalorder %s241, %s242
      %p251 = scmp.eq.s32.totalorder %s36, 0
      %p252 = por %p250, %p251
      %p253 = scmp.ne.s32.totalorder %s241, %s242
      %p254 = scmp.eq.s32.totalorder %s37, 1
      %p255 = por %p253, %p254
      %p257 = scmp.ne.s32.totalorder %s242, %s256
      %p258 = scmp.eq.s32.totalorder %s37, 0
      %p259 = por %p257, %p258
      %s261 = sadd.s32 %s260, 1
      %p264 = scmp.eq.s32.totalorder %s31, 1
      %p265 = scmp.ne.s32.totalorder %s260, %s262
      %p266 = scmp.eq.s32.totalorder %s31, 0
      %p267 = por %p265, %p266
      %p268 = scmp.ne.s32.totalorder %s260, %s262
      %p269 = scmp.eq.s32.totalorder %s36, 1
      %p270 = por %p268, %p269
      %p271 = scmp.ne.s32.totalorder %s262, %s263
      %p272 = scmp.eq.s32.totalorder %s36, 0
      %p273 = por %p271, %p272
      %p274 = scmp.ne.s32.totalorder %s262, %s263
      %p275 = scmp.eq.s32.totalorder %s37, 1
      %p276 = por %p274, %p275
      %p278 = scmp.ne.s32.totalorder %s263, %s277
      %p279 = scmp.eq.s32.totalorder %s37, 0
      %p280 = por %p278, %p279
      %s282 = sadd.s32 %s281, 1
      %p285 = scmp.eq.s32.totalorder %s31, 1
      %p286 = scmp.ne.s32.totalorder %s281, %s283
      %p287 = scmp.eq.s32.totalorder %s31, 0
      %p288 = por %p286, %p287
      %p289 = scmp.ne.s32.totalorder %s281, %s283
      %p290 = scmp.eq.s32.totalorder %s36, 1
      %p291 = por %p289, %p290
      %p292 = scmp.ne.s32.totalorder %s283, %s284
      %p293 = scmp.eq.s32.totalorder %s36, 0
      %p294 = por %p292, %p293
      %p295 = scmp.ne.s32.totalorder %s283, %s284
      %p296 = scmp.eq.s32.totalorder %s37, 1
      %p297 = por %p295, %p296
      %p299 = scmp.ne.s32.totalorder %s284, %s298
      %p300 = scmp.eq.s32.totalorder %s37, 0
      %p301 = por %p299, %p300
      %s303 = sadd.s32 %s302, 1
      %p306 = scmp.eq.s32.totalorder %s31, 1
      %p307 = scmp.ne.s32.totalorder %s302, %s304
      %p308 = scmp.eq.s32.totalorder %s31, 0
      %p309 = por %p307, %p308
      %p310 = scmp.ne.s32.totalorder %s302, %s304
      %p311 = scmp.eq.s32.totalorder %s36, 1
      %p312 = por %p310, %p311
      %p313 = scmp.ne.s32.totalorder %s304, %s305
      %p314 = scmp.eq.s32.totalorder %s36, 0
      %p315 = por %p313, %p314
      %p316 = scmp.ne.s32.totalorder %s304, %s305
      %p317 = scmp.eq.s32.totalorder %s37, 1
      %p318 = por %p316, %p317
      %p320 = scmp.ne.s32.totalorder %s305, %s319
      %p321 = scmp.eq.s32.totalorder %s37, 0
      %p322 = por %p320, %p321
      %s324 = sadd.s32 %s323, 1
      %p327 = scmp.eq.s32.totalorder %s31, 1
      %p328 = scmp.ne.s32.totalorder %s323, %s325
      %p329 = scmp.eq.s32.totalorder %s31, 0
      %p330 = por %p328, %p329
      %p331 = scmp.ne.s32.totalorder %s323, %s325
      %p332 = scmp.eq.s32.totalorder %s36, 1
      %p333 = por %p331, %p332
      %p334 = scmp.ne.s32.totalorder %s325, %s326
      %p335 = scmp.eq.s32.totalorder %s36, 0
      %p336 = por %p334, %p335
      %p337 = scmp.ne.s32.totalorder %s325, %s326
      %p338 = scmp.eq.s32.totalorder %s37, 1
      %p339 = por %p337, %p338
      %p341 = scmp.ne.s32.totalorder %s326, %s340
      %p342 = scmp.eq.s32.totalorder %s37, 0
      %p343 = por %p341, %p342
      %s345 = sadd.s32 %s344, 1
      %p348 = scmp.eq.s32.totalorder %s31, 1
      %p349 = scmp.ne.s32.totalorder %s344, %s346
      %p350 = scmp.eq.s32.totalorder %s31, 0
      %p351 = por %p349, %p350
      %p352 = scmp.ne.s32.totalorder %s344, %s346
      %p353 = scmp.eq.s32.totalorder %s36, 1
      %p354 = por %p352, %p353
      %p355 = scmp.ne.s32.totalorder %s346, %s347
      %p356 = scmp.eq.s32.totalorder %s36, 0
      %p357 = por %p355, %p356
      %p358 = scmp.ne.s32.totalorder %s346, %s347
      %p359 = scmp.eq.s32.totalorder %s37, 1
      %p360 = por %p358, %p359
      %p362 = scmp.ne.s32.totalorder %s347, %s361
      %p363 = scmp.eq.s32.totalorder %s37, 0
      %p364 = por %p362, %p363
      %s366 = sadd.s32 %s365, 1
      %p369 = scmp.eq.s32.totalorder %s31, 1
      %p370 = scmp.ne.s32.totalorder %s365, %s367
      %p371 = scmp.eq.s32.totalorder %s31, 0
      %p372 = por %p370, %p371
      %p373 = scmp.ne.s32.totalorder %s365, %s367
      %p374 = scmp.eq.s32.totalorder %s36, 1
      %p375 = por %p373, %p374
      %p376 = scmp.ne.s32.totalorder %s367, %s368
      %p377 = scmp.eq.s32.totalorder %s36, 0
      %p378 = por %p376, %p377
      %p379 = scmp.ne.s32.totalorder %s367, %s368
      %p380 = scmp.eq.s32.totalorder %s37, 1
      %p381 = por %p379, %p380
      %p383 = scmp.ne.s32.totalorder %s368, %s382
      %p384 = scmp.eq.s32.totalorder %s37, 0
      %p385 = por %p383, %p384
      %s387 = sadd.s32 %s386, 1
      %p390 = scmp.eq.s32.totalorder %s31, 1
      %p391 = scmp.ne.s32.totalorder %s386, %s388
      %p392 = scmp.eq.s32.totalorder %s31, 0
      %p393 = por %p391, %p392
      %p394 = scmp.ne.s32.totalorder %s386, %s388
      %p395 = scmp.eq.s32.totalorder %s36, 1
      %p396 = por %p394, %p395
      %p397 = scmp.ne.s32.totalorder %s388, %s389
      %p398 = scmp.eq.s32.totalorder %s36, 0
      %p399 = por %p397, %p398
      %p400 = scmp.ne.s32.totalorder %s388, %s389
      %p401 = scmp.eq.s32.totalorder %s37, 1
      %p402 = por %p400, %p401
      %p404 = scmp.ne.s32.totalorder %s389, %s403
      %p405 = scmp.eq.s32.totalorder %s37, 0
      %p406 = por %p404, %p405
      %s408 = sadd.s32 %s407, 1
      %p411 = scmp.eq.s32.totalorder %s31, 1
      %p412 = scmp.ne.s32.totalorder %s407, %s409
      %p413 = scmp.eq.s32.totalorder %s31, 0
      %p414 = por %p412, %p413
      %p415 = scmp.ne.s32.totalorder %s407, %s409
      %p416 = scmp.eq.s32.totalorder %s36, 1
      %p417 = por %p415, %p416
      %p418 = scmp.ne.s32.totalorder %s409, %s410
      %p419 = scmp.eq.s32.totalorder %s36, 0
      %p420 = por %p418, %p419
      %p421 = scmp.ne.s32.totalorder %s409, %s410
      %p422 = scmp.eq.s32.totalorder %s37, 1
      %p423 = por %p421, %p422
      %p425 = scmp.ne.s32.totalorder %s410, %s424
      %p426 = scmp.eq.s32.totalorder %s37, 0
      %p427 = por %p425, %p426
      %s429 = sadd.s32 %s428, 1
      %p432 = scmp.eq.s32.totalorder %s31, 1
      %p433 = scmp.ne.s32.totalorder %s428, %s430
      %p434 = scmp.eq.s32.totalorder %s31, 0
      %p435 = por %p433, %p434
      %p436 = scmp.ne.s32.totalorder %s428, %s430
      %p437 = scmp.eq.s32.totalorder %s36, 1
      %p438 = por %p436, %p437
      %p439 = scmp.ne.s32.totalorder %s430, %s431
      %p440 = scmp.eq.s32.totalorder %s36, 0
      %p441 = por %p439, %p440
      %p442 = scmp.ne.s32.totalorder %s430, %s431
      %p443 = scmp.eq.s32.totalorder %s37, 1
      %p444 = por %p442, %p443
      %p446 = scmp.ne.s32.totalorder %s431, %s445
      %p447 = scmp.eq.s32.totalorder %s37, 0
      %p448 = por %p446, %p447
      %s450 = sadd.s32 %s449, 1
      %p453 = scmp.eq.s32.totalorder %s31, 1
      %p454 = scmp.ne.s32.totalorder %s449, %s451
      %p455 = scmp.eq.s32.totalorder %s31, 0
      %p456 = por %p454, %p455
      %p457 = scmp.ne.s32.totalorder %s449, %s451
      %p458 = scmp.eq.s32.totalorder %s36, 1
      %p459 = por %p457, %p458
      %p460 = scmp.ne.s32.totalorder %s451, %s452
      %p461 = scmp.eq.s32.totalorder %s36, 0
      %p462 = por %p460, %p461
      %p463 = scmp.ne.s32.totalorder %s451, %s452
      %p464 = scmp.eq.s32.totalorder %s37, 1
      %p465 = por %p463, %p464
      %p467 = scmp.ne.s32.totalorder %s452, %s466
      %p468 = scmp.eq.s32.totalorder %s37, 0
      %p469 = por %p467, %p468
      %s471 = sadd.s32 %s470, 1
      %p474 = scmp.eq.s32.totalorder %s31, 1
      %p475 = scmp.ne.s32.totalorder %s470, %s472
      %p476 = scmp.eq.s32.totalorder %s31, 0
      %p477 = por %p475, %p476
      %p478 = scmp.ne.s32.totalorder %s470, %s472
      %p479 = scmp.eq.s32.totalorder %s36, 1
      %p480 = por %p478, %p479
      %p481 = scmp.ne.s32.totalorder %s472, %s473
      %p482 = scmp.eq.s32.totalorder %s36, 0
      %p483 = por %p481, %p482
      %p484 = scmp.ne.s32.totalorder %s472, %s473
      %p485 = scmp.eq.s32.totalorder %s37, 1
      %p486 = por %p484, %p485
      %p488 = scmp.ne.s32.totalorder %s473, %s487
      %p489 = scmp.eq.s32.totalorder %s37, 0
      %p490 = por %p488, %p489
      %s491 = ssub.s32 %s38, %s50
      %s492 = ssub.s32 %s39, %s46
      %s493 = sor.u32 %s491, %s492
      %p494 = scmp.eq.s32.totalorder %s493, 0
      %s496 = sadd.s32 %s495, 1
      %s497 = scalar_select %p494, %s495, %s496
      %p500 = pneg %p494
      %p501 = scmp.eq.s32.totalorder %s31, 1
      %p502 = por %p500, %p501
      %p503 = scmp.ne.s32.totalorder %s495, %s498
      %p504 = scmp.eq.s32.totalorder %s31, 0
      %p505 = por %p503, %p504
      %p506 = scmp.ne.s32.totalorder %s495, %s498
      %p507 = scmp.eq.s32.totalorder %s36, 1
      %p508 = por %p506, %p507
      %p509 = scmp.ne.s32.totalorder %s498, %s499
      %p510 = scmp.eq.s32.totalorder %s36, 0
      %p511 = por %p509, %p510
      %p512 = scmp.ne.s32.totalorder %s498, %s499
      %p513 = scmp.eq.s32.totalorder %s37, 1
      %p514 = por %p512, %p513
      %p516 = scmp.ne.s32.totalorder %s499, %s515
      %p517 = scmp.eq.s32.totalorder %s37, 0
      %p518 = por %p516, %p517
      %p519 = scmp.le.s32.totalorder 1, %s31
      %p520 = scmp.lt.s32.totalorder %s31, 3
      %p521 = pnand %p519, %p520
      %p522 = pneg %p521
      // Predicated region
      $region9: #{tcn_forward.1} parent=5 // pred_check
        _
      $region10: #{tcn_forward.1} parent=5 // pred_check_branch
        %524 = sbr.rel (%p521) target = $region12
      $region11: #{tcn_forward.1} parent=5 // pred_region
        %s525 = ssub.s32 %s31, 1
        // Predicated region
        $region13: #{tcn_forward.1} parent=11 // pred_check
          %p526 = pneg %p126
        $region14: #{tcn_forward.1} parent=11 // pred_check_branch
          %528 = sbr.rel (%p526) target = $region16
        $region15: #{tcn_forward.1} parent=11 // pred_region
          %530 = vsyncadd [#allocation4], 0
          %s531 = sshll.u32 %s2, 4
          %s532 = int_to_ptr.hbm [resolvable:$true] %s531
          %s533 = sshll.u32 [#allocation3], 4
          %s534 = int_to_ptr.vmem [resolvable:$true] %s533
          %539 = dma.hbm_to_vmem [thread:$0]  %s532, 6144, %s534, [#allocation4], 128, 128, 8
        $region16: #{tcn_forward.1} parent=11 // pred_fallthru
          _
        // Predicated region
        $region17: #{tcn_forward.1} parent=11 // pred_check
          %p540 = pneg %p147
        $region18: #{tcn_forward.1} parent=11 // pred_check_branch
          %542 = sbr.rel (%p540) target = $region20
        $region19: #{tcn_forward.1} parent=11 // pred_region
          _
        $region20: #{tcn_forward.1} parent=11 // pred_fallthru
          _
        // Predicated region
        $region21: #{tcn_forward.1} parent=11 // pred_check
          %p543 = pneg %p168
        $region22: #{tcn_forward.1} parent=11 // pred_check_branch
          %545 = sbr.rel (%p543) target = $region24
        $region23: #{tcn_forward.1} parent=11 // pred_region
          %547 = vsyncadd [#allocation6], 0
          %s548 = sshll.u32 %s4, 4
          %s549 = int_to_ptr.hbm [resolvable:$true] %s548
          %s550 = sshll.u32 [#allocation5], 4
          %s551 = int_to_ptr.vmem [resolvable:$true] %s550
          %556 = dma.hbm_to_vmem [thread:$0]  %s549, 6144, %s551, [#allocation6], 128, 128, 8
        $region24: #{tcn_forward.1} parent=11 // pred_fallthru
          _
        // Predicated region
        $region25: #{tcn_forward.1} parent=11 // pred_check
          %p557 = pneg %p189
        $region26: #{tcn_forward.1} parent=11 // pred_check_branch
          %559 = sbr.rel (%p557) target = $region28
        $region27: #{tcn_forward.1} parent=11 // pred_region
          _
        $region28: #{tcn_forward.1} parent=11 // pred_fallthru
          _
        // Predicated region
        $region29: #{tcn_forward.1} parent=11 // pred_check
          %p560 = pneg %p210
        $region30: #{tcn_forward.1} parent=11 // pred_check_branch
          %562 = sbr.rel (%p560) target = $region32
        $region31: #{tcn_forward.1} parent=11 // pred_region
          _
        $region32: #{tcn_forward.1} parent=11 // pred_fallthru
          _
        // Predicated region
        $region33: #{tcn_forward.1} parent=11 // pred_check
          %p563 = pneg %p231
        $region34: #{tcn_forward.1} parent=11 // pred_check_branch
          %565 = sbr.rel (%p563) target = $region36
        $region35: #{tcn_forward.1} parent=11 // pred_region
          _
        $region36: #{tcn_forward.1} parent=11 // pred_fallthru
          _
        // Predicated region
        $region37: #{tcn_forward.1} parent=11 // pred_check
          %p566 = pneg %p252
        $region38: #{tcn_forward.1} parent=11 // pred_check_branch
          %568 = sbr.rel (%p566) target = $region40
        $region39: #{tcn_forward.1} parent=11 // pred_region
          %570 = vsyncadd [#allocation6], 0
          %s571 = sshll.u32 %s8, 4
          %s572 = int_to_ptr.hbm [resolvable:$true] %s571
          %s573 = sshll.u32 [#allocation7], 4
          %s574 = int_to_ptr.vmem [resolvable:$true] %s573
          %579 = dma.hbm_to_vmem [thread:$0]  %s572, 6144, %s574, [#allocation6], 128, 128, 8
        $region40: #{tcn_forward.1} parent=11 // pred_fallthru
          _
        // Predicated region
        $region41: #{tcn_forward.1} parent=11 // pred_check
          %p580 = pneg %p273
        $region42: #{tcn_forward.1} parent=11 // pred_check_branch
          %582 = sbr.rel (%p580) target = $region44
        $region43: #{tcn_forward.1} parent=11 // pred_region
          _
        $region44: #{tcn_forward.1} parent=11 // pred_fallthru
          _
        // Predicated region
        $region45: #{tcn_forward.1} parent=11 // pred_check
          %p583 = pneg %p294
        $region46: #{tcn_forward.1} parent=11 // pred_check_branch
          %585 = sbr.rel (%p583) target = $region48
        $region47: #{tcn_forward.1} parent=11 // pred_region
          %587 = vsyncadd [#allocation9], 0
          %s588 = sshll.u32 %s10, 4
          %s589 = int_to_ptr.hbm [resolvable:$true] %s588
          %s590 = sshll.u32 [#allocation8], 4
          %s591 = int_to_ptr.vmem [resolvable:$true] %s590
          %596 = dma.hbm_to_vmem [thread:$0]  %s589, 6144, %s591, [#allocation9], 128, 128, 8
        $region48: #{tcn_forward.1} parent=11 // pred_fallthru
          _
        // Predicated region
        $region49: #{tcn_forward.1} parent=11 // pred_check
          %p597 = pneg %p315
        $region50: #{tcn_forward.1} parent=11 // pred_check_branch
          %599 = sbr.rel (%p597) target = $region52
        $region51: #{tcn_forward.1} parent=11 // pred_region
          _
        $region52: #{tcn_forward.1} parent=11 // pred_fallthru
          _
        // Predicated region
        $region53: #{tcn_forward.1} parent=11 // pred_check
          %p600 = pneg %p336
        $region54: #{tcn_forward.1} parent=11 // pred_check_branch
          %602 = sbr.rel (%p600) target = $region56
        $region55: #{tcn_forward.1} parent=11 // pred_region
          %604 = vsyncadd [#allocation9], 0
          %s605 = sshll.u32 %s12, 4
          %s606 = int_to_ptr.hbm [resolvable:$true] %s605
          %s607 = sshll.u32 [#allocation10], 4
          %s608 = int_to_ptr.vmem [resolvable:$true] %s607
          %613 = dma.hbm_to_vmem [thread:$0]  %s606, 6144, %s608, [#allocation9], 128, 128, 8
        $region56: #{tcn_forward.1} parent=11 // pred_fallthru
          _
        // Predicated region
        $region57: #{tcn_forward.1} parent=11 // pred_check
          %p614 = pneg %p357
        $region58: #{tcn_forward.1} parent=11 // pred_check_branch
          %616 = sbr.rel (%p614) target = $region60
        $region59: #{tcn_forward.1} parent=11 // pred_region
          _
        $region60: #{tcn_forward.1} parent=11 // pred_fallthru
          _
        // Predicated region
        $region61: #{tcn_forward.1} parent=11 // pred_check
          %p617 = pneg %p378
        $region62: #{tcn_forward.1} parent=11 // pred_check_branch
          %619 = sbr.rel (%p617) target = $region64
        $region63: #{tcn_forward.1} parent=11 // pred_region
          %621 = vsyncadd [#allocation12], 0
          %s622 = sshll.u32 %s14, 4
          %s623 = int_to_ptr.hbm [resolvable:$true] %s622
          %s624 = sshll.u32 [#allocation11], 4
          %s625 = int_to_ptr.vmem [resolvable:$true] %s624
          %630 = dma.hbm_to_vmem [thread:$0]  %s623, 6144, %s625, [#allocation12], 128, 128, 8
        $region64: #{tcn_forward.1} parent=11 // pred_fallthru
          _
        // Predicated region
        $region65: #{tcn_forward.1} parent=11 // pred_check
          %p631 = pneg %p399
        $region66: #{tcn_forward.1} parent=11 // pred_check_branch
          %633 = sbr.rel (%p631) target = $region68
        $region67: #{tcn_forward.1} parent=11 // pred_region
          _
        $region68: #{tcn_forward.1} parent=11 // pred_fallthru
          _
        // Predicated region
        $region69: #{tcn_forward.1} parent=11 // pred_check
          %p634 = pneg %p420
        $region70: #{tcn_forward.1} parent=11 // pred_check_branch
          %636 = sbr.rel (%p634) target = $region72
        $region71: #{tcn_forward.1} parent=11 // pred_region
          %638 = vsyncadd [#allocation12], 0
          %s639 = sshll.u32 %s16, 4
          %s640 = int_to_ptr.hbm [resolvable:$true] %s639
          %s641 = sshll.u32 [#allocation13], 4
          %s642 = int_to_ptr.vmem [resolvable:$true] %s641
          %647 = dma.hbm_to_vmem [thread:$0]  %s640, 2048, %s642, [#allocation12], 128, 128, 8
        $region72: #{tcn_forward.1} parent=11 // pred_fallthru
          _
        // Predicated region
        $region73: #{tcn_forward.1} parent=11 // pred_check
          %p648 = pneg %p441
        $region74: #{tcn_forward.1} parent=11 // pred_check_branch
          %650 = sbr.rel (%p648) target = $region76
        $region75: #{tcn_forward.1} parent=11 // pred_region
          _
        $region76: #{tcn_forward.1} parent=11 // pred_fallthru
          _
        // Predicated region
        $region77: #{tcn_forward.1} parent=11 // pred_check
          %p651 = pneg %p462
        $region78: #{tcn_forward.1} parent=11 // pred_check_branch
          %653 = sbr.rel (%p651) target = $region80
        $region79: #{tcn_forward.1} parent=11 // pred_region
          %655 = vsyncadd [#allocation15], 0
          %s656 = sshll.u32 %s18, 4
          %s657 = int_to_ptr.hbm [resolvable:$true] %s656
          %s658 = sshll.u32 [#allocation14], 4
          %s659 = int_to_ptr.vmem [resolvable:$true] %s658
          %664 = dma.hbm_to_vmem [thread:$0]  %s657, 2048, %s659, [#allocation15], 128, 128, 8
        $region80: #{tcn_forward.1} parent=11 // pred_fallthru
          _
        // Predicated region
        $region81: #{tcn_forward.1} parent=11 // pred_check
          %p665 = pneg %p483
        $region82: #{tcn_forward.1} parent=11 // pred_check_branch
          %667 = sbr.rel (%p665) target = $region84
        $region83: #{tcn_forward.1} parent=11 // pred_region
          _
        $region84: #{tcn_forward.1} parent=11 // pred_fallthru
          _
      $region12: #{tcn_forward.1} parent=5 // pred_fallthru
        _
      %p668 = scmp.lt.s32.totalorder %s31, 2
      // Predicated region
      $region85: #{tcn_forward.1} parent=5 // pred_check
        %p669 = pneg %p668
      $region86: #{tcn_forward.1} parent=5 // pred_check_branch
        %671 = sbr.rel (%p669) target = $region88
      $region87: #{tcn_forward.1} parent=5 // pred_region
        // Predicated region
        $region89: #{tcn_forward.1} parent=87 // pred_check
          %p672 = pneg %p65
        $region90: #{tcn_forward.1} parent=87 // pred_check_branch
          %674 = sbr.rel (%p672) target = $region92
        $region91: #{tcn_forward.1} parent=87 // pred_region
          %s675 = smul.u32 4, %s39
          %p676 = scmp.lt.s32.totalorder %s38, 1
          %s677 = scalar_select %p676, %s38, 1
          %p678 = scmp.lt.s32.totalorder %s675, 3
          %s679 = scalar_select %p678, %s675, 3
          %s680 = smul.addr %s677, 4
          %s681 = sadd.s32 %s679, %s680
          %s682 = smul.addr %s681, 8
          %s683 = scalar_lea.vmem %s0, %s682
          %s684 = smul.u32 4, %s39
        $region92: #{tcn_forward.1} parent=87 // pred_fallthru
          _
        // Predicated region
        $region93: #{tcn_forward.1} parent=87 // pred_check
          %p685 = pneg %p99
        $region94: #{tcn_forward.1} parent=87 // pred_check_branch
          %687 = sbr.rel (%p685) target = $region96
        $region95: #{tcn_forward.1} parent=87 // pred_region
          %s688 = ssub.s32 %s39, 1
          %p689 = scmp.gt.s32.totalorder %s688, 0
          %s690 = scalar_select %p689, %s688, 0
          %s691 = smul.u32 4, %s690
          %p692 = scmp.lt.s32.totalorder %s38, 1
          %s693 = scalar_select %p692, %s38, 1
          %p694 = scmp.lt.s32.totalorder %s691, 3
          %s695 = scalar_select %p694, %s691, 3
          %s696 = smul.addr %s693, 4
          %s697 = sadd.s32 %s695, %s696
          %s698 = smul.addr %s697, 8
          %s699 = scalar_lea.vmem %s1, %s698
          %s700 = ssub.s32 %s39, 1
          %p701 = scmp.gt.s32.totalorder %s700, 0
          %s702 = scalar_select %p701, %s700, 0
          %s703 = smul.u32 4, %s702
        $region96: #{tcn_forward.1} parent=87 // pred_fallthru
          _
      $region88: #{tcn_forward.1} parent=5 // pred_fallthru
        _
      %p704 = scmp.le.s32.totalorder 1, %s31
      %p705 = scmp.lt.s32.totalorder %s31, 3
      %p706 = pnand %p704, %p705
      %p707 = pneg %p706
      // Predicated region
      $region97: #{tcn_forward.1} parent=5 // pred_check
        _
      $region98: #{tcn_forward.1} parent=5 // pred_check_branch
        %709 = sbr.rel (%p706) target = $region100
      $region99: #{tcn_forward.1} parent=5 // pred_region
        %s710 = ssub.s32 %s31, 1
        // Predicated region
        $region101: #{tcn_forward.1} parent=99 // pred_check
          %p711 = pneg %p126
        $region102: #{tcn_forward.1} parent=99 // pred_check_branch
          %713 = sbr.rel (%p711) target = $region104
        $region103: #{tcn_forward.1} parent=99 // pred_region
          %715 = dma.done [#allocation4], 6144
        $region104: #{tcn_forward.1} parent=99 // pred_fallthru
          _
        // Predicated region
        $region105: #{tcn_forward.1} parent=99 // pred_check
          %p716 = pneg %p168
        $region106: #{tcn_forward.1} parent=99 // pred_check_branch
          %718 = sbr.rel (%p716) target = $region108
        $region107: #{tcn_forward.1} parent=99 // pred_region
          %720 = dma.done [#allocation6], 6144
        $region108: #{tcn_forward.1} parent=99 // pred_fallthru
          _
        // Predicated region
        $region109: #{tcn_forward.1} parent=99 // pred_check
          %p721 = pneg %p252
        $region110: #{tcn_forward.1} parent=99 // pred_check_branch
          %723 = sbr.rel (%p721) target = $region112
        $region111: #{tcn_forward.1} parent=99 // pred_region
          %725 = dma.done [#allocation6], 6144
        $region112: #{tcn_forward.1} parent=99 // pred_fallthru
          _
        // Predicated region
        $region113: #{tcn_forward.1} parent=99 // pred_check
          %p726 = pneg %p294
        $region114: #{tcn_forward.1} parent=99 // pred_check_branch
          %728 = sbr.rel (%p726) target = $region116
        $region115: #{tcn_forward.1} parent=99 // pred_region
          %730 = dma.done [#allocation9], 6144
        $region116: #{tcn_forward.1} parent=99 // pred_fallthru
          _
        // Predicated region
        $region117: #{tcn_forward.1} parent=99 // pred_check
          %p731 = pneg %p336
        $region118: #{tcn_forward.1} parent=99 // pred_check_branch
          %733 = sbr.rel (%p731) target = $region120
        $region119: #{tcn_forward.1} parent=99 // pred_region
          %735 = dma.done [#allocation9], 6144
        $region120: #{tcn_forward.1} parent=99 // pred_fallthru
          _
        // Predicated region
        $region121: #{tcn_forward.1} parent=99 // pred_check
          %p736 = pneg %p378
        $region122: #{tcn_forward.1} parent=99 // pred_check_branch
          %738 = sbr.rel (%p736) target = $region124
        $region123: #{tcn_forward.1} parent=99 // pred_region
          %740 = dma.done [#allocation12], 6144
        $region124: #{tcn_forward.1} parent=99 // pred_fallthru
          _
        // Predicated region
        $region125: #{tcn_forward.1} parent=99 // pred_check
          %p741 = pneg %p420
        $region126: #{tcn_forward.1} parent=99 // pred_check_branch
          %743 = sbr.rel (%p741) target = $region128
        $region127: #{tcn_forward.1} parent=99 // pred_region
          %745 = dma.done [#allocation12], 2048
        $region128: #{tcn_forward.1} parent=99 // pred_fallthru
          _
        // Predicated region
        $region129: #{tcn_forward.1} parent=99 // pred_check
          %p746 = pneg %p462
        $region130: #{tcn_forward.1} parent=99 // pred_check_branch
          %748 = sbr.rel (%p746) target = $region132
        $region131: #{tcn_forward.1} parent=99 // pred_region
          %750 = dma.done [#allocation15], 2048
        $region132: #{tcn_forward.1} parent=99 // pred_fallthru
          _
        %s751 = smul.u32 4, %s41
        %p752 = scmp.lt.s32.totalorder %s40, 1
        %s753 = scalar_select %p752, %s40, 1
        %p754 = scmp.lt.s32.totalorder %s751, 3
        %s755 = scalar_select %p754, %s751, 3
        %s756 = smul.addr %s753, 4
        %s757 = sadd.s32 %s755, %s756
        %s758 = smul.addr %s757, 8
        %s759 = scalar_lea.vmem %s0, %s758
        %p760 = pneg %p71
        %p761 = pneg %p68
        %s762 = ssub.s32 %s41, 1
        %p763 = scmp.gt.s32.totalorder %s762, 0
        %s764 = scalar_select %p763, %s762, 0
        %s765 = smul.u32 4, %s764
        %p766 = scmp.lt.s32.totalorder %s40, 1
        %s767 = scalar_select %p766, %s40, 1
        %p768 = scmp.lt.s32.totalorder %s765, 3
        %s769 = scalar_select %p768, %s765, 3
        %s770 = smul.addr %s767, 4
        %s771 = sadd.s32 %s769, %s770
        %s772 = smul.addr %s771, 8
        %s773 = scalar_lea.vmem %s1, %s772
        %p774 = pneg %p105
        %p775 = pneg %p102
        %p776 = pneg %p126
        %p777 = pneg %p123
        %p778 = pneg %p147
        %p779 = pneg %p144
        %p780 = pneg %p168
        %p781 = pneg %p165
        %p782 = pneg %p189
        %p783 = pneg %p186
        %p784 = pneg %p210
        %p785 = pneg %p207
        %p786 = pneg %p231
        %p787 = pneg %p228
        %p788 = pneg %p252
        %p789 = pneg %p249
        %p790 = pneg %p273
        %p791 = pneg %p270
        %p792 = pneg %p294
        %p793 = pneg %p291
        %p794 = pneg %p315
        %p795 = pneg %p312
        %p796 = pneg %p336
        %p797 = pneg %p333
        %p798 = pneg %p357
        %p799 = pneg %p354
        %p800 = pneg %p378
        %p801 = pneg %p375
        %p802 = pneg %p399
        %p803 = pneg %p396
        %p804 = pneg %p420
        %p805 = pneg %p417
        %p806 = pneg %p441
        %p807 = pneg %p438
        %p808 = pneg %p462
        %p809 = pneg %p459
        %p810 = pneg %p483
        %p811 = pneg %p480
        %p812 = pneg %p511
        %p813 = pneg %p508
        %s814 = smul.u32 4, %s41
        %p815 = scmp.lt.s32.totalorder %s40, 1
        %s816 = scalar_select %p815, %s40, 1
        %p817 = scmp.lt.s32.totalorder %s814, 3
        %s818 = scalar_select %p817, %s814, 3
        %s819 = smul.addr %s816, 4
        %s820 = sadd.s32 %s818, %s819
        %s821 = smul.addr %s820, 8
        %s822 = scalar_lea.vmem %s20, %s821
        %s823 = smul.u32 4, %s41
        %p824 = scmp.lt.s32.totalorder %s40, 1
        %s825 = scalar_select %p824, %s40, 1
        %p826 = scmp.lt.s32.totalorder %s823, 3
        %s827 = scalar_select %p826, %s823, 3
        %s828 = smul.addr %s825, 4
        %s829 = sadd.s32 %s827, %s828
        %s830 = smul.addr %s829, 8
        %s831 = scalar_lea.vmem %s0, %s830
        %s832 = smul.u32 4, %s41
        %s833 = ssub.s32 %s41, 1
        %p834 = scmp.gt.s32.totalorder %s833, 0
        %s835 = scalar_select %p834, %s833, 0
        %s836 = smul.u32 4, %s835
        %p837 = scmp.lt.s32.totalorder %s40, 1
        %s838 = scalar_select %p837, %s40, 1
        %p839 = scmp.lt.s32.totalorder %s836, 3
        %s840 = scalar_select %p839, %s836, 3
        %s841 = smul.addr %s838, 4
        %s842 = sadd.s32 %s840, %s841
        %s843 = smul.addr %s842, 8
        %s844 = scalar_lea.vmem %s1, %s843
        %s845 = ssub.s32 %s41, 1
        %p846 = scmp.gt.s32.totalorder %s845, 0
        %s847 = scalar_select %p846, %s845, 0
        %s848 = smul.u32 4, %s847
        %s849 = smul.u32 4, %s41
        %p850 = scmp.lt.s32.totalorder %s40, 1
        %s851 = scalar_select %p850, %s40, 1
        %p852 = scmp.lt.s32.totalorder %s849, 3
        %s853 = scalar_select %p852, %s849, 3
        %s854 = smul.addr %s851, 4
        %s855 = sadd.s32 %s853, %s854
        %s856 = smul.addr %s855, 8
        %s857 = scalar_lea.vmem %s20, %s856
        %s858 = smul.u32 4, %s41
        %v859 = vld [vmem:[%s844] sm:$0xff]
        %v860 = vld [vmem:[%s844 + $0x8] sm:$0xff]
        %v861 = vld [vmem:[%s844 + $0x10] sm:$0xff]
        %v862 = vld [vmem:[%s844 + $0x18] sm:$0xff]
        %863 = vst [vmem:[#allocation2] sm:$0xff] %v859
        %864 = vst [vmem:[#allocation2 + $0x8] sm:$0xff] %v860
        %865 = vst [vmem:[#allocation2 + $0x10] sm:$0xff] %v861
        %866 = vst [vmem:[#allocation2 + $0x18] sm:$0xff] %v862
        %v867 = vld [vmem:[%s831] sm:$0xff]
        %v868 = vld [vmem:[%s831 + $0x8] sm:$0xff]
        %v869 = vld [vmem:[%s831 + $0x10] sm:$0xff]
        %v870 = vld [vmem:[%s831 + $0x18] sm:$0xff]
        %871 = vst [vmem:[#allocation2 + $0x20] sm:$0xff] %v867
        %872 = vst [vmem:[#allocation2 + $0x28] sm:$0xff] %v868
        %873 = vst [vmem:[#allocation2 + $0x30] sm:$0xff] %v869
        %874 = vst [vmem:[#allocation2 + $0x38] sm:$0xff] %v870
        %v875 = vld [vmem:[#allocation2] sm:$0xff]
        %v876 = vld [vmem:[#allocation2 + $0x8] sm:$0xff]
        %v877 = vld [vmem:[#allocation2 + $0x10] sm:$0xff]
        %v878 = vld [vmem:[#allocation2 + $0x18] sm:$0xff]
        %v879 = vld [vmem:[#allocation2 + $0x20] sm:$0xff]
        %v880 = vld [vmem:[#allocation2 + $0x28] sm:$0xff]
        %v881 = vld [vmem:[#allocation2 + $0x30] sm:$0xff]
        %v882 = vld [vmem:[#allocation2 + $0x38] sm:$0xff]
        %s883 = smul.u32 %s41, 32
        %s884 = ssub.s32 %s883, 32
        %v885 = vlaneseq
        %v886 = vshrl.u32 %v885, 7
        %v887 = vadd.s32 %v886, 8
        %v888 = vadd.s32 %v886, 16
        %v889 = vadd.s32 %v886, 24
        %v890 = vadd.s32 %v886, 32
        %v891 = vadd.s32 %v886, 40
        %v892 = vadd.s32 %v886, 48
        %v893 = vadd.s32 %v886, 56
        %v894 = vstv %s884
        %v895 = vadd.s32 %v894, %v886
        %v896 = vadd.s32 %v894, %v887
        %v897 = vadd.s32 %v894, %v888
        %v898 = vadd.s32 %v894, %v889
        %v899 = vadd.s32 %v894, %v890
        %v900 = vadd.s32 %v894, %v891
        %v901 = vadd.s32 %v894, %v892
        %v902 = vadd.s32 %v894, %v893
        %v903 = vld [vmem:[%s3] sm:$0x1]
        %v905 = vperm.slane %v903, 0
        %vm907 = vcmp.ge.s32.totalorder %v895, 2
        %vm908 = vcmp.ge.s32.totalorder %v896, 2
        %vm909 = vcmp.ge.s32.totalorder %v897, 2
        %vm910 = vcmp.ge.s32.totalorder %v898, 2
        %vm911 = vcmp.ge.s32.totalorder %v899, 2
        %vm912 = vcmp.ge.s32.totalorder %v900, 2
        %vm913 = vcmp.ge.s32.totalorder %v901, 2
        %vm914 = vcmp.ge.s32.totalorder %v902, 2
        %v915 = vsel %vm907, 1, 0
        %v916 = vsel %vm908, 1, 0
        %v917 = vsel %vm909, 1, 0
        %v918 = vsel %vm910, 1, 0
        %v919 = vsel %vm911, 1, 0
        %v920 = vsel %vm912, 1, 0
        %v921 = vsel %vm913, 1, 0
        %v922 = vsel %vm914, 1, 0
        %v923 = vcvt.s32.f32 %v915
        %v924 = vcvt.s32.f32 %v916
        %v925 = vcvt.s32.f32 %v917
        %v926 = vcvt.s32.f32 %v918
        %v927 = vcvt.s32.f32 %v919
        %v928 = vcvt.s32.f32 %v920
        %v929 = vcvt.s32.f32 %v921
        %v930 = vcvt.s32.f32 %v922
        %v931 = vrot.slane %v875, 6
        %v932 = vrot.slane %v876, 6
        %v933 = vrot.slane %v877, 6
        %v934 = vrot.slane %v878, 6
        %v935 = vrot.slane %v879, 6
        %v936 = vrot.slane %v880, 6
        %v937 = vrot.slane %v881, 6
        %v938 = vrot.slane %v882, 6
        %vm939 = vcmp.lt.s32.totalorder %v886, 2
        %v940 = vsel %vm939, %v937, %v938
        %v941 = vsel %vm939, %v936, %v937
        %v942 = vsel %vm939, %v935, %v936
        %v943 = vsel %vm939, %v934, %v935
        %v944 = vsel %vm939, %v933, %v934
        %v945 = vsel %vm939, %v932, %v933
        %v946 = vsel %vm939, %v931, %v932
        %v947 = vsel %vm939, %v938, %v931
        %v948 = vmul.f32 %v947, %v923
        %v949 = vmul.f32 %v946, %v924
        %v950 = vmul.f32 %v945, %v925
        %v951 = vmul.f32 %v944, %v926
        %v952 = vmul.f32 %v943, %v927
        %v953 = vmul.f32 %v942, %v928
        %v954 = vmul.f32 %v941, %v929
        %v955 = vmul.f32 %v940, %v930
        %v956 = vld [vmem:[#allocation3] sm:$0xff]
        %v957 = vld [vmem:[#allocation3 + $0x8] sm:$0xff]
        %v958 = vld [vmem:[#allocation3 + $0x10] sm:$0xff]
        %v959 = vld [vmem:[#allocation3 + $0x18] sm:$0xff]
        %v960 = vld [vmem:[#allocation3 + $0x20] sm:$0xff]
        %v961 = vld [vmem:[#allocation3 + $0x28] sm:$0xff]
        %v962 = vld [vmem:[#allocation3 + $0x30] sm:$0xff]
        %v963 = vld [vmem:[#allocation3 + $0x38] sm:$0xff]
        %v964 = vld [vmem:[#allocation3 + $0x40] sm:$0xff]
        %v965 = vld [vmem:[#allocation3 + $0x48] sm:$0xff]
        %v966 = vld [vmem:[#allocation3 + $0x50] sm:$0xff]
        %v967 = vld [vmem:[#allocation3 + $0x58] sm:$0xff]
        %v968 = vld [vmem:[#allocation3 + $0x60] sm:$0xff]
        %v969 = vld [vmem:[#allocation3 + $0x68] sm:$0xff]
        %v970 = vld [vmem:[#allocation3 + $0x70] sm:$0xff]
        %v971 = vld [vmem:[#allocation3 + $0x78] sm:$0xff]
        %972 = vmatpush.msra.mxu0 %v971
        %973 = vmatpush.msra.mxu0 %v970
        %974 = vmatpush.msra.mxu0 %v969
        %975 = vmatpush.msra.mxu0 %v968
        %976 = vmatpush.msra.mxu0 %v967
        %977 = vmatpush.msra.mxu0 %v966
        %978 = vmatpush.msra.mxu0 %v965
        %979 = vmatpush.msra.mxu0 %v964
        %980 = vmatpush.msra.mxu0 %v963
        %981 = vmatpush.msra.mxu0 %v962
        %982 = vmatpush.msra.mxu0 %v961
        %983 = vmatpush.msra.mxu0 %v960
        %984 = vmatpush.msra.mxu0 %v959
        %985 = vmatpush.msra.mxu0 %v958
        %986 = vmatpush.msra.mxu0 %v957
        %987 = vmatpush.msra.mxu0 %v956
        %988 = vmatmul.f32.gmra.mxu0 %v948
        %v989 = vpop.f32.mrf.mxu0
        %v990 = vadd.f32 0.0, %v989
        %991 = vmatmul.f32.gmra.mxu0 %v949
        %v992 = vpop.f32.mrf.mxu0
        %v993 = vadd.f32 0.0, %v992
        %994 = vmatmul.f32.gmra.mxu0 %v950
        %v995 = vpop.f32.mrf.mxu0
        %v996 = vadd.f32 0.0, %v995
        %997 = vmatmul.f32.gmra.mxu0 %v951
        %v998 = vpop.f32.mrf.mxu0
        %v999 = vadd.f32 0.0, %v998
        %1000 = vmatmul.f32.gmra.mxu0 %v952
        %v1001 = vpop.f32.mrf.mxu0
        %v1002 = vadd.f32 0.0, %v1001
        %1003 = vmatmul.f32.gmra.mxu0 %v953
        %v1004 = vpop.f32.mrf.mxu0
        %v1005 = vadd.f32 0.0, %v1004
        %1006 = vmatmul.f32.gmra.mxu0 %v954
        %v1007 = vpop.f32.mrf.mxu0
        %v1008 = vadd.f32 0.0, %v1007
        %1009 = vmatmul.f32.gmra.mxu0 %v955
        %v1010 = vpop.f32.mrf.mxu0
        %v1011 = vadd.f32 0.0, %v1010
        %1012 = vdwg.mxu0
        %v1013 = vadd.f32 %v905, %v990
        %v1014 = vadd.f32 %v905, %v993
        %v1015 = vadd.f32 %v905, %v996
        %v1016 = vadd.f32 %v905, %v999
        %v1017 = vadd.f32 %v905, %v1002
        %v1018 = vadd.f32 %v905, %v1005
        %v1019 = vadd.f32 %v905, %v1008
        %v1020 = vadd.f32 %v905, %v1011
        %vm1021 = vcmp.ge.s32.totalorder %v895, 1
        %vm1022 = vcmp.ge.s32.totalorder %v896, 1
        %vm1023 = vcmp.ge.s32.totalorder %v897, 1
        %vm1024 = vcmp.ge.s32.totalorder %v898, 1
        %vm1025 = vcmp.ge.s32.totalorder %v899, 1
        %vm1026 = vcmp.ge.s32.totalorder %v900, 1
        %vm1027 = vcmp.ge.s32.totalorder %v901, 1
        %vm1028 = vcmp.ge.s32.totalorder %v902, 1
        %v1029 = vsel %vm1021, 1, 0
        %v1030 = vsel %vm1022, 1, 0
        %v1031 = vsel %vm1023, 1, 0
        %v1032 = vsel %vm1024, 1, 0
        %v1033 = vsel %vm1025, 1, 0
        %v1034 = vsel %vm1026, 1, 0
        %v1035 = vsel %vm1027, 1, 0
        %v1036 = vsel %vm1028, 1, 0
        %v1037 = vcvt.s32.f32 %v1029
        %v1038 = vcvt.s32.f32 %v1030
        %v1039 = vcvt.s32.f32 %v1031
        %v1040 = vcvt.s32.f32 %v1032
        %v1041 = vcvt.s32.f32 %v1033
        %v1042 = vcvt.s32.f32 %v1034
        %v1043 = vcvt.s32.f32 %v1035
        %v1044 = vcvt.s32.f32 %v1036
        %v1045 = vrot.slane %v875, 7
        %v1046 = vrot.slane %v876, 7
        %v1047 = vrot.slane %v877, 7
        %v1048 = vrot.slane %v878, 7
        %v1049 = vrot.slane %v879, 7
        %v1050 = vrot.slane %v880, 7
        %v1051 = vrot.slane %v881, 7
        %v1052 = vrot.slane %v882, 7
        %vm1053 = vcmp.lt.s32.totalorder %v886, 1
        %v1054 = vsel %vm1053, %v1051, %v1052
        %v1055 = vsel %vm1053, %v1050, %v1051
        %v1056 = vsel %vm1053, %v1049, %v1050
        %v1057 = vsel %vm1053, %v1048, %v1049
        %v1058 = vsel %vm1053, %v1047, %v1048
        %v1059 = vsel %vm1053, %v1046, %v1047
        %v1060 = vsel %vm1053, %v1045, %v1046
        %v1061 = vsel %vm1053, %v1052, %v1045
        %v1062 = vmul.f32 %v1061, %v1037
        %v1063 = vmul.f32 %v1060, %v1038
        %v1064 = vmul.f32 %v1059, %v1039
        %v1065 = vmul.f32 %v1058, %v1040
        %v1066 = vmul.f32 %v1057, %v1041
        %v1067 = vmul.f32 %v1056, %v1042
        %v1068 = vmul.f32 %v1055, %v1043
        %v1069 = vmul.f32 %v1054, %v1044
        %s1070 = scalar_lea.vmem [#allocation3], 128
        %v1071 = vld [vmem:[%s1070] sm:$0xff]
        %v1072 = vld [vmem:[%s1070 + $0x8] sm:$0xff]
        %v1073 = vld [vmem:[%s1070 + $0x10] sm:$0xff]
        %v1074 = vld [vmem:[%s1070 + $0x18] sm:$0xff]
        %v1075 = vld [vmem:[%s1070 + $0x20] sm:$0xff]
        %v1076 = vld [vmem:[%s1070 + $0x28] sm:$0xff]
        %v1077 = vld [vmem:[%s1070 + $0x30] sm:$0xff]
        %v1078 = vld [vmem:[%s1070 + $0x38] sm:$0xff]
        %v1079 = vld [vmem:[%s1070 + $0x40] sm:$0xff]
        %v1080 = vld [vmem:[%s1070 + $0x48] sm:$0xff]
        %v1081 = vld [vmem:[%s1070 + $0x50] sm:$0xff]
        %v1082 = vld [vmem:[%s1070 + $0x58] sm:$0xff]
        %v1083 = vld [vmem:[%s1070 + $0x60] sm:$0xff]
        %v1084 = vld [vmem:[%s1070 + $0x68] sm:$0xff]
        %v1085 = vld [vmem:[%s1070 + $0x70] sm:$0xff]
        %v1086 = vld [vmem:[%s1070 + $0x78] sm:$0xff]
        %1087 = vmatpush.msra.mxu0 %v1086
        %1088 = vmatpush.msra.mxu0 %v1085
        %1089 = vmatpush.msra.mxu0 %v1084
        %1090 = vmatpush.msra.mxu0 %v1083
        %1091 = vmatpush.msra.mxu0 %v1082
        %1092 = vmatpush.msra.mxu0 %v1081
        %1093 = vmatpush.msra.mxu0 %v1080
        %1094 = vmatpush.msra.mxu0 %v1079
        %1095 = vmatpush.msra.mxu0 %v1078
        %1096 = vmatpush.msra.mxu0 %v1077
        %1097 = vmatpush.msra.mxu0 %v1076
        %1098 = vmatpush.msra.mxu0 %v1075
        %1099 = vmatpush.msra.mxu0 %v1074
        %1100 = vmatpush.msra.mxu0 %v1073
        %1101 = vmatpush.msra.mxu0 %v1072
        %1102 = vmatpush.msra.mxu0 %v1071
        %1103 = vmatmul.f32.gmra.mxu0 %v1062
        %v1104 = vpop.f32.mrf.mxu0
        %v1105 = vadd.f32 0.0, %v1104
        %1106 = vmatmul.f32.gmra.mxu0 %v1063
        %v1107 = vpop.f32.mrf.mxu0
        %v1108 = vadd.f32 0.0, %v1107
        %1109 = vmatmul.f32.gmra.mxu0 %v1064
        %v1110 = vpop.f32.mrf.mxu0
        %v1111 = vadd.f32 0.0, %v1110
        %1112 = vmatmul.f32.gmra.mxu0 %v1065
        %v1113 = vpop.f32.mrf.mxu0
        %v1114 = vadd.f32 0.0, %v1113
        %1115 = vmatmul.f32.gmra.mxu0 %v1066
        %v1116 = vpop.f32.mrf.mxu0
        %v1117 = vadd.f32 0.0, %v1116
        %1118 = vmatmul.f32.gmra.mxu0 %v1067
        %v1119 = vpop.f32.mrf.mxu0
        %v1120 = vadd.f32 0.0, %v1119
        %1121 = vmatmul.f32.gmra.mxu0 %v1068
        %v1122 = vpop.f32.mrf.mxu0
        %v1123 = vadd.f32 0.0, %v1122
        %1124 = vmatmul.f32.gmra.mxu0 %v1069
        %v1125 = vpop.f32.mrf.mxu0
        %v1126 = vadd.f32 0.0, %v1125
        %1127 = vdwg.mxu0
        %v1128 = vadd.f32 %v1013, %v1105
        %v1129 = vadd.f32 %v1014, %v1108
        %v1130 = vadd.f32 %v1015, %v1111
        %v1131 = vadd.f32 %v1016, %v1114
        %v1132 = vadd.f32 %v1017, %v1117
        %v1133 = vadd.f32 %v1018, %v1120
        %v1134 = vadd.f32 %v1019, %v1123
        %v1135 = vadd.f32 %v1020, %v1126
        %s1136 = scalar_lea.vmem [#allocation3], 256
        %v1137 = vld [vmem:[%s1136] sm:$0xff]
        %v1138 = vld [vmem:[%s1136 + $0x8] sm:$0xff]
        %v1139 = vld [vmem:[%s1136 + $0x10] sm:$0xff]
        %v1140 = vld [vmem:[%s1136 + $0x18] sm:$0xff]
        %v1141 = vld [vmem:[%s1136 + $0x20] sm:$0xff]
        %v1142 = vld [vmem:[%s1136 + $0x28] sm:$0xff]
        %v1143 = vld [vmem:[%s1136 + $0x30] sm:$0xff]
        %v1144 = vld [vmem:[%s1136 + $0x38] sm:$0xff]
        %v1145 = vld [vmem:[%s1136 + $0x40] sm:$0xff]
        %v1146 = vld [vmem:[%s1136 + $0x48] sm:$0xff]
        %v1147 = vld [vmem:[%s1136 + $0x50] sm:$0xff]
        %v1148 = vld [vmem:[%s1136 + $0x58] sm:$0xff]
        %v1149 = vld [vmem:[%s1136 + $0x60] sm:$0xff]
        %v1150 = vld [vmem:[%s1136 + $0x68] sm:$0xff]
        %v1151 = vld [vmem:[%s1136 + $0x70] sm:$0xff]
        %v1152 = vld [vmem:[%s1136 + $0x78] sm:$0xff]
        %1153 = vmatpush.msra.mxu0 %v1152
        %1154 = vmatpush.msra.mxu0 %v1151
        %1155 = vmatpush.msra.mxu0 %v1150
        %1156 = vmatpush.msra.mxu0 %v1149
        %1157 = vmatpush.msra.mxu0 %v1148
        %1158 = vmatpush.msra.mxu0 %v1147
        %1159 = vmatpush.msra.mxu0 %v1146
        %1160 = vmatpush.msra.mxu0 %v1145
        %1161 = vmatpush.msra.mxu0 %v1144
        %1162 = vmatpush.msra.mxu0 %v1143
        %1163 = vmatpush.msra.mxu0 %v1142
        %1164 = vmatpush.msra.mxu0 %v1141
        %1165 = vmatpush.msra.mxu0 %v1140
        %1166 = vmatpush.msra.mxu0 %v1139
        %1167 = vmatpush.msra.mxu0 %v1138
        %1168 = vmatpush.msra.mxu0 %v1137
        %1169 = vmatmul.f32.gmra.mxu0 %v875
        %v1170 = vpop.f32.mrf.mxu0
        %v1171 = vadd.f32 0.0, %v1170
        %1172 = vmatmul.f32.gmra.mxu0 %v876
        %v1173 = vpop.f32.mrf.mxu0
        %v1174 = vadd.f32 0.0, %v1173
        %1175 = vmatmul.f32.gmra.mxu0 %v877
        %v1176 = vpop.f32.mrf.mxu0
        %v1177 = vadd.f32 0.0, %v1176
        %1178 = vmatmul.f32.gmra.mxu0 %v878
        %v1179 = vpop.f32.mrf.mxu0
        %v1180 = vadd.f32 0.0, %v1179
        %1181 = vmatmul.f32.gmra.mxu0 %v879
        %v1182 = vpop.f32.mrf.mxu0
        %v1183 = vadd.f32 0.0, %v1182
        %1184 = vmatmul.f32.gmra.mxu0 %v880
        %v1185 = vpop.f32.mrf.mxu0
        %v1186 = vadd.f32 0.0, %v1185
        %1187 = vmatmul.f32.gmra.mxu0 %v881
        %v1188 = vpop.f32.mrf.mxu0
        %v1189 = vadd.f32 0.0, %v1188
        %1190 = vmatmul.f32.gmra.mxu0 %v882
        %v1191 = vpop.f32.mrf.mxu0
        %v1192 = vadd.f32 0.0, %v1191
        %1193 = vdwg.mxu0
        %v1194 = vadd.f32 %v1128, %v1171
        %v1195 = vadd.f32 %v1129, %v1174
        %v1196 = vadd.f32 %v1130, %v1177
        %v1197 = vadd.f32 %v1131, %v1180
        %v1198 = vadd.f32 %v1132, %v1183
        %v1199 = vadd.f32 %v1133, %v1186
        %v1200 = vadd.f32 %v1134, %v1189
        %v1201 = vadd.f32 %v1135, %v1192
        %v1202 = vmax.f32 %v1194, 0.0
        %v1203 = vmax.f32 %v1195, 0.0
        %v1204 = vmax.f32 %v1196, 0.0
        %v1205 = vmax.f32 %v1197, 0.0
        %v1206 = vmax.f32 %v1198, 0.0
        %v1207 = vmax.f32 %v1199, 0.0
        %v1208 = vmax.f32 %v1200, 0.0
        %v1209 = vmax.f32 %v1201, 0.0
        %v1210 = vld [vmem:[%s5] sm:$0x1]
        %v1212 = vperm.slane %v1210, 0
        %v1214 = vrot.slane %v1202, 6
        %v1215 = vrot.slane %v1203, 6
        %v1216 = vrot.slane %v1204, 6
        %v1217 = vrot.slane %v1205, 6
        %v1218 = vrot.slane %v1206, 6
        %v1219 = vrot.slane %v1207, 6
        %v1220 = vrot.slane %v1208, 6
        %v1221 = vrot.slane %v1209, 6
        %v1222 = vsel %vm939, %v1220, %v1221
        %v1223 = vsel %vm939, %v1219, %v1220
        %v1224 = vsel %vm939, %v1218, %v1219
        %v1225 = vsel %vm939, %v1217, %v1218
        %v1226 = vsel %vm939, %v1216, %v1217
        %v1227 = vsel %vm939, %v1215, %v1216
        %v1228 = vsel %vm939, %v1214, %v1215
        %v1229 = vsel %vm939, %v1221, %v1214
        %v1230 = vmul.f32 %v1229, %v923
        %v1231 = vmul.f32 %v1228, %v924
        %v1232 = vmul.f32 %v1227, %v925
        %v1233 = vmul.f32 %v1226, %v926
        %v1234 = vmul.f32 %v1225, %v927
        %v1235 = vmul.f32 %v1224, %v928
        %v1236 = vmul.f32 %v1223, %v929
        %v1237 = vmul.f32 %v1222, %v930
        %v1238 = vld [vmem:[#allocation5] sm:$0xff]
        %v1239 = vld [vmem:[#allocation5 + $0x8] sm:$0xff]
        %v1240 = vld [vmem:[#allocation5 + $0x10] sm:$0xff]
        %v1241 = vld [vmem:[#allocation5 + $0x18] sm:$0xff]
        %v1242 = vld [vmem:[#allocation5 + $0x20] sm:$0xff]
        %v1243 = vld [vmem:[#allocation5 + $0x28] sm:$0xff]
        %v1244 = vld [vmem:[#allocation5 + $0x30] sm:$0xff]
        %v1245 = vld [vmem:[#allocation5 + $0x38] sm:$0xff]
        %v1246 = vld [vmem:[#allocation5 + $0x40] sm:$0xff]
        %v1247 = vld [vmem:[#allocation5 + $0x48] sm:$0xff]
        %v1248 = vld [vmem:[#allocation5 + $0x50] sm:$0xff]
        %v1249 = vld [vmem:[#allocation5 + $0x58] sm:$0xff]
        %v1250 = vld [vmem:[#allocation5 + $0x60] sm:$0xff]
        %v1251 = vld [vmem:[#allocation5 + $0x68] sm:$0xff]
        %v1252 = vld [vmem:[#allocation5 + $0x70] sm:$0xff]
        %v1253 = vld [vmem:[#allocation5 + $0x78] sm:$0xff]
        %1254 = vmatpush.msra.mxu0 %v1253
        %1255 = vmatpush.msra.mxu0 %v1252
        %1256 = vmatpush.msra.mxu0 %v1251
        %1257 = vmatpush.msra.mxu0 %v1250
        %1258 = vmatpush.msra.mxu0 %v1249
        %1259 = vmatpush.msra.mxu0 %v1248
        %1260 = vmatpush.msra.mxu0 %v1247
        %1261 = vmatpush.msra.mxu0 %v1246
        %1262 = vmatpush.msra.mxu0 %v1245
        %1263 = vmatpush.msra.mxu0 %v1244
        %1264 = vmatpush.msra.mxu0 %v1243
        %1265 = vmatpush.msra.mxu0 %v1242
        %1266 = vmatpush.msra.mxu0 %v1241
        %1267 = vmatpush.msra.mxu0 %v1240
        %1268 = vmatpush.msra.mxu0 %v1239
        %1269 = vmatpush.msra.mxu0 %v1238
        %1270 = vmatmul.f32.gmra.mxu0 %v1230
        %v1271 = vpop.f32.mrf.mxu0
        %v1272 = vadd.f32 0.0, %v1271
        %1273 = vmatmul.f32.gmra.mxu0 %v1231
        %v1274 = vpop.f32.mrf.mxu0
        %v1275 = vadd.f32 0.0, %v1274
        %1276 = vmatmul.f32.gmra.mxu0 %v1232
        %v1277 = vpop.f32.mrf.mxu0
        %v1278 = vadd.f32 0.0, %v1277
        %1279 = vmatmul.f32.gmra.mxu0 %v1233
        %v1280 = vpop.f32.mrf.mxu0
        %v1281 = vadd.f32 0.0, %v1280
        %1282 = vmatmul.f32.gmra.mxu0 %v1234
        %v1283 = vpop.f32.mrf.mxu0
        %v1284 = vadd.f32 0.0, %v1283
        %1285 = vmatmul.f32.gmra.mxu0 %v1235
        %v1286 = vpop.f32.mrf.mxu0
        %v1287 = vadd.f32 0.0, %v1286
        %1288 = vmatmul.f32.gmra.mxu0 %v1236
        %v1289 = vpop.f32.mrf.mxu0
        %v1290 = vadd.f32 0.0, %v1289
        %1291 = vmatmul.f32.gmra.mxu0 %v1237
        %v1292 = vpop.f32.mrf.mxu0
        %v1293 = vadd.f32 0.0, %v1292
        %1294 = vdwg.mxu0
        %v1295 = vadd.f32 %v1212, %v1272
        %v1296 = vadd.f32 %v1212, %v1275
        %v1297 = vadd.f32 %v1212, %v1278
        %v1298 = vadd.f32 %v1212, %v1281
        %v1299 = vadd.f32 %v1212, %v1284
        %v1300 = vadd.f32 %v1212, %v1287
        %v1301 = vadd.f32 %v1212, %v1290
        %v1302 = vadd.f32 %v1212, %v1293
        %v1303 = vrot.slane %v1202, 7
        %v1304 = vrot.slane %v1203, 7
        %v1305 = vrot.slane %v1204, 7
        %v1306 = vrot.slane %v1205, 7
        %v1307 = vrot.slane %v1206, 7
        %v1308 = vrot.slane %v1207, 7
        %v1309 = vrot.slane %v1208, 7
        %v1310 = vrot.slane %v1209, 7
        %v1311 = vsel %vm1053, %v1309, %v1310
        %v1312 = vsel %vm1053, %v1308, %v1309
        %v1313 = vsel %vm1053, %v1307, %v1308
        %v1314 = vsel %vm1053, %v1306, %v1307
        %v1315 = vsel %vm1053, %v1305, %v1306
        %v1316 = vsel %vm1053, %v1304, %v1305
        %v1317 = vsel %vm1053, %v1303, %v1304
        %v1318 = vsel %vm1053, %v1310, %v1303
        %v1319 = vmul.f32 %v1318, %v1037
        %v1320 = vmul.f32 %v1317, %v1038
        %v1321 = vmul.f32 %v1316, %v1039
        %v1322 = vmul.f32 %v1315, %v1040
        %v1323 = vmul.f32 %v1314, %v1041
        %v1324 = vmul.f32 %v1313, %v1042
        %v1325 = vmul.f32 %v1312, %v1043
        %v1326 = vmul.f32 %v1311, %v1044
        %s1327 = scalar_lea.vmem [#allocation5], 128
        %v1328 = vld [vmem:[%s1327] sm:$0xff]
        %v1329 = vld [vmem:[%s1327 + $0x8] sm:$0xff]
        %v1330 = vld [vmem:[%s1327 + $0x10] sm:$0xff]
        %v1331 = vld [vmem:[%s1327 + $0x18] sm:$0xff]
        %v1332 = vld [vmem:[%s1327 + $0x20] sm:$0xff]
        %v1333 = vld [vmem:[%s1327 + $0x28] sm:$0xff]
        %v1334 = vld [vmem:[%s1327 + $0x30] sm:$0xff]
        %v1335 = vld [vmem:[%s1327 + $0x38] sm:$0xff]
        %v1336 = vld [vmem:[%s1327 + $0x40] sm:$0xff]
        %v1337 = vld [vmem:[%s1327 + $0x48] sm:$0xff]
        %v1338 = vld [vmem:[%s1327 + $0x50] sm:$0xff]
        %v1339 = vld [vmem:[%s1327 + $0x58] sm:$0xff]
        %v1340 = vld [vmem:[%s1327 + $0x60] sm:$0xff]
        %v1341 = vld [vmem:[%s1327 + $0x68] sm:$0xff]
        %v1342 = vld [vmem:[%s1327 + $0x70] sm:$0xff]
        %v1343 = vld [vmem:[%s1327 + $0x78] sm:$0xff]
        %1344 = vmatpush.msra.mxu0 %v1343
        %1345 = vmatpush.msra.mxu0 %v1342
        %1346 = vmatpush.msra.mxu0 %v1341
        %1347 = vmatpush.msra.mxu0 %v1340
        %1348 = vmatpush.msra.mxu0 %v1339
        %1349 = vmatpush.msra.mxu0 %v1338
        %1350 = vmatpush.msra.mxu0 %v1337
        %1351 = vmatpush.msra.mxu0 %v1336
        %1352 = vmatpush.msra.mxu0 %v1335
        %1353 = vmatpush.msra.mxu0 %v1334
        %1354 = vmatpush.msra.mxu0 %v1333
        %1355 = vmatpush.msra.mxu0 %v1332
        %1356 = vmatpush.msra.mxu0 %v1331
        %1357 = vmatpush.msra.mxu0 %v1330
        %1358 = vmatpush.msra.mxu0 %v1329
        %1359 = vmatpush.msra.mxu0 %v1328
        %1360 = vmatmul.f32.gmra.mxu0 %v1319
        %v1361 = vpop.f32.mrf.mxu0
        %v1362 = vadd.f32 0.0, %v1361
        %1363 = vmatmul.f32.gmra.mxu0 %v1320
        %v1364 = vpop.f32.mrf.mxu0
        %v1365 = vadd.f32 0.0, %v1364
        %1366 = vmatmul.f32.gmra.mxu0 %v1321
        %v1367 = vpop.f32.mrf.mxu0
        %v1368 = vadd.f32 0.0, %v1367
        %1369 = vmatmul.f32.gmra.mxu0 %v1322
        %v1370 = vpop.f32.mrf.mxu0
        %v1371 = vadd.f32 0.0, %v1370
        %1372 = vmatmul.f32.gmra.mxu0 %v1323
        %v1373 = vpop.f32.mrf.mxu0
        %v1374 = vadd.f32 0.0, %v1373
        %1375 = vmatmul.f32.gmra.mxu0 %v1324
        %v1376 = vpop.f32.mrf.mxu0
        %v1377 = vadd.f32 0.0, %v1376
        %1378 = vmatmul.f32.gmra.mxu0 %v1325
        %v1379 = vpop.f32.mrf.mxu0
        %v1380 = vadd.f32 0.0, %v1379
        %1381 = vmatmul.f32.gmra.mxu0 %v1326
        %v1382 = vpop.f32.mrf.mxu0
        %v1383 = vadd.f32 0.0, %v1382
        %1384 = vdwg.mxu0
        %v1385 = vadd.f32 %v1295, %v1362
        %v1386 = vadd.f32 %v1296, %v1365
        %v1387 = vadd.f32 %v1297, %v1368
        %v1388 = vadd.f32 %v1298, %v1371
        %v1389 = vadd.f32 %v1299, %v1374
        %v1390 = vadd.f32 %v1300, %v1377
        %v1391 = vadd.f32 %v1301, %v1380
        %v1392 = vadd.f32 %v1302, %v1383
        %s1393 = scalar_lea.vmem [#allocation5], 256
        %v1394 = vld [vmem:[%s1393] sm:$0xff]
        %v1395 = vld [vmem:[%s1393 + $0x8] sm:$0xff]
        %v1396 = vld [vmem:[%s1393 + $0x10] sm:$0xff]
        %v1397 = vld [vmem:[%s1393 + $0x18] sm:$0xff]
        %v1398 = vld [vmem:[%s1393 + $0x20] sm:$0xff]
        %v1399 = vld [vmem:[%s1393 + $0x28] sm:$0xff]
        %v1400 = vld [vmem:[%s1393 + $0x30] sm:$0xff]
        %v1401 = vld [vmem:[%s1393 + $0x38] sm:$0xff]
        %v1402 = vld [vmem:[%s1393 + $0x40] sm:$0xff]
        %v1403 = vld [vmem:[%s1393 + $0x48] sm:$0xff]
        %v1404 = vld [vmem:[%s1393 + $0x50] sm:$0xff]
        %v1405 = vld [vmem:[%s1393 + $0x58] sm:$0xff]
        %v1406 = vld [vmem:[%s1393 + $0x60] sm:$0xff]
        %v1407 = vld [vmem:[%s1393 + $0x68] sm:$0xff]
        %v1408 = vld [vmem:[%s1393 + $0x70] sm:$0xff]
        %v1409 = vld [vmem:[%s1393 + $0x78] sm:$0xff]
        %1410 = vmatpush.msra.mxu0 %v1409
        %1411 = vmatpush.msra.mxu0 %v1408
        %1412 = vmatpush.msra.mxu0 %v1407
        %1413 = vmatpush.msra.mxu0 %v1406
        %1414 = vmatpush.msra.mxu0 %v1405
        %1415 = vmatpush.msra.mxu0 %v1404
        %1416 = vmatpush.msra.mxu0 %v1403
        %1417 = vmatpush.msra.mxu0 %v1402
        %1418 = vmatpush.msra.mxu0 %v1401
        %1419 = vmatpush.msra.mxu0 %v1400
        %1420 = vmatpush.msra.mxu0 %v1399
        %1421 = vmatpush.msra.mxu0 %v1398
        %1422 = vmatpush.msra.mxu0 %v1397
        %1423 = vmatpush.msra.mxu0 %v1396
        %1424 = vmatpush.msra.mxu0 %v1395
        %1425 = vmatpush.msra.mxu0 %v1394
        %1426 = vmatmul.f32.gmra.mxu0 %v1202
        %v1427 = vpop.f32.mrf.mxu0
        %v1428 = vadd.f32 0.0, %v1427
        %1429 = vmatmul.f32.gmra.mxu0 %v1203
        %v1430 = vpop.f32.mrf.mxu0
        %v1431 = vadd.f32 0.0, %v1430
        %1432 = vmatmul.f32.gmra.mxu0 %v1204
        %v1433 = vpop.f32.mrf.mxu0
        %v1434 = vadd.f32 0.0, %v1433
        %1435 = vmatmul.f32.gmra.mxu0 %v1205
        %v1436 = vpop.f32.mrf.mxu0
        %v1437 = vadd.f32 0.0, %v1436
        %1438 = vmatmul.f32.gmra.mxu0 %v1206
        %v1439 = vpop.f32.mrf.mxu0
        %v1440 = vadd.f32 0.0, %v1439
        %1441 = vmatmul.f32.gmra.mxu0 %v1207
        %v1442 = vpop.f32.mrf.mxu0
        %v1443 = vadd.f32 0.0, %v1442
        %1444 = vmatmul.f32.gmra.mxu0 %v1208
        %v1445 = vpop.f32.mrf.mxu0
        %v1446 = vadd.f32 0.0, %v1445
        %1447 = vmatmul.f32.gmra.mxu0 %v1209
        %v1448 = vpop.f32.mrf.mxu0
        %v1449 = vadd.f32 0.0, %v1448
        %1450 = vdwg.mxu0
        %v1451 = vadd.f32 %v1385, %v1428
        %v1452 = vadd.f32 %v1386, %v1431
        %v1453 = vadd.f32 %v1387, %v1434
        %v1454 = vadd.f32 %v1388, %v1437
        %v1455 = vadd.f32 %v1389, %v1440
        %v1456 = vadd.f32 %v1390, %v1443
        %v1457 = vadd.f32 %v1391, %v1446
        %v1458 = vadd.f32 %v1392, %v1449
        %v1459 = vmax.f32 %v1451, 0.0
        %v1460 = vmax.f32 %v1452, 0.0
        %v1461 = vmax.f32 %v1453, 0.0
        %v1462 = vmax.f32 %v1454, 0.0
        %v1463 = vmax.f32 %v1455, 0.0
        %v1464 = vmax.f32 %v1456, 0.0
        %v1465 = vmax.f32 %v1457, 0.0
        %v1466 = vmax.f32 %v1458, 0.0
        %v1467 = vld [vmem:[%s7] sm:$0x1]
        %v1469 = vperm.slane %v1467, 0
        %v1471 = vld [vmem:[%s6] sm:$0xff]
        %v1472 = vld [vmem:[%s6 + $0x8] sm:$0xff]
        %v1473 = vld [vmem:[%s6 + $0x10] sm:$0xff]
        %v1474 = vld [vmem:[%s6 + $0x18] sm:$0xff]
        %v1475 = vld [vmem:[%s6 + $0x20] sm:$0xff]
        %v1476 = vld [vmem:[%s6 + $0x28] sm:$0xff]
        %v1477 = vld [vmem:[%s6 + $0x30] sm:$0xff]
        %v1478 = vld [vmem:[%s6 + $0x38] sm:$0xff]
        %v1479 = vld [vmem:[%s6 + $0x40] sm:$0xff]
        %v1480 = vld [vmem:[%s6 + $0x48] sm:$0xff]
        %v1481 = vld [vmem:[%s6 + $0x50] sm:$0xff]
        %v1482 = vld [vmem:[%s6 + $0x58] sm:$0xff]
        %v1483 = vld [vmem:[%s6 + $0x60] sm:$0xff]
        %v1484 = vld [vmem:[%s6 + $0x68] sm:$0xff]
        %v1485 = vld [vmem:[%s6 + $0x70] sm:$0xff]
        %v1486 = vld [vmem:[%s6 + $0x78] sm:$0xff]
        %1487 = vmatpush.msra.mxu0 %v1486
        %1488 = vmatpush.msra.mxu0 %v1485
        %1489 = vmatpush.msra.mxu0 %v1484
        %1490 = vmatpush.msra.mxu0 %v1483
        %1491 = vmatpush.msra.mxu0 %v1482
        %1492 = vmatpush.msra.mxu0 %v1481
        %1493 = vmatpush.msra.mxu0 %v1480
        %1494 = vmatpush.msra.mxu0 %v1479
        %1495 = vmatpush.msra.mxu0 %v1478
        %1496 = vmatpush.msra.mxu0 %v1477
        %1497 = vmatpush.msra.mxu0 %v1476
        %1498 = vmatpush.msra.mxu0 %v1475
        %1499 = vmatpush.msra.mxu0 %v1474
        %1500 = vmatpush.msra.mxu0 %v1473
        %1501 = vmatpush.msra.mxu0 %v1472
        %1502 = vmatpush.msra.mxu0 %v1471
        %1503 = vmatmul.f32.gmra.mxu0 %v875
        %v1504 = vpop.f32.mrf.mxu0
        %v1505 = vadd.f32 0.0, %v1504
        %1506 = vmatmul.f32.gmra.mxu0 %v876
        %v1507 = vpop.f32.mrf.mxu0
        %v1508 = vadd.f32 0.0, %v1507
        %1509 = vmatmul.f32.gmra.mxu0 %v877
        %v1510 = vpop.f32.mrf.mxu0
        %v1511 = vadd.f32 0.0, %v1510
        %1512 = vmatmul.f32.gmra.mxu0 %v878
        %v1513 = vpop.f32.mrf.mxu0
        %v1514 = vadd.f32 0.0, %v1513
        %1515 = vmatmul.f32.gmra.mxu0 %v879
        %v1516 = vpop.f32.mrf.mxu0
        %v1517 = vadd.f32 0.0, %v1516
        %1518 = vmatmul.f32.gmra.mxu0 %v880
        %v1519 = vpop.f32.mrf.mxu0
        %v1520 = vadd.f32 0.0, %v1519
        %1521 = vmatmul.f32.gmra.mxu0 %v881
        %v1522 = vpop.f32.mrf.mxu0
        %v1523 = vadd.f32 0.0, %v1522
        %1524 = vmatmul.f32.gmra.mxu0 %v882
        %v1525 = vpop.f32.mrf.mxu0
        %v1526 = vadd.f32 0.0, %v1525
        %1527 = vdwg.mxu0
        %v1528 = vadd.f32 %v1469, %v1505
        %v1529 = vadd.f32 %v1469, %v1508
        %v1530 = vadd.f32 %v1469, %v1511
        %v1531 = vadd.f32 %v1469, %v1514
        %v1532 = vadd.f32 %v1469, %v1517
        %v1533 = vadd.f32 %v1469, %v1520
        %v1534 = vadd.f32 %v1469, %v1523
        %v1535 = vadd.f32 %v1469, %v1526
        %v1536 = vadd.f32 %v1459, %v1528
        %v1537 = vadd.f32 %v1460, %v1529
        %v1538 = vadd.f32 %v1461, %v1530
        %v1539 = vadd.f32 %v1462, %v1531
        %v1540 = vadd.f32 %v1463, %v1532
        %v1541 = vadd.f32 %v1464, %v1533
        %v1542 = vadd.f32 %v1465, %v1534
        %v1543 = vadd.f32 %v1466, %v1535
        %v1544 = vmax.f32 %v1536, 0.0
        %v1545 = vmax.f32 %v1537, 0.0
        %v1546 = vmax.f32 %v1538, 0.0
        %v1547 = vmax.f32 %v1539, 0.0
        %v1548 = vmax.f32 %v1540, 0.0
        %v1549 = vmax.f32 %v1541, 0.0
        %v1550 = vmax.f32 %v1542, 0.0
        %v1551 = vmax.f32 %v1543, 0.0
        %v1552 = vld [vmem:[%s9] sm:$0x1]
        %v1554 = vperm.slane %v1552, 0
        %vm1556 = vcmp.ge.s32.totalorder %v895, 4
        %vm1557 = vcmp.ge.s32.totalorder %v896, 4
        %vm1558 = vcmp.ge.s32.totalorder %v897, 4
        %vm1559 = vcmp.ge.s32.totalorder %v898, 4
        %vm1560 = vcmp.ge.s32.totalorder %v899, 4
        %vm1561 = vcmp.ge.s32.totalorder %v900, 4
        %vm1562 = vcmp.ge.s32.totalorder %v901, 4
        %vm1563 = vcmp.ge.s32.totalorder %v902, 4
        %v1564 = vsel %vm1556, 1, 0
        %v1565 = vsel %vm1557, 1, 0
        %v1566 = vsel %vm1558, 1, 0
        %v1567 = vsel %vm1559, 1, 0
        %v1568 = vsel %vm1560, 1, 0
        %v1569 = vsel %vm1561, 1, 0
        %v1570 = vsel %vm1562, 1, 0
        %v1571 = vsel %vm1563, 1, 0
        %v1572 = vcvt.s32.f32 %v1564
        %v1573 = vcvt.s32.f32 %v1565
        %v1574 = vcvt.s32.f32 %v1566
        %v1575 = vcvt.s32.f32 %v1567
        %v1576 = vcvt.s32.f32 %v1568
        %v1577 = vcvt.s32.f32 %v1569
        %v1578 = vcvt.s32.f32 %v1570
        %v1579 = vcvt.s32.f32 %v1571
        %v1580 = vrot.slane %v1544, 4
        %v1581 = vrot.slane %v1545, 4
        %v1582 = vrot.slane %v1546, 4
        %v1583 = vrot.slane %v1547, 4
        %v1584 = vrot.slane %v1548, 4
        %v1585 = vrot.slane %v1549, 4
        %v1586 = vrot.slane %v1550, 4
        %v1587 = vrot.slane %v1551, 4
        %vm1588 = vcmp.lt.s32.totalorder %v886, 4
        %v1589 = vsel %vm1588, %v1586, %v1587
        %v1590 = vsel %vm1588, %v1585, %v1586
        %v1591 = vsel %vm1588, %v1584, %v1585
        %v1592 = vsel %vm1588, %v1583, %v1584
        %v1593 = vsel %vm1588, %v1582, %v1583
        %v1594 = vsel %vm1588, %v1581, %v1582
        %v1595 = vsel %vm1588, %v1580, %v1581
        %v1596 = vsel %vm1588, %v1587, %v1580
        %v1597 = vmul.f32 %v1596, %v1572
        %v1598 = vmul.f32 %v1595, %v1573
        %v1599 = vmul.f32 %v1594, %v1574
        %v1600 = vmul.f32 %v1593, %v1575
        %v1601 = vmul.f32 %v1592, %v1576
        %v1602 = vmul.f32 %v1591, %v1577
        %v1603 = vmul.f32 %v1590, %v1578
        %v1604 = vmul.f32 %v1589, %v1579
        %v1605 = vld [vmem:[#allocation7] sm:$0xff]
        %v1606 = vld [vmem:[#allocation7 + $0x8] sm:$0xff]
        %v1607 = vld [vmem:[#allocation7 + $0x10] sm:$0xff]
        %v1608 = vld [vmem:[#allocation7 + $0x18] sm:$0xff]
        %v1609 = vld [vmem:[#allocation7 + $0x20] sm:$0xff]
        %v1610 = vld [vmem:[#allocation7 + $0x28] sm:$0xff]
        %v1611 = vld [vmem:[#allocation7 + $0x30] sm:$0xff]
        %v1612 = vld [vmem:[#allocation7 + $0x38] sm:$0xff]
        %v1613 = vld [vmem:[#allocation7 + $0x40] sm:$0xff]
        %v1614 = vld [vmem:[#allocation7 + $0x48] sm:$0xff]
        %v1615 = vld [vmem:[#allocation7 + $0x50] sm:$0xff]
        %v1616 = vld [vmem:[#allocation7 + $0x58] sm:$0xff]
        %v1617 = vld [vmem:[#allocation7 + $0x60] sm:$0xff]
        %v1618 = vld [vmem:[#allocation7 + $0x68] sm:$0xff]
        %v1619 = vld [vmem:[#allocation7 + $0x70] sm:$0xff]
        %v1620 = vld [vmem:[#allocation7 + $0x78] sm:$0xff]
        %1621 = vmatpush.msra.mxu0 %v1620
        %1622 = vmatpush.msra.mxu0 %v1619
        %1623 = vmatpush.msra.mxu0 %v1618
        %1624 = vmatpush.msra.mxu0 %v1617
        %1625 = vmatpush.msra.mxu0 %v1616
        %1626 = vmatpush.msra.mxu0 %v1615
        %1627 = vmatpush.msra.mxu0 %v1614
        %1628 = vmatpush.msra.mxu0 %v1613
        %1629 = vmatpush.msra.mxu0 %v1612
        %1630 = vmatpush.msra.mxu0 %v1611
        %1631 = vmatpush.msra.mxu0 %v1610
        %1632 = vmatpush.msra.mxu0 %v1609
        %1633 = vmatpush.msra.mxu0 %v1608
        %1634 = vmatpush.msra.mxu0 %v1607
        %1635 = vmatpush.msra.mxu0 %v1606
        %1636 = vmatpush.msra.mxu0 %v1605
        %1637 = vmatmul.f32.gmra.mxu0 %v1597
        %v1638 = vpop.f32.mrf.mxu0
        %v1639 = vadd.f32 0.0, %v1638
        %1640 = vmatmul.f32.gmra.mxu0 %v1598
        %v1641 = vpop.f32.mrf.mxu0
        %v1642 = vadd.f32 0.0, %v1641
        %1643 = vmatmul.f32.gmra.mxu0 %v1599
        %v1644 = vpop.f32.mrf.mxu0
        %v1645 = vadd.f32 0.0, %v1644
        %1646 = vmatmul.f32.gmra.mxu0 %v1600
        %v1647 = vpop.f32.mrf.mxu0
        %v1648 = vadd.f32 0.0, %v1647
        %1649 = vmatmul.f32.gmra.mxu0 %v1601
        %v1650 = vpop.f32.mrf.mxu0
        %v1651 = vadd.f32 0.0, %v1650
        %1652 = vmatmul.f32.gmra.mxu0 %v1602
        %v1653 = vpop.f32.mrf.mxu0
        %v1654 = vadd.f32 0.0, %v1653
        %1655 = vmatmul.f32.gmra.mxu0 %v1603
        %v1656 = vpop.f32.mrf.mxu0
        %v1657 = vadd.f32 0.0, %v1656
        %1658 = vmatmul.f32.gmra.mxu0 %v1604
        %v1659 = vpop.f32.mrf.mxu0
        %v1660 = vadd.f32 0.0, %v1659
        %1661 = vdwg.mxu0
        %v1662 = vadd.f32 %v1554, %v1639
        %v1663 = vadd.f32 %v1554, %v1642
        %v1664 = vadd.f32 %v1554, %v1645
        %v1665 = vadd.f32 %v1554, %v1648
        %v1666 = vadd.f32 %v1554, %v1651
        %v1667 = vadd.f32 %v1554, %v1654
        %v1668 = vadd.f32 %v1554, %v1657
        %v1669 = vadd.f32 %v1554, %v1660
        %v1670 = vrot.slane %v1544, 6
        %v1671 = vrot.slane %v1545, 6
        %v1672 = vrot.slane %v1546, 6
        %v1673 = vrot.slane %v1547, 6
        %v1674 = vrot.slane %v1548, 6
        %v1675 = vrot.slane %v1549, 6
        %v1676 = vrot.slane %v1550, 6
        %v1677 = vrot.slane %v1551, 6
        %v1678 = vsel %vm939, %v1676, %v1677
        %v1679 = vsel %vm939, %v1675, %v1676
        %v1680 = vsel %vm939, %v1674, %v1675
        %v1681 = vsel %vm939, %v1673, %v1674
        %v1682 = vsel %vm939, %v1672, %v1673
        %v1683 = vsel %vm939, %v1671, %v1672
        %v1684 = vsel %vm939, %v1670, %v1671
        %v1685 = vsel %vm939, %v1677, %v1670
        %v1686 = vmul.f32 %v1685, %v923
        %v1687 = vmul.f32 %v1684, %v924
        %v1688 = vmul.f32 %v1683, %v925
        %v1689 = vmul.f32 %v1682, %v926
        %v1690 = vmul.f32 %v1681, %v927
        %v1691 = vmul.f32 %v1680, %v928
        %v1692 = vmul.f32 %v1679, %v929
        %v1693 = vmul.f32 %v1678, %v930
        %s1694 = scalar_lea.vmem [#allocation7], 128
        %v1695 = vld [vmem:[%s1694] sm:$0xff]
        %v1696 = vld [vmem:[%s1694 + $0x8] sm:$0xff]
        %v1697 = vld [vmem:[%s1694 + $0x10] sm:$0xff]
        %v1698 = vld [vmem:[%s1694 + $0x18] sm:$0xff]
        %v1699 = vld [vmem:[%s1694 + $0x20] sm:$0xff]
        %v1700 = vld [vmem:[%s1694 + $0x28] sm:$0xff]
        %v1701 = vld [vmem:[%s1694 + $0x30] sm:$0xff]
        %v1702 = vld [vmem:[%s1694 + $0x38] sm:$0xff]
        %v1703 = vld [vmem:[%s1694 + $0x40] sm:$0xff]
        %v1704 = vld [vmem:[%s1694 + $0x48] sm:$0xff]
        %v1705 = vld [vmem:[%s1694 + $0x50] sm:$0xff]
        %v1706 = vld [vmem:[%s1694 + $0x58] sm:$0xff]
        %v1707 = vld [vmem:[%s1694 + $0x60] sm:$0xff]
        %v1708 = vld [vmem:[%s1694 + $0x68] sm:$0xff]
        %v1709 = vld [vmem:[%s1694 + $0x70] sm:$0xff]
        %v1710 = vld [vmem:[%s1694 + $0x78] sm:$0xff]
        %1711 = vmatpush.msra.mxu0 %v1710
        %1712 = vmatpush.msra.mxu0 %v1709
        %1713 = vmatpush.msra.mxu0 %v1708
        %1714 = vmatpush.msra.mxu0 %v1707
        %1715 = vmatpush.msra.mxu0 %v1706
        %1716 = vmatpush.msra.mxu0 %v1705
        %1717 = vmatpush.msra.mxu0 %v1704
        %1718 = vmatpush.msra.mxu0 %v1703
        %1719 = vmatpush.msra.mxu0 %v1702
        %1720 = vmatpush.msra.mxu0 %v1701
        %1721 = vmatpush.msra.mxu0 %v1700
        %1722 = vmatpush.msra.mxu0 %v1699
        %1723 = vmatpush.msra.mxu0 %v1698
        %1724 = vmatpush.msra.mxu0 %v1697
        %1725 = vmatpush.msra.mxu0 %v1696
        %1726 = vmatpush.msra.mxu0 %v1695
        %1727 = vmatmul.f32.gmra.mxu0 %v1686
        %v1728 = vpop.f32.mrf.mxu0
        %v1729 = vadd.f32 0.0, %v1728
        %1730 = vmatmul.f32.gmra.mxu0 %v1687
        %v1731 = vpop.f32.mrf.mxu0
        %v1732 = vadd.f32 0.0, %v1731
        %1733 = vmatmul.f32.gmra.mxu0 %v1688
        %v1734 = vpop.f32.mrf.mxu0
        %v1735 = vadd.f32 0.0, %v1734
        %1736 = vmatmul.f32.gmra.mxu0 %v1689
        %v1737 = vpop.f32.mrf.mxu0
        %v1738 = vadd.f32 0.0, %v1737
        %1739 = vmatmul.f32.gmra.mxu0 %v1690
        %v1740 = vpop.f32.mrf.mxu0
        %v1741 = vadd.f32 0.0, %v1740
        %1742 = vmatmul.f32.gmra.mxu0 %v1691
        %v1743 = vpop.f32.mrf.mxu0
        %v1744 = vadd.f32 0.0, %v1743
        %1745 = vmatmul.f32.gmra.mxu0 %v1692
        %v1746 = vpop.f32.mrf.mxu0
        %v1747 = vadd.f32 0.0, %v1746
        %1748 = vmatmul.f32.gmra.mxu0 %v1693
        %v1749 = vpop.f32.mrf.mxu0
        %v1750 = vadd.f32 0.0, %v1749
        %1751 = vdwg.mxu0
        %v1752 = vadd.f32 %v1662, %v1729
        %v1753 = vadd.f32 %v1663, %v1732
        %v1754 = vadd.f32 %v1664, %v1735
        %v1755 = vadd.f32 %v1665, %v1738
        %v1756 = vadd.f32 %v1666, %v1741
        %v1757 = vadd.f32 %v1667, %v1744
        %v1758 = vadd.f32 %v1668, %v1747
        %v1759 = vadd.f32 %v1669, %v1750
        %s1760 = scalar_lea.vmem [#allocation7], 256
        %v1761 = vld [vmem:[%s1760] sm:$0xff]
        %v1762 = vld [vmem:[%s1760 + $0x8] sm:$0xff]
        %v1763 = vld [vmem:[%s1760 + $0x10] sm:$0xff]
        %v1764 = vld [vmem:[%s1760 + $0x18] sm:$0xff]
        %v1765 = vld [vmem:[%s1760 + $0x20] sm:$0xff]
        %v1766 = vld [vmem:[%s1760 + $0x28] sm:$0xff]
        %v1767 = vld [vmem:[%s1760 + $0x30] sm:$0xff]
        %v1768 = vld [vmem:[%s1760 + $0x38] sm:$0xff]
        %v1769 = vld [vmem:[%s1760 + $0x40] sm:$0xff]
        %v1770 = vld [vmem:[%s1760 + $0x48] sm:$0xff]
        %v1771 = vld [vmem:[%s1760 + $0x50] sm:$0xff]
        %v1772 = vld [vmem:[%s1760 + $0x58] sm:$0xff]
        %v1773 = vld [vmem:[%s1760 + $0x60] sm:$0xff]
        %v1774 = vld [vmem:[%s1760 + $0x68] sm:$0xff]
        %v1775 = vld [vmem:[%s1760 + $0x70] sm:$0xff]
        %v1776 = vld [vmem:[%s1760 + $0x78] sm:$0xff]
        %1777 = vmatpush.msra.mxu0 %v1776
        %1778 = vmatpush.msra.mxu0 %v1775
        %1779 = vmatpush.msra.mxu0 %v1774
        %1780 = vmatpush.msra.mxu0 %v1773
        %1781 = vmatpush.msra.mxu0 %v1772
        %1782 = vmatpush.msra.mxu0 %v1771
        %1783 = vmatpush.msra.mxu0 %v1770
        %1784 = vmatpush.msra.mxu0 %v1769
        %1785 = vmatpush.msra.mxu0 %v1768
        %1786 = vmatpush.msra.mxu0 %v1767
        %1787 = vmatpush.msra.mxu0 %v1766
        %1788 = vmatpush.msra.mxu0 %v1765
        %1789 = vmatpush.msra.mxu0 %v1764
        %1790 = vmatpush.msra.mxu0 %v1763
        %1791 = vmatpush.msra.mxu0 %v1762
        %1792 = vmatpush.msra.mxu0 %v1761
        %1793 = vmatmul.f32.gmra.mxu0 %v1544
        %v1794 = vpop.f32.mrf.mxu0
        %v1795 = vadd.f32 0.0, %v1794
        %1796 = vmatmul.f32.gmra.mxu0 %v1545
        %v1797 = vpop.f32.mrf.mxu0
        %v1798 = vadd.f32 0.0, %v1797
        %1799 = vmatmul.f32.gmra.mxu0 %v1546
        %v1800 = vpop.f32.mrf.mxu0
        %v1801 = vadd.f32 0.0, %v1800
        %1802 = vmatmul.f32.gmra.mxu0 %v1547
        %v1803 = vpop.f32.mrf.mxu0
        %v1804 = vadd.f32 0.0, %v1803
        %1805 = vmatmul.f32.gmra.mxu0 %v1548
        %v1806 = vpop.f32.mrf.mxu0
        %v1807 = vadd.f32 0.0, %v1806
        %1808 = vmatmul.f32.gmra.mxu0 %v1549
        %v1809 = vpop.f32.mrf.mxu0
        %v1810 = vadd.f32 0.0, %v1809
        %1811 = vmatmul.f32.gmra.mxu0 %v1550
        %v1812 = vpop.f32.mrf.mxu0
        %v1813 = vadd.f32 0.0, %v1812
        %1814 = vmatmul.f32.gmra.mxu0 %v1551
        %v1815 = vpop.f32.mrf.mxu0
        %v1816 = vadd.f32 0.0, %v1815
        %1817 = vdwg.mxu0
        %v1818 = vadd.f32 %v1752, %v1795
        %v1819 = vadd.f32 %v1753, %v1798
        %v1820 = vadd.f32 %v1754, %v1801
        %v1821 = vadd.f32 %v1755, %v1804
        %v1822 = vadd.f32 %v1756, %v1807
        %v1823 = vadd.f32 %v1757, %v1810
        %v1824 = vadd.f32 %v1758, %v1813
        %v1825 = vadd.f32 %v1759, %v1816
        %v1826 = vmax.f32 %v1818, 0.0
        %v1827 = vmax.f32 %v1819, 0.0
        %v1828 = vmax.f32 %v1820, 0.0
        %v1829 = vmax.f32 %v1821, 0.0
        %v1830 = vmax.f32 %v1822, 0.0
        %v1831 = vmax.f32 %v1823, 0.0
        %v1832 = vmax.f32 %v1824, 0.0
        %v1833 = vmax.f32 %v1825, 0.0
        %v1834 = vld [vmem:[%s11] sm:$0x1]
        %v1836 = vperm.slane %v1834, 0
        %v1838 = vrot.slane %v1826, 4
        %v1839 = vrot.slane %v1827, 4
        %v1840 = vrot.slane %v1828, 4
        %v1841 = vrot.slane %v1829, 4
        %v1842 = vrot.slane %v1830, 4
        %v1843 = vrot.slane %v1831, 4
        %v1844 = vrot.slane %v1832, 4
        %v1845 = vrot.slane %v1833, 4
        %v1846 = vsel %vm1588, %v1844, %v1845
        %v1847 = vsel %vm1588, %v1843, %v1844
        %v1848 = vsel %vm1588, %v1842, %v1843
        %v1849 = vsel %vm1588, %v1841, %v1842
        %v1850 = vsel %vm1588, %v1840, %v1841
        %v1851 = vsel %vm1588, %v1839, %v1840
        %v1852 = vsel %vm1588, %v1838, %v1839
        %v1853 = vsel %vm1588, %v1845, %v1838
        %v1854 = vmul.f32 %v1853, %v1572
        %v1855 = vmul.f32 %v1852, %v1573
        %v1856 = vmul.f32 %v1851, %v1574
        %v1857 = vmul.f32 %v1850, %v1575
        %v1858 = vmul.f32 %v1849, %v1576
        %v1859 = vmul.f32 %v1848, %v1577
        %v1860 = vmul.f32 %v1847, %v1578
        %v1861 = vmul.f32 %v1846, %v1579
        %v1862 = vld [vmem:[#allocation8] sm:$0xff]
        %v1863 = vld [vmem:[#allocation8 + $0x8] sm:$0xff]
        %v1864 = vld [vmem:[#allocation8 + $0x10] sm:$0xff]
        %v1865 = vld [vmem:[#allocation8 + $0x18] sm:$0xff]
        %v1866 = vld [vmem:[#allocation8 + $0x20] sm:$0xff]
        %v1867 = vld [vmem:[#allocation8 + $0x28] sm:$0xff]
        %v1868 = vld [vmem:[#allocation8 + $0x30] sm:$0xff]
        %v1869 = vld [vmem:[#allocation8 + $0x38] sm:$0xff]
        %v1870 = vld [vmem:[#allocation8 + $0x40] sm:$0xff]
        %v1871 = vld [vmem:[#allocation8 + $0x48] sm:$0xff]
        %v1872 = vld [vmem:[#allocation8 + $0x50] sm:$0xff]
        %v1873 = vld [vmem:[#allocation8 + $0x58] sm:$0xff]
        %v1874 = vld [vmem:[#allocation8 + $0x60] sm:$0xff]
        %v1875 = vld [vmem:[#allocation8 + $0x68] sm:$0xff]
        %v1876 = vld [vmem:[#allocation8 + $0x70] sm:$0xff]
        %v1877 = vld [vmem:[#allocation8 + $0x78] sm:$0xff]
        %1878 = vmatpush.msra.mxu0 %v1877
        %1879 = vmatpush.msra.mxu0 %v1876
        %1880 = vmatpush.msra.mxu0 %v1875
        %1881 = vmatpush.msra.mxu0 %v1874
        %1882 = vmatpush.msra.mxu0 %v1873
        %1883 = vmatpush.msra.mxu0 %v1872
        %1884 = vmatpush.msra.mxu0 %v1871
        %1885 = vmatpush.msra.mxu0 %v1870
        %1886 = vmatpush.msra.mxu0 %v1869
        %1887 = vmatpush.msra.mxu0 %v1868
        %1888 = vmatpush.msra.mxu0 %v1867
        %1889 = vmatpush.msra.mxu0 %v1866
        %1890 = vmatpush.msra.mxu0 %v1865
        %1891 = vmatpush.msra.mxu0 %v1864
        %1892 = vmatpush.msra.mxu0 %v1863
        %1893 = vmatpush.msra.mxu0 %v1862
        %1894 = vmatmul.f32.gmra.mxu0 %v1854
        %v1895 = vpop.f32.mrf.mxu0
        %v1896 = vadd.f32 0.0, %v1895
        %1897 = vmatmul.f32.gmra.mxu0 %v1855
        %v1898 = vpop.f32.mrf.mxu0
        %v1899 = vadd.f32 0.0, %v1898
        %1900 = vmatmul.f32.gmra.mxu0 %v1856
        %v1901 = vpop.f32.mrf.mxu0
        %v1902 = vadd.f32 0.0, %v1901
        %1903 = vmatmul.f32.gmra.mxu0 %v1857
        %v1904 = vpop.f32.mrf.mxu0
        %v1905 = vadd.f32 0.0, %v1904
        %1906 = vmatmul.f32.gmra.mxu0 %v1858
        %v1907 = vpop.f32.mrf.mxu0
        %v1908 = vadd.f32 0.0, %v1907
        %1909 = vmatmul.f32.gmra.mxu0 %v1859
        %v1910 = vpop.f32.mrf.mxu0
        %v1911 = vadd.f32 0.0, %v1910
        %1912 = vmatmul.f32.gmra.mxu0 %v1860
        %v1913 = vpop.f32.mrf.mxu0
        %v1914 = vadd.f32 0.0, %v1913
        %1915 = vmatmul.f32.gmra.mxu0 %v1861
        %v1916 = vpop.f32.mrf.mxu0
        %v1917 = vadd.f32 0.0, %v1916
        %1918 = vdwg.mxu0
        %v1919 = vadd.f32 %v1836, %v1896
        %v1920 = vadd.f32 %v1836, %v1899
        %v1921 = vadd.f32 %v1836, %v1902
        %v1922 = vadd.f32 %v1836, %v1905
        %v1923 = vadd.f32 %v1836, %v1908
        %v1924 = vadd.f32 %v1836, %v1911
        %v1925 = vadd.f32 %v1836, %v1914
        %v1926 = vadd.f32 %v1836, %v1917
        %v1927 = vrot.slane %v1826, 6
        %v1928 = vrot.slane %v1827, 6
        %v1929 = vrot.slane %v1828, 6
        %v1930 = vrot.slane %v1829, 6
        %v1931 = vrot.slane %v1830, 6
        %v1932 = vrot.slane %v1831, 6
        %v1933 = vrot.slane %v1832, 6
        %v1934 = vrot.slane %v1833, 6
        %v1935 = vsel %vm939, %v1933, %v1934
        %v1936 = vsel %vm939, %v1932, %v1933
        %v1937 = vsel %vm939, %v1931, %v1932
        %v1938 = vsel %vm939, %v1930, %v1931
        %v1939 = vsel %vm939, %v1929, %v1930
        %v1940 = vsel %vm939, %v1928, %v1929
        %v1941 = vsel %vm939, %v1927, %v1928
        %v1942 = vsel %vm939, %v1934, %v1927
        %v1943 = vmul.f32 %v1942, %v923
        %v1944 = vmul.f32 %v1941, %v924
        %v1945 = vmul.f32 %v1940, %v925
        %v1946 = vmul.f32 %v1939, %v926
        %v1947 = vmul.f32 %v1938, %v927
        %v1948 = vmul.f32 %v1937, %v928
        %v1949 = vmul.f32 %v1936, %v929
        %v1950 = vmul.f32 %v1935, %v930
        %s1951 = scalar_lea.vmem [#allocation8], 128
        %v1952 = vld [vmem:[%s1951] sm:$0xff]
        %v1953 = vld [vmem:[%s1951 + $0x8] sm:$0xff]
        %v1954 = vld [vmem:[%s1951 + $0x10] sm:$0xff]
        %v1955 = vld [vmem:[%s1951 + $0x18] sm:$0xff]
        %v1956 = vld [vmem:[%s1951 + $0x20] sm:$0xff]
        %v1957 = vld [vmem:[%s1951 + $0x28] sm:$0xff]
        %v1958 = vld [vmem:[%s1951 + $0x30] sm:$0xff]
        %v1959 = vld [vmem:[%s1951 + $0x38] sm:$0xff]
        %v1960 = vld [vmem:[%s1951 + $0x40] sm:$0xff]
        %v1961 = vld [vmem:[%s1951 + $0x48] sm:$0xff]
        %v1962 = vld [vmem:[%s1951 + $0x50] sm:$0xff]
        %v1963 = vld [vmem:[%s1951 + $0x58] sm:$0xff]
        %v1964 = vld [vmem:[%s1951 + $0x60] sm:$0xff]
        %v1965 = vld [vmem:[%s1951 + $0x68] sm:$0xff]
        %v1966 = vld [vmem:[%s1951 + $0x70] sm:$0xff]
        %v1967 = vld [vmem:[%s1951 + $0x78] sm:$0xff]
        %1968 = vmatpush.msra.mxu0 %v1967
        %1969 = vmatpush.msra.mxu0 %v1966
        %1970 = vmatpush.msra.mxu0 %v1965
        %1971 = vmatpush.msra.mxu0 %v1964
        %1972 = vmatpush.msra.mxu0 %v1963
        %1973 = vmatpush.msra.mxu0 %v1962
        %1974 = vmatpush.msra.mxu0 %v1961
        %1975 = vmatpush.msra.mxu0 %v1960
        %1976 = vmatpush.msra.mxu0 %v1959
        %1977 = vmatpush.msra.mxu0 %v1958
        %1978 = vmatpush.msra.mxu0 %v1957
        %1979 = vmatpush.msra.mxu0 %v1956
        %1980 = vmatpush.msra.mxu0 %v1955
        %1981 = vmatpush.msra.mxu0 %v1954
        %1982 = vmatpush.msra.mxu0 %v1953
        %1983 = vmatpush.msra.mxu0 %v1952
        %1984 = vmatmul.f32.gmra.mxu0 %v1943
        %v1985 = vpop.f32.mrf.mxu0
        %v1986 = vadd.f32 0.0, %v1985
        %1987 = vmatmul.f32.gmra.mxu0 %v1944
        %v1988 = vpop.f32.mrf.mxu0
        %v1989 = vadd.f32 0.0, %v1988
        %1990 = vmatmul.f32.gmra.mxu0 %v1945
        %v1991 = vpop.f32.mrf.mxu0
        %v1992 = vadd.f32 0.0, %v1991
        %1993 = vmatmul.f32.gmra.mxu0 %v1946
        %v1994 = vpop.f32.mrf.mxu0
        %v1995 = vadd.f32 0.0, %v1994
        %1996 = vmatmul.f32.gmra.mxu0 %v1947
        %v1997 = vpop.f32.mrf.mxu0
        %v1998 = vadd.f32 0.0, %v1997
        %1999 = vmatmul.f32.gmra.mxu0 %v1948
        %v2000 = vpop.f32.mrf.mxu0
        %v2001 = vadd.f32 0.0, %v2000
        %2002 = vmatmul.f32.gmra.mxu0 %v1949
        %v2003 = vpop.f32.mrf.mxu0
        %v2004 = vadd.f32 0.0, %v2003
        %2005 = vmatmul.f32.gmra.mxu0 %v1950
        %v2006 = vpop.f32.mrf.mxu0
        %v2007 = vadd.f32 0.0, %v2006
        %2008 = vdwg.mxu0
        %v2009 = vadd.f32 %v1919, %v1986
        %v2010 = vadd.f32 %v1920, %v1989
        %v2011 = vadd.f32 %v1921, %v1992
        %v2012 = vadd.f32 %v1922, %v1995
        %v2013 = vadd.f32 %v1923, %v1998
        %v2014 = vadd.f32 %v1924, %v2001
        %v2015 = vadd.f32 %v1925, %v2004
        %v2016 = vadd.f32 %v1926, %v2007
        %s2017 = scalar_lea.vmem [#allocation8], 256
        %v2018 = vld [vmem:[%s2017] sm:$0xff]
        %v2019 = vld [vmem:[%s2017 + $0x8] sm:$0xff]
        %v2020 = vld [vmem:[%s2017 + $0x10] sm:$0xff]
        %v2021 = vld [vmem:[%s2017 + $0x18] sm:$0xff]
        %v2022 = vld [vmem:[%s2017 + $0x20] sm:$0xff]
        %v2023 = vld [vmem:[%s2017 + $0x28] sm:$0xff]
        %v2024 = vld [vmem:[%s2017 + $0x30] sm:$0xff]
        %v2025 = vld [vmem:[%s2017 + $0x38] sm:$0xff]
        %v2026 = vld [vmem:[%s2017 + $0x40] sm:$0xff]
        %v2027 = vld [vmem:[%s2017 + $0x48] sm:$0xff]
        %v2028 = vld [vmem:[%s2017 + $0x50] sm:$0xff]
        %v2029 = vld [vmem:[%s2017 + $0x58] sm:$0xff]
        %v2030 = vld [vmem:[%s2017 + $0x60] sm:$0xff]
        %v2031 = vld [vmem:[%s2017 + $0x68] sm:$0xff]
        %v2032 = vld [vmem:[%s2017 + $0x70] sm:$0xff]
        %v2033 = vld [vmem:[%s2017 + $0x78] sm:$0xff]
        %2034 = vmatpush.msra.mxu0 %v2033
        %2035 = vmatpush.msra.mxu0 %v2032
        %2036 = vmatpush.msra.mxu0 %v2031
        %2037 = vmatpush.msra.mxu0 %v2030
        %2038 = vmatpush.msra.mxu0 %v2029
        %2039 = vmatpush.msra.mxu0 %v2028
        %2040 = vmatpush.msra.mxu0 %v2027
        %2041 = vmatpush.msra.mxu0 %v2026
        %2042 = vmatpush.msra.mxu0 %v2025
        %2043 = vmatpush.msra.mxu0 %v2024
        %2044 = vmatpush.msra.mxu0 %v2023
        %2045 = vmatpush.msra.mxu0 %v2022
        %2046 = vmatpush.msra.mxu0 %v2021
        %2047 = vmatpush.msra.mxu0 %v2020
        %2048 = vmatpush.msra.mxu0 %v2019
        %2049 = vmatpush.msra.mxu0 %v2018
        %2050 = vmatmul.f32.gmra.mxu0 %v1826
        %v2051 = vpop.f32.mrf.mxu0
        %v2052 = vadd.f32 0.0, %v2051
        %2053 = vmatmul.f32.gmra.mxu0 %v1827
        %v2054 = vpop.f32.mrf.mxu0
        %v2055 = vadd.f32 0.0, %v2054
        %2056 = vmatmul.f32.gmra.mxu0 %v1828
        %v2057 = vpop.f32.mrf.mxu0
        %v2058 = vadd.f32 0.0, %v2057
        %2059 = vmatmul.f32.gmra.mxu0 %v1829
        %v2060 = vpop.f32.mrf.mxu0
        %v2061 = vadd.f32 0.0, %v2060
        %2062 = vmatmul.f32.gmra.mxu0 %v1830
        %v2063 = vpop.f32.mrf.mxu0
        %v2064 = vadd.f32 0.0, %v2063
        %2065 = vmatmul.f32.gmra.mxu0 %v1831
        %v2066 = vpop.f32.mrf.mxu0
        %v2067 = vadd.f32 0.0, %v2066
        %2068 = vmatmul.f32.gmra.mxu0 %v1832
        %v2069 = vpop.f32.mrf.mxu0
        %v2070 = vadd.f32 0.0, %v2069
        %2071 = vmatmul.f32.gmra.mxu0 %v1833
        %v2072 = vpop.f32.mrf.mxu0
        %v2073 = vadd.f32 0.0, %v2072
        %2074 = vdwg.mxu0
        %v2075 = vadd.f32 %v2009, %v2052
        %v2076 = vadd.f32 %v2010, %v2055
        %v2077 = vadd.f32 %v2011, %v2058
        %v2078 = vadd.f32 %v2012, %v2061
        %v2079 = vadd.f32 %v2013, %v2064
        %v2080 = vadd.f32 %v2014, %v2067
        %v2081 = vadd.f32 %v2015, %v2070
        %v2082 = vadd.f32 %v2016, %v2073
        %v2083 = vmax.f32 %v2075, 0.0
        %v2084 = vmax.f32 %v2076, 0.0
        %v2085 = vmax.f32 %v2077, 0.0
        %v2086 = vmax.f32 %v2078, 0.0
        %v2087 = vmax.f32 %v2079, 0.0
        %v2088 = vmax.f32 %v2080, 0.0
        %v2089 = vmax.f32 %v2081, 0.0
        %v2090 = vmax.f32 %v2082, 0.0
        %v2091 = vadd.f32 %v2083, %v1544
        %v2092 = vadd.f32 %v2084, %v1545
        %v2093 = vadd.f32 %v2085, %v1546
        %v2094 = vadd.f32 %v2086, %v1547
        %v2095 = vadd.f32 %v2087, %v1548
        %v2096 = vadd.f32 %v2088, %v1549
        %v2097 = vadd.f32 %v2089, %v1550
        %v2098 = vadd.f32 %v2090, %v1551
        %v2099 = vmax.f32 %v2091, 0.0
        %v2100 = vmax.f32 %v2092, 0.0
        %v2101 = vmax.f32 %v2093, 0.0
        %v2102 = vmax.f32 %v2094, 0.0
        %v2103 = vmax.f32 %v2095, 0.0
        %v2104 = vmax.f32 %v2096, 0.0
        %v2105 = vmax.f32 %v2097, 0.0
        %v2106 = vmax.f32 %v2098, 0.0
        %v2107 = vld [vmem:[%s13] sm:$0x1]
        %v2109 = vperm.slane %v2107, 0
        %vm2111 = vcmp.ge.s32.totalorder %v895, 8
        %vm2112 = vcmp.ge.s32.totalorder %v896, 8
        %vm2113 = vcmp.ge.s32.totalorder %v897, 8
        %vm2114 = vcmp.ge.s32.totalorder %v898, 8
        %vm2115 = vcmp.ge.s32.totalorder %v899, 8
        %vm2116 = vcmp.ge.s32.totalorder %v900, 8
        %vm2117 = vcmp.ge.s32.totalorder %v901, 8
        %vm2118 = vcmp.ge.s32.totalorder %v902, 8
        %v2119 = vsel %vm2111, 1, 0
        %v2120 = vsel %vm2112, 1, 0
        %v2121 = vsel %vm2113, 1, 0
        %v2122 = vsel %vm2114, 1, 0
        %v2123 = vsel %vm2115, 1, 0
        %v2124 = vsel %vm2116, 1, 0
        %v2125 = vsel %vm2117, 1, 0
        %v2126 = vsel %vm2118, 1, 0
        %v2127 = vcvt.s32.f32 %v2119
        %v2128 = vcvt.s32.f32 %v2120
        %v2129 = vcvt.s32.f32 %v2121
        %v2130 = vcvt.s32.f32 %v2122
        %v2131 = vcvt.s32.f32 %v2123
        %v2132 = vcvt.s32.f32 %v2124
        %v2133 = vcvt.s32.f32 %v2125
        %v2134 = vcvt.s32.f32 %v2126
        %v2135 = vmul.f32 %v2106, %v2127
        %v2136 = vmul.f32 %v2099, %v2128
        %v2137 = vmul.f32 %v2100, %v2129
        %v2138 = vmul.f32 %v2101, %v2130
        %v2139 = vmul.f32 %v2102, %v2131
        %v2140 = vmul.f32 %v2103, %v2132
        %v2141 = vmul.f32 %v2104, %v2133
        %v2142 = vmul.f32 %v2105, %v2134
        %v2143 = vld [vmem:[#allocation10] sm:$0xff]
        %v2144 = vld [vmem:[#allocation10 + $0x8] sm:$0xff]
        %v2145 = vld [vmem:[#allocation10 + $0x10] sm:$0xff]
        %v2146 = vld [vmem:[#allocation10 + $0x18] sm:$0xff]
        %v2147 = vld [vmem:[#allocation10 + $0x20] sm:$0xff]
        %v2148 = vld [vmem:[#allocation10 + $0x28] sm:$0xff]
        %v2149 = vld [vmem:[#allocation10 + $0x30] sm:$0xff]
        %v2150 = vld [vmem:[#allocation10 + $0x38] sm:$0xff]
        %v2151 = vld [vmem:[#allocation10 + $0x40] sm:$0xff]
        %v2152 = vld [vmem:[#allocation10 + $0x48] sm:$0xff]
        %v2153 = vld [vmem:[#allocation10 + $0x50] sm:$0xff]
        %v2154 = vld [vmem:[#allocation10 + $0x58] sm:$0xff]
        %v2155 = vld [vmem:[#allocation10 + $0x60] sm:$0xff]
        %v2156 = vld [vmem:[#allocation10 + $0x68] sm:$0xff]
        %v2157 = vld [vmem:[#allocation10 + $0x70] sm:$0xff]
        %v2158 = vld [vmem:[#allocation10 + $0x78] sm:$0xff]
        %2159 = vmatpush.msra.mxu0 %v2158
        %2160 = vmatpush.msra.mxu0 %v2157
        %2161 = vmatpush.msra.mxu0 %v2156
        %2162 = vmatpush.msra.mxu0 %v2155
        %2163 = vmatpush.msra.mxu0 %v2154
        %2164 = vmatpush.msra.mxu0 %v2153
        %2165 = vmatpush.msra.mxu0 %v2152
        %2166 = vmatpush.msra.mxu0 %v2151
        %2167 = vmatpush.msra.mxu0 %v2150
        %2168 = vmatpush.msra.mxu0 %v2149
        %2169 = vmatpush.msra.mxu0 %v2148
        %2170 = vmatpush.msra.mxu0 %v2147
        %2171 = vmatpush.msra.mxu0 %v2146
        %2172 = vmatpush.msra.mxu0 %v2145
        %2173 = vmatpush.msra.mxu0 %v2144
        %2174 = vmatpush.msra.mxu0 %v2143
        %2175 = vmatmul.f32.gmra.mxu0 %v2135
        %v2176 = vpop.f32.mrf.mxu0
        %v2177 = vadd.f32 0.0, %v2176
        %2178 = vmatmul.f32.gmra.mxu0 %v2136
        %v2179 = vpop.f32.mrf.mxu0
        %v2180 = vadd.f32 0.0, %v2179
        %2181 = vmatmul.f32.gmra.mxu0 %v2137
        %v2182 = vpop.f32.mrf.mxu0
        %v2183 = vadd.f32 0.0, %v2182
        %2184 = vmatmul.f32.gmra.mxu0 %v2138
        %v2185 = vpop.f32.mrf.mxu0
        %v2186 = vadd.f32 0.0, %v2185
        %2187 = vmatmul.f32.gmra.mxu0 %v2139
        %v2188 = vpop.f32.mrf.mxu0
        %v2189 = vadd.f32 0.0, %v2188
        %2190 = vmatmul.f32.gmra.mxu0 %v2140
        %v2191 = vpop.f32.mrf.mxu0
        %v2192 = vadd.f32 0.0, %v2191
        %2193 = vmatmul.f32.gmra.mxu0 %v2141
        %v2194 = vpop.f32.mrf.mxu0
        %v2195 = vadd.f32 0.0, %v2194
        %2196 = vmatmul.f32.gmra.mxu0 %v2142
        %v2197 = vpop.f32.mrf.mxu0
        %v2198 = vadd.f32 0.0, %v2197
        %2199 = vdwg.mxu0
        %v2200 = vadd.f32 %v2109, %v2177
        %v2201 = vadd.f32 %v2109, %v2180
        %v2202 = vadd.f32 %v2109, %v2183
        %v2203 = vadd.f32 %v2109, %v2186
        %v2204 = vadd.f32 %v2109, %v2189
        %v2205 = vadd.f32 %v2109, %v2192
        %v2206 = vadd.f32 %v2109, %v2195
        %v2207 = vadd.f32 %v2109, %v2198
        %v2208 = vrot.slane %v2099, 4
        %v2209 = vrot.slane %v2100, 4
        %v2210 = vrot.slane %v2101, 4
        %v2211 = vrot.slane %v2102, 4
        %v2212 = vrot.slane %v2103, 4
        %v2213 = vrot.slane %v2104, 4
        %v2214 = vrot.slane %v2105, 4
        %v2215 = vrot.slane %v2106, 4
        %v2216 = vsel %vm1588, %v2214, %v2215
        %v2217 = vsel %vm1588, %v2213, %v2214
        %v2218 = vsel %vm1588, %v2212, %v2213
        %v2219 = vsel %vm1588, %v2211, %v2212
        %v2220 = vsel %vm1588, %v2210, %v2211
        %v2221 = vsel %vm1588, %v2209, %v2210
        %v2222 = vsel %vm1588, %v2208, %v2209
        %v2223 = vsel %vm1588, %v2215, %v2208
        %v2224 = vmul.f32 %v2223, %v1572
        %v2225 = vmul.f32 %v2222, %v1573
        %v2226 = vmul.f32 %v2221, %v1574
        %v2227 = vmul.f32 %v2220, %v1575
        %v2228 = vmul.f32 %v2219, %v1576
        %v2229 = vmul.f32 %v2218, %v1577
        %v2230 = vmul.f32 %v2217, %v1578
        %v2231 = vmul.f32 %v2216, %v1579
        %s2232 = scalar_lea.vmem [#allocation10], 128
        %v2233 = vld [vmem:[%s2232] sm:$0xff]
        %v2234 = vld [vmem:[%s2232 + $0x8] sm:$0xff]
        %v2235 = vld [vmem:[%s2232 + $0x10] sm:$0xff]
        %v2236 = vld [vmem:[%s2232 + $0x18] sm:$0xff]
        %v2237 = vld [vmem:[%s2232 + $0x20] sm:$0xff]
        %v2238 = vld [vmem:[%s2232 + $0x28] sm:$0xff]
        %v2239 = vld [vmem:[%s2232 + $0x30] sm:$0xff]
        %v2240 = vld [vmem:[%s2232 + $0x38] sm:$0xff]
        %v2241 = vld [vmem:[%s2232 + $0x40] sm:$0xff]
        %v2242 = vld [vmem:[%s2232 + $0x48] sm:$0xff]
        %v2243 = vld [vmem:[%s2232 + $0x50] sm:$0xff]
        %v2244 = vld [vmem:[%s2232 + $0x58] sm:$0xff]
        %v2245 = vld [vmem:[%s2232 + $0x60] sm:$0xff]
        %v2246 = vld [vmem:[%s2232 + $0x68] sm:$0xff]
        %v2247 = vld [vmem:[%s2232 + $0x70] sm:$0xff]
        %v2248 = vld [vmem:[%s2232 + $0x78] sm:$0xff]
        %2249 = vmatpush.msra.mxu0 %v2248
        %2250 = vmatpush.msra.mxu0 %v2247
        %2251 = vmatpush.msra.mxu0 %v2246
        %2252 = vmatpush.msra.mxu0 %v2245
        %2253 = vmatpush.msra.mxu0 %v2244
        %2254 = vmatpush.msra.mxu0 %v2243
        %2255 = vmatpush.msra.mxu0 %v2242
        %2256 = vmatpush.msra.mxu0 %v2241
        %2257 = vmatpush.msra.mxu0 %v2240
        %2258 = vmatpush.msra.mxu0 %v2239
        %2259 = vmatpush.msra.mxu0 %v2238
        %2260 = vmatpush.msra.mxu0 %v2237
        %2261 = vmatpush.msra.mxu0 %v2236
        %2262 = vmatpush.msra.mxu0 %v2235
        %2263 = vmatpush.msra.mxu0 %v2234
        %2264 = vmatpush.msra.mxu0 %v2233
        %2265 = vmatmul.f32.gmra.mxu0 %v2224
        %v2266 = vpop.f32.mrf.mxu0
        %v2267 = vadd.f32 0.0, %v2266
        %2268 = vmatmul.f32.gmra.mxu0 %v2225
        %v2269 = vpop.f32.mrf.mxu0
        %v2270 = vadd.f32 0.0, %v2269
        %2271 = vmatmul.f32.gmra.mxu0 %v2226
        %v2272 = vpop.f32.mrf.mxu0
        %v2273 = vadd.f32 0.0, %v2272
        %2274 = vmatmul.f32.gmra.mxu0 %v2227
        %v2275 = vpop.f32.mrf.mxu0
        %v2276 = vadd.f32 0.0, %v2275
        %2277 = vmatmul.f32.gmra.mxu0 %v2228
        %v2278 = vpop.f32.mrf.mxu0
        %v2279 = vadd.f32 0.0, %v2278
        %2280 = vmatmul.f32.gmra.mxu0 %v2229
        %v2281 = vpop.f32.mrf.mxu0
        %v2282 = vadd.f32 0.0, %v2281
        %2283 = vmatmul.f32.gmra.mxu0 %v2230
        %v2284 = vpop.f32.mrf.mxu0
        %v2285 = vadd.f32 0.0, %v2284
        %2286 = vmatmul.f32.gmra.mxu0 %v2231
        %v2287 = vpop.f32.mrf.mxu0
        %v2288 = vadd.f32 0.0, %v2287
        %2289 = vdwg.mxu0
        %v2290 = vadd.f32 %v2200, %v2267
        %v2291 = vadd.f32 %v2201, %v2270
        %v2292 = vadd.f32 %v2202, %v2273
        %v2293 = vadd.f32 %v2203, %v2276
        %v2294 = vadd.f32 %v2204, %v2279
        %v2295 = vadd.f32 %v2205, %v2282
        %v2296 = vadd.f32 %v2206, %v2285
        %v2297 = vadd.f32 %v2207, %v2288
        %s2298 = scalar_lea.vmem [#allocation10], 256
        %v2299 = vld [vmem:[%s2298] sm:$0xff]
        %v2300 = vld [vmem:[%s2298 + $0x8] sm:$0xff]
        %v2301 = vld [vmem:[%s2298 + $0x10] sm:$0xff]
        %v2302 = vld [vmem:[%s2298 + $0x18] sm:$0xff]
        %v2303 = vld [vmem:[%s2298 + $0x20] sm:$0xff]
        %v2304 = vld [vmem:[%s2298 + $0x28] sm:$0xff]
        %v2305 = vld [vmem:[%s2298 + $0x30] sm:$0xff]
        %v2306 = vld [vmem:[%s2298 + $0x38] sm:$0xff]
        %v2307 = vld [vmem:[%s2298 + $0x40] sm:$0xff]
        %v2308 = vld [vmem:[%s2298 + $0x48] sm:$0xff]
        %v2309 = vld [vmem:[%s2298 + $0x50] sm:$0xff]
        %v2310 = vld [vmem:[%s2298 + $0x58] sm:$0xff]
        %v2311 = vld [vmem:[%s2298 + $0x60] sm:$0xff]
        %v2312 = vld [vmem:[%s2298 + $0x68] sm:$0xff]
        %v2313 = vld [vmem:[%s2298 + $0x70] sm:$0xff]
        %v2314 = vld [vmem:[%s2298 + $0x78] sm:$0xff]
        %2315 = vmatpush.msra.mxu0 %v2314
        %2316 = vmatpush.msra.mxu0 %v2313
        %2317 = vmatpush.msra.mxu0 %v2312
        %2318 = vmatpush.msra.mxu0 %v2311
        %2319 = vmatpush.msra.mxu0 %v2310
        %2320 = vmatpush.msra.mxu0 %v2309
        %2321 = vmatpush.msra.mxu0 %v2308
        %2322 = vmatpush.msra.mxu0 %v2307
        %2323 = vmatpush.msra.mxu0 %v2306
        %2324 = vmatpush.msra.mxu0 %v2305
        %2325 = vmatpush.msra.mxu0 %v2304
        %2326 = vmatpush.msra.mxu0 %v2303
        %2327 = vmatpush.msra.mxu0 %v2302
        %2328 = vmatpush.msra.mxu0 %v2301
        %2329 = vmatpush.msra.mxu0 %v2300
        %2330 = vmatpush.msra.mxu0 %v2299
        %2331 = vmatmul.f32.gmra.mxu0 %v2099
        %v2332 = vpop.f32.mrf.mxu0
        %v2333 = vadd.f32 0.0, %v2332
        %2334 = vmatmul.f32.gmra.mxu0 %v2100
        %v2335 = vpop.f32.mrf.mxu0
        %v2336 = vadd.f32 0.0, %v2335
        %2337 = vmatmul.f32.gmra.mxu0 %v2101
        %v2338 = vpop.f32.mrf.mxu0
        %v2339 = vadd.f32 0.0, %v2338
        %2340 = vmatmul.f32.gmra.mxu0 %v2102
        %v2341 = vpop.f32.mrf.mxu0
        %v2342 = vadd.f32 0.0, %v2341
        %2343 = vmatmul.f32.gmra.mxu0 %v2103
        %v2344 = vpop.f32.mrf.mxu0
        %v2345 = vadd.f32 0.0, %v2344
        %2346 = vmatmul.f32.gmra.mxu0 %v2104
        %v2347 = vpop.f32.mrf.mxu0
        %v2348 = vadd.f32 0.0, %v2347
        %2349 = vmatmul.f32.gmra.mxu0 %v2105
        %v2350 = vpop.f32.mrf.mxu0
        %v2351 = vadd.f32 0.0, %v2350
        %2352 = vmatmul.f32.gmra.mxu0 %v2106
        %v2353 = vpop.f32.mrf.mxu0
        %v2354 = vadd.f32 0.0, %v2353
        %2355 = vdwg.mxu0
        %v2356 = vadd.f32 %v2290, %v2333
        %v2357 = vadd.f32 %v2291, %v2336
        %v2358 = vadd.f32 %v2292, %v2339
        %v2359 = vadd.f32 %v2293, %v2342
        %v2360 = vadd.f32 %v2294, %v2345
        %v2361 = vadd.f32 %v2295, %v2348
        %v2362 = vadd.f32 %v2296, %v2351
        %v2363 = vadd.f32 %v2297, %v2354
        %v2364 = vmax.f32 %v2356, 0.0
        %v2365 = vmax.f32 %v2357, 0.0
        %v2366 = vmax.f32 %v2358, 0.0
        %v2367 = vmax.f32 %v2359, 0.0
        %v2368 = vmax.f32 %v2360, 0.0
        %v2369 = vmax.f32 %v2361, 0.0
        %v2370 = vmax.f32 %v2362, 0.0
        %v2371 = vmax.f32 %v2363, 0.0
        %v2372 = vld [vmem:[%s15] sm:$0x1]
        %v2374 = vperm.slane %v2372, 0
        %v2376 = vmul.f32 %v2371, %v2127
        %v2377 = vmul.f32 %v2364, %v2128
        %v2378 = vmul.f32 %v2365, %v2129
        %v2379 = vmul.f32 %v2366, %v2130
        %v2380 = vmul.f32 %v2367, %v2131
        %v2381 = vmul.f32 %v2368, %v2132
        %v2382 = vmul.f32 %v2369, %v2133
        %v2383 = vmul.f32 %v2370, %v2134
        %v2384 = vld [vmem:[#allocation11] sm:$0xff]
        %v2385 = vld [vmem:[#allocation11 + $0x8] sm:$0xff]
        %v2386 = vld [vmem:[#allocation11 + $0x10] sm:$0xff]
        %v2387 = vld [vmem:[#allocation11 + $0x18] sm:$0xff]
        %v2388 = vld [vmem:[#allocation11 + $0x20] sm:$0xff]
        %v2389 = vld [vmem:[#allocation11 + $0x28] sm:$0xff]
        %v2390 = vld [vmem:[#allocation11 + $0x30] sm:$0xff]
        %v2391 = vld [vmem:[#allocation11 + $0x38] sm:$0xff]
        %v2392 = vld [vmem:[#allocation11 + $0x40] sm:$0xff]
        %v2393 = vld [vmem:[#allocation11 + $0x48] sm:$0xff]
        %v2394 = vld [vmem:[#allocation11 + $0x50] sm:$0xff]
        %v2395 = vld [vmem:[#allocation11 + $0x58] sm:$0xff]
        %v2396 = vld [vmem:[#allocation11 + $0x60] sm:$0xff]
        %v2397 = vld [vmem:[#allocation11 + $0x68] sm:$0xff]
        %v2398 = vld [vmem:[#allocation11 + $0x70] sm:$0xff]
        %v2399 = vld [vmem:[#allocation11 + $0x78] sm:$0xff]
        %2400 = vmatpush.msra.mxu0 %v2399
        %2401 = vmatpush.msra.mxu0 %v2398
        %2402 = vmatpush.msra.mxu0 %v2397
        %2403 = vmatpush.msra.mxu0 %v2396
        %2404 = vmatpush.msra.mxu0 %v2395
        %2405 = vmatpush.msra.mxu0 %v2394
        %2406 = vmatpush.msra.mxu0 %v2393
        %2407 = vmatpush.msra.mxu0 %v2392
        %2408 = vmatpush.msra.mxu0 %v2391
        %2409 = vmatpush.msra.mxu0 %v2390
        %2410 = vmatpush.msra.mxu0 %v2389
        %2411 = vmatpush.msra.mxu0 %v2388
        %2412 = vmatpush.msra.mxu0 %v2387
        %2413 = vmatpush.msra.mxu0 %v2386
        %2414 = vmatpush.msra.mxu0 %v2385
        %2415 = vmatpush.msra.mxu0 %v2384
        %2416 = vmatmul.f32.gmra.mxu0 %v2376
        %v2417 = vpop.f32.mrf.mxu0
        %v2418 = vadd.f32 0.0, %v2417
        %2419 = vmatmul.f32.gmra.mxu0 %v2377
        %v2420 = vpop.f32.mrf.mxu0
        %v2421 = vadd.f32 0.0, %v2420
        %2422 = vmatmul.f32.gmra.mxu0 %v2378
        %v2423 = vpop.f32.mrf.mxu0
        %v2424 = vadd.f32 0.0, %v2423
        %2425 = vmatmul.f32.gmra.mxu0 %v2379
        %v2426 = vpop.f32.mrf.mxu0
        %v2427 = vadd.f32 0.0, %v2426
        %2428 = vmatmul.f32.gmra.mxu0 %v2380
        %v2429 = vpop.f32.mrf.mxu0
        %v2430 = vadd.f32 0.0, %v2429
        %2431 = vmatmul.f32.gmra.mxu0 %v2381
        %v2432 = vpop.f32.mrf.mxu0
        %v2433 = vadd.f32 0.0, %v2432
        %2434 = vmatmul.f32.gmra.mxu0 %v2382
        %v2435 = vpop.f32.mrf.mxu0
        %v2436 = vadd.f32 0.0, %v2435
        %2437 = vmatmul.f32.gmra.mxu0 %v2383
        %v2438 = vpop.f32.mrf.mxu0
        %v2439 = vadd.f32 0.0, %v2438
        %2440 = vdwg.mxu0
        %v2441 = vadd.f32 %v2374, %v2418
        %v2442 = vadd.f32 %v2374, %v2421
        %v2443 = vadd.f32 %v2374, %v2424
        %v2444 = vadd.f32 %v2374, %v2427
        %v2445 = vadd.f32 %v2374, %v2430
        %v2446 = vadd.f32 %v2374, %v2433
        %v2447 = vadd.f32 %v2374, %v2436
        %v2448 = vadd.f32 %v2374, %v2439
        %v2449 = vrot.slane %v2364, 4
        %v2450 = vrot.slane %v2365, 4
        %v2451 = vrot.slane %v2366, 4
        %v2452 = vrot.slane %v2367, 4
        %v2453 = vrot.slane %v2368, 4
        %v2454 = vrot.slane %v2369, 4
        %v2455 = vrot.slane %v2370, 4
        %v2456 = vrot.slane %v2371, 4
        %v2457 = vsel %vm1588, %v2455, %v2456
        %v2458 = vsel %vm1588, %v2454, %v2455
        %v2459 = vsel %vm1588, %v2453, %v2454
        %v2460 = vsel %vm1588, %v2452, %v2453
        %v2461 = vsel %vm1588, %v2451, %v2452
        %v2462 = vsel %vm1588, %v2450, %v2451
        %v2463 = vsel %vm1588, %v2449, %v2450
        %v2464 = vsel %vm1588, %v2456, %v2449
        %v2465 = vmul.f32 %v2464, %v1572
        %v2466 = vmul.f32 %v2463, %v1573
        %v2467 = vmul.f32 %v2462, %v1574
        %v2468 = vmul.f32 %v2461, %v1575
        %v2469 = vmul.f32 %v2460, %v1576
        %v2470 = vmul.f32 %v2459, %v1577
        %v2471 = vmul.f32 %v2458, %v1578
        %v2472 = vmul.f32 %v2457, %v1579
        %s2473 = scalar_lea.vmem [#allocation11], 128
        %v2474 = vld [vmem:[%s2473] sm:$0xff]
        %v2475 = vld [vmem:[%s2473 + $0x8] sm:$0xff]
        %v2476 = vld [vmem:[%s2473 + $0x10] sm:$0xff]
        %v2477 = vld [vmem:[%s2473 + $0x18] sm:$0xff]
        %v2478 = vld [vmem:[%s2473 + $0x20] sm:$0xff]
        %v2479 = vld [vmem:[%s2473 + $0x28] sm:$0xff]
        %v2480 = vld [vmem:[%s2473 + $0x30] sm:$0xff]
        %v2481 = vld [vmem:[%s2473 + $0x38] sm:$0xff]
        %v2482 = vld [vmem:[%s2473 + $0x40] sm:$0xff]
        %v2483 = vld [vmem:[%s2473 + $0x48] sm:$0xff]
        %v2484 = vld [vmem:[%s2473 + $0x50] sm:$0xff]
        %v2485 = vld [vmem:[%s2473 + $0x58] sm:$0xff]
        %v2486 = vld [vmem:[%s2473 + $0x60] sm:$0xff]
        %v2487 = vld [vmem:[%s2473 + $0x68] sm:$0xff]
        %v2488 = vld [vmem:[%s2473 + $0x70] sm:$0xff]
        %v2489 = vld [vmem:[%s2473 + $0x78] sm:$0xff]
        %2490 = vmatpush.msra.mxu0 %v2489
        %2491 = vmatpush.msra.mxu0 %v2488
        %2492 = vmatpush.msra.mxu0 %v2487
        %2493 = vmatpush.msra.mxu0 %v2486
        %2494 = vmatpush.msra.mxu0 %v2485
        %2495 = vmatpush.msra.mxu0 %v2484
        %2496 = vmatpush.msra.mxu0 %v2483
        %2497 = vmatpush.msra.mxu0 %v2482
        %2498 = vmatpush.msra.mxu0 %v2481
        %2499 = vmatpush.msra.mxu0 %v2480
        %2500 = vmatpush.msra.mxu0 %v2479
        %2501 = vmatpush.msra.mxu0 %v2478
        %2502 = vmatpush.msra.mxu0 %v2477
        %2503 = vmatpush.msra.mxu0 %v2476
        %2504 = vmatpush.msra.mxu0 %v2475
        %2505 = vmatpush.msra.mxu0 %v2474
        %2506 = vmatmul.f32.gmra.mxu0 %v2465
        %v2507 = vpop.f32.mrf.mxu0
        %v2508 = vadd.f32 0.0, %v2507
        %2509 = vmatmul.f32.gmra.mxu0 %v2466
        %v2510 = vpop.f32.mrf.mxu0
        %v2511 = vadd.f32 0.0, %v2510
        %2512 = vmatmul.f32.gmra.mxu0 %v2467
        %v2513 = vpop.f32.mrf.mxu0
        %v2514 = vadd.f32 0.0, %v2513
        %2515 = vmatmul.f32.gmra.mxu0 %v2468
        %v2516 = vpop.f32.mrf.mxu0
        %v2517 = vadd.f32 0.0, %v2516
        %2518 = vmatmul.f32.gmra.mxu0 %v2469
        %v2519 = vpop.f32.mrf.mxu0
        %v2520 = vadd.f32 0.0, %v2519
        %2521 = vmatmul.f32.gmra.mxu0 %v2470
        %v2522 = vpop.f32.mrf.mxu0
        %v2523 = vadd.f32 0.0, %v2522
        %2524 = vmatmul.f32.gmra.mxu0 %v2471
        %v2525 = vpop.f32.mrf.mxu0
        %v2526 = vadd.f32 0.0, %v2525
        %2527 = vmatmul.f32.gmra.mxu0 %v2472
        %v2528 = vpop.f32.mrf.mxu0
        %v2529 = vadd.f32 0.0, %v2528
        %2530 = vdwg.mxu0
        %v2531 = vadd.f32 %v2441, %v2508
        %v2532 = vadd.f32 %v2442, %v2511
        %v2533 = vadd.f32 %v2443, %v2514
        %v2534 = vadd.f32 %v2444, %v2517
        %v2535 = vadd.f32 %v2445, %v2520
        %v2536 = vadd.f32 %v2446, %v2523
        %v2537 = vadd.f32 %v2447, %v2526
        %v2538 = vadd.f32 %v2448, %v2529
        %s2539 = scalar_lea.vmem [#allocation11], 256
        %v2540 = vld [vmem:[%s2539] sm:$0xff]
        %v2541 = vld [vmem:[%s2539 + $0x8] sm:$0xff]
        %v2542 = vld [vmem:[%s2539 + $0x10] sm:$0xff]
        %v2543 = vld [vmem:[%s2539 + $0x18] sm:$0xff]
        %v2544 = vld [vmem:[%s2539 + $0x20] sm:$0xff]
        %v2545 = vld [vmem:[%s2539 + $0x28] sm:$0xff]
        %v2546 = vld [vmem:[%s2539 + $0x30] sm:$0xff]
        %v2547 = vld [vmem:[%s2539 + $0x38] sm:$0xff]
        %v2548 = vld [vmem:[%s2539 + $0x40] sm:$0xff]
        %v2549 = vld [vmem:[%s2539 + $0x48] sm:$0xff]
        %v2550 = vld [vmem:[%s2539 + $0x50] sm:$0xff]
        %v2551 = vld [vmem:[%s2539 + $0x58] sm:$0xff]
        %v2552 = vld [vmem:[%s2539 + $0x60] sm:$0xff]
        %v2553 = vld [vmem:[%s2539 + $0x68] sm:$0xff]
        %v2554 = vld [vmem:[%s2539 + $0x70] sm:$0xff]
        %v2555 = vld [vmem:[%s2539 + $0x78] sm:$0xff]
        %2556 = vmatpush.msra.mxu0 %v2555
        %2557 = vmatpush.msra.mxu0 %v2554
        %2558 = vmatpush.msra.mxu0 %v2553
        %2559 = vmatpush.msra.mxu0 %v2552
        %2560 = vmatpush.msra.mxu0 %v2551
        %2561 = vmatpush.msra.mxu0 %v2550
        %2562 = vmatpush.msra.mxu0 %v2549
        %2563 = vmatpush.msra.mxu0 %v2548
        %2564 = vmatpush.msra.mxu0 %v2547
        %2565 = vmatpush.msra.mxu0 %v2546
        %2566 = vmatpush.msra.mxu0 %v2545
        %2567 = vmatpush.msra.mxu0 %v2544
        %2568 = vmatpush.msra.mxu0 %v2543
        %2569 = vmatpush.msra.mxu0 %v2542
        %2570 = vmatpush.msra.mxu0 %v2541
        %2571 = vmatpush.msra.mxu0 %v2540
        %2572 = vmatmul.f32.gmra.mxu0 %v2364
        %v2573 = vpop.f32.mrf.mxu0
        %v2574 = vadd.f32 0.0, %v2573
        %2575 = vmatmul.f32.gmra.mxu0 %v2365
        %v2576 = vpop.f32.mrf.mxu0
        %v2577 = vadd.f32 0.0, %v2576
        %2578 = vmatmul.f32.gmra.mxu0 %v2366
        %v2579 = vpop.f32.mrf.mxu0
        %v2580 = vadd.f32 0.0, %v2579
        %2581 = vmatmul.f32.gmra.mxu0 %v2367
        %v2582 = vpop.f32.mrf.mxu0
        %v2583 = vadd.f32 0.0, %v2582
        %2584 = vmatmul.f32.gmra.mxu0 %v2368
        %v2585 = vpop.f32.mrf.mxu0
        %v2586 = vadd.f32 0.0, %v2585
        %2587 = vmatmul.f32.gmra.mxu0 %v2369
        %v2588 = vpop.f32.mrf.mxu0
        %v2589 = vadd.f32 0.0, %v2588
        %2590 = vmatmul.f32.gmra.mxu0 %v2370
        %v2591 = vpop.f32.mrf.mxu0
        %v2592 = vadd.f32 0.0, %v2591
        %2593 = vmatmul.f32.gmra.mxu0 %v2371
        %v2594 = vpop.f32.mrf.mxu0
        %v2595 = vadd.f32 0.0, %v2594
        %2596 = vdwg.mxu0
        %v2597 = vadd.f32 %v2531, %v2574
        %v2598 = vadd.f32 %v2532, %v2577
        %v2599 = vadd.f32 %v2533, %v2580
        %v2600 = vadd.f32 %v2534, %v2583
        %v2601 = vadd.f32 %v2535, %v2586
        %v2602 = vadd.f32 %v2536, %v2589
        %v2603 = vadd.f32 %v2537, %v2592
        %v2604 = vadd.f32 %v2538, %v2595
        %v2605 = vmax.f32 %v2597, 0.0
        %v2606 = vmax.f32 %v2598, 0.0
        %v2607 = vmax.f32 %v2599, 0.0
        %v2608 = vmax.f32 %v2600, 0.0
        %v2609 = vmax.f32 %v2601, 0.0
        %v2610 = vmax.f32 %v2602, 0.0
        %v2611 = vmax.f32 %v2603, 0.0
        %v2612 = vmax.f32 %v2604, 0.0
        %v2613 = vld [vmem:[%s17] sm:$0x1]
        %v2615 = vperm.slane %v2613, 0
        %v2617 = vld [vmem:[#allocation13] sm:$0xff]
        %v2618 = vld [vmem:[#allocation13 + $0x8] sm:$0xff]
        %v2619 = vld [vmem:[#allocation13 + $0x10] sm:$0xff]
        %v2620 = vld [vmem:[#allocation13 + $0x18] sm:$0xff]
        %v2621 = vld [vmem:[#allocation13 + $0x20] sm:$0xff]
        %v2622 = vld [vmem:[#allocation13 + $0x28] sm:$0xff]
        %v2623 = vld [vmem:[#allocation13 + $0x30] sm:$0xff]
        %v2624 = vld [vmem:[#allocation13 + $0x38] sm:$0xff]
        %v2625 = vld [vmem:[#allocation13 + $0x40] sm:$0xff]
        %v2626 = vld [vmem:[#allocation13 + $0x48] sm:$0xff]
        %v2627 = vld [vmem:[#allocation13 + $0x50] sm:$0xff]
        %v2628 = vld [vmem:[#allocation13 + $0x58] sm:$0xff]
        %v2629 = vld [vmem:[#allocation13 + $0x60] sm:$0xff]
        %v2630 = vld [vmem:[#allocation13 + $0x68] sm:$0xff]
        %v2631 = vld [vmem:[#allocation13 + $0x70] sm:$0xff]
        %v2632 = vld [vmem:[#allocation13 + $0x78] sm:$0xff]
        %2633 = vmatpush.msra.mxu0 %v2632
        %2634 = vmatpush.msra.mxu0 %v2631
        %2635 = vmatpush.msra.mxu0 %v2630
        %2636 = vmatpush.msra.mxu0 %v2629
        %2637 = vmatpush.msra.mxu0 %v2628
        %2638 = vmatpush.msra.mxu0 %v2627
        %2639 = vmatpush.msra.mxu0 %v2626
        %2640 = vmatpush.msra.mxu0 %v2625
        %2641 = vmatpush.msra.mxu0 %v2624
        %2642 = vmatpush.msra.mxu0 %v2623
        %2643 = vmatpush.msra.mxu0 %v2622
        %2644 = vmatpush.msra.mxu0 %v2621
        %2645 = vmatpush.msra.mxu0 %v2620
        %2646 = vmatpush.msra.mxu0 %v2619
        %2647 = vmatpush.msra.mxu0 %v2618
        %2648 = vmatpush.msra.mxu0 %v2617
        %2649 = vmatmul.f32.gmra.mxu0 %v2099
        %v2650 = vpop.f32.mrf.mxu0
        %v2651 = vadd.f32 0.0, %v2650
        %2652 = vmatmul.f32.gmra.mxu0 %v2100
        %v2653 = vpop.f32.mrf.mxu0
        %v2654 = vadd.f32 0.0, %v2653
        %2655 = vmatmul.f32.gmra.mxu0 %v2101
        %v2656 = vpop.f32.mrf.mxu0
        %v2657 = vadd.f32 0.0, %v2656
        %2658 = vmatmul.f32.gmra.mxu0 %v2102
        %v2659 = vpop.f32.mrf.mxu0
        %v2660 = vadd.f32 0.0, %v2659
        %2661 = vmatmul.f32.gmra.mxu0 %v2103
        %v2662 = vpop.f32.mrf.mxu0
        %v2663 = vadd.f32 0.0, %v2662
        %2664 = vmatmul.f32.gmra.mxu0 %v2104
        %v2665 = vpop.f32.mrf.mxu0
        %v2666 = vadd.f32 0.0, %v2665
        %2667 = vmatmul.f32.gmra.mxu0 %v2105
        %v2668 = vpop.f32.mrf.mxu0
        %v2669 = vadd.f32 0.0, %v2668
        %2670 = vmatmul.f32.gmra.mxu0 %v2106
        %v2671 = vpop.f32.mrf.mxu0
        %v2672 = vadd.f32 0.0, %v2671
        %2673 = vdwg.mxu0
        %v2674 = vadd.f32 %v2615, %v2651
        %v2675 = vadd.f32 %v2615, %v2654
        %v2676 = vadd.f32 %v2615, %v2657
        %v2677 = vadd.f32 %v2615, %v2660
        %v2678 = vadd.f32 %v2615, %v2663
        %v2679 = vadd.f32 %v2615, %v2666
        %v2680 = vadd.f32 %v2615, %v2669
        %v2681 = vadd.f32 %v2615, %v2672
        %v2682 = vadd.f32 %v2605, %v2674
        %v2683 = vadd.f32 %v2606, %v2675
        %v2684 = vadd.f32 %v2607, %v2676
        %v2685 = vadd.f32 %v2608, %v2677
        %v2686 = vadd.f32 %v2609, %v2678
        %v2687 = vadd.f32 %v2610, %v2679
        %v2688 = vadd.f32 %v2611, %v2680
        %v2689 = vadd.f32 %v2612, %v2681
        %v2690 = vmax.f32 %v2682, 0.0
        %v2691 = vmax.f32 %v2683, 0.0
        %v2692 = vmax.f32 %v2684, 0.0
        %v2693 = vmax.f32 %v2685, 0.0
        %v2694 = vmax.f32 %v2686, 0.0
        %v2695 = vmax.f32 %v2687, 0.0
        %v2696 = vmax.f32 %v2688, 0.0
        %v2697 = vmax.f32 %v2689, 0.0
        %v2698 = vld [vmem:[%s19] sm:$0x1]
        %v2700 = vperm.slane %v2698, 0
        %v2702 = vld [vmem:[#allocation14] sm:$0xff]
        %v2703 = vld [vmem:[#allocation14 + $0x8] sm:$0xff]
        %v2704 = vld [vmem:[#allocation14 + $0x10] sm:$0xff]
        %v2705 = vld [vmem:[#allocation14 + $0x18] sm:$0xff]
        %v2706 = vld [vmem:[#allocation14 + $0x20] sm:$0xff]
        %v2707 = vld [vmem:[#allocation14 + $0x28] sm:$0xff]
        %v2708 = vld [vmem:[#allocation14 + $0x30] sm:$0xff]
        %v2709 = vld [vmem:[#allocation14 + $0x38] sm:$0xff]
        %v2710 = vld [vmem:[#allocation14 + $0x40] sm:$0xff]
        %v2711 = vld [vmem:[#allocation14 + $0x48] sm:$0xff]
        %v2712 = vld [vmem:[#allocation14 + $0x50] sm:$0xff]
        %v2713 = vld [vmem:[#allocation14 + $0x58] sm:$0xff]
        %v2714 = vld [vmem:[#allocation14 + $0x60] sm:$0xff]
        %v2715 = vld [vmem:[#allocation14 + $0x68] sm:$0xff]
        %v2716 = vld [vmem:[#allocation14 + $0x70] sm:$0xff]
        %v2717 = vld [vmem:[#allocation14 + $0x78] sm:$0xff]
        %2718 = vmatpush.msra.mxu0 %v2717
        %2719 = vmatpush.msra.mxu0 %v2716
        %2720 = vmatpush.msra.mxu0 %v2715
        %2721 = vmatpush.msra.mxu0 %v2714
        %2722 = vmatpush.msra.mxu0 %v2713
        %2723 = vmatpush.msra.mxu0 %v2712
        %2724 = vmatpush.msra.mxu0 %v2711
        %2725 = vmatpush.msra.mxu0 %v2710
        %2726 = vmatpush.msra.mxu0 %v2709
        %2727 = vmatpush.msra.mxu0 %v2708
        %2728 = vmatpush.msra.mxu0 %v2707
        %2729 = vmatpush.msra.mxu0 %v2706
        %2730 = vmatpush.msra.mxu0 %v2705
        %2731 = vmatpush.msra.mxu0 %v2704
        %2732 = vmatpush.msra.mxu0 %v2703
        %2733 = vmatpush.msra.mxu0 %v2702
        %2734 = vmatmul.f32.gmra.mxu0 %v2690
        %v2735 = vpop.f32.mrf.mxu0
        %2736 = vmatmul.f32.gmra.mxu0 %v2691
        %v2737 = vpop.f32.mrf.mxu0
        %2738 = vmatmul.f32.gmra.mxu0 %v2692
        %v2739 = vpop.f32.mrf.mxu0
        %2740 = vmatmul.f32.gmra.mxu0 %v2693
        %v2741 = vpop.f32.mrf.mxu0
        %2742 = vmatmul.f32.gmra.mxu0 %v2694
        %v2743 = vpop.f32.mrf.mxu0
        %v2744 = vadd.f32 0.0, %v2743
        %2745 = vmatmul.f32.gmra.mxu0 %v2695
        %v2746 = vpop.f32.mrf.mxu0
        %v2747 = vadd.f32 0.0, %v2746
        %2748 = vmatmul.f32.gmra.mxu0 %v2696
        %v2749 = vpop.f32.mrf.mxu0
        %v2750 = vadd.f32 0.0, %v2749
        %2751 = vmatmul.f32.gmra.mxu0 %v2697
        %v2752 = vpop.f32.mrf.mxu0
        %v2753 = vadd.f32 0.0, %v2752
        %2754 = vdwg.mxu0
        %v2755 = vadd.f32 %v2700, %v2744
        %v2756 = vadd.f32 %v2700, %v2747
        %v2757 = vadd.f32 %v2700, %v2750
        %v2758 = vadd.f32 %v2700, %v2753
        %2759 = vst [vmem:[%s857] sm:$0xff] %v2755
        %2760 = vst [vmem:[%s857 + $0x8] sm:$0xff] %v2756
        %2761 = vst [vmem:[%s857 + $0x10] sm:$0xff] %v2757
        %2762 = vst [vmem:[%s857 + $0x18] sm:$0xff] %v2758
        %s2763 = smul.u32 4, %s41
        %p2764 = scmp.lt.s32.totalorder %s40, 1
        %s2765 = scalar_select %p2764, %s40, 1
        %p2766 = scmp.lt.s32.totalorder %s2763, 3
        %s2767 = scalar_select %p2766, %s2763, 3
        %s2768 = smul.addr %s2765, 4
        %s2769 = sadd.s32 %s2767, %s2768
        %s2770 = smul.addr %s2769, 8
        %s2771 = scalar_lea.vmem %s20, %s2770
        // Predicated region
        $region133: #{tcn_forward.1} parent=99 // pred_check
          %p2772 = pneg %p508
        $region134: #{tcn_forward.1} parent=99 // pred_check_branch
          %2774 = sbr.rel (%p2772) target = $region136
        $region135: #{tcn_forward.1} parent=99 // pred_region
          %s2775 = smul.u32 4, %s41
        $region136: #{tcn_forward.1} parent=99 // pred_fallthru
          _
      $region100: #{tcn_forward.1} parent=5 // pred_fallthru
        _
      %p2776 = scmp.le.s32.totalorder 2, %s31
      // Predicated region
      $region137: #{tcn_forward.1} parent=5 // pred_check
        %p2777 = pneg %p2776
      $region138: #{tcn_forward.1} parent=5 // pred_check_branch
        %2779 = sbr.rel (%p2777) target = $region140
      $region139: #{tcn_forward.1} parent=5 // pred_region
        %s2780 = ssub.s32 %s31, 2
        // Predicated region
        $region141: #{tcn_forward.1} parent=139 // pred_check
          %p2781 = pneg %p514
        $region142: #{tcn_forward.1} parent=139 // pred_check_branch
          %2783 = sbr.rel (%p2781) target = $region144
        $region143: #{tcn_forward.1} parent=139 // pred_region
          %s2784 = smul.u32 4, %s43
          %p2785 = scmp.lt.s32.totalorder %s42, 1
          %s2786 = scalar_select %p2785, %s42, 1
          %p2787 = scmp.lt.s32.totalorder %s2784, 3
          %s2788 = scalar_select %p2787, %s2784, 3
          %s2789 = smul.addr %s2786, 4
          %s2790 = sadd.s32 %s2788, %s2789
          %s2791 = smul.addr %s2790, 8
          %s2792 = scalar_lea.vmem %s20, %s2791
        $region144: #{tcn_forward.1} parent=139 // pred_fallthru
          _
      $region140: #{tcn_forward.1} parent=5 // pred_fallthru
        _
    $region6: #{tcn_forward.1} parent=1 // loop_footer
      %s35 = sadd.s32 1, %s31
    $region7: #{tcn_forward.1} parent=1 // loop_footer_branch
      %30 = sbr.rel target = $region3
    $region8: #{tcn_forward.1} parent=1 // loop_exit
      _
    %2793 = vsyncpa [#allocation4], 1
    %s2794 = scalar_lea.sflag [#allocation4], 1
    %2795 = vsyncpa %s2794, 1
    %2796 = vsyncpa [#allocation6], 1
    %2797 = vsyncpa [#allocation9], 1
    %2798 = vsyncpa [#allocation12], 1
    %2799 = vsyncpa [#allocation15], 1

</llo_original>
